<compile_context>
chip_gen: v5e
topology: v5e:2x2
jax: 0.10.0
libtpu: 0.0.40
codegen_flags: <defaults>
</compile_context>

<pallas_src>
import math

import jax
import jax.numpy as jnp
from jax.experimental import pallas as pl
from jax.experimental.pallas import tpu as pltpu

VOCAB = 1000
EMB = 64
NHEAD = 8
HEAD_DIM = EMB // NHEAD
FFN = 2048                  # nn.TransformerEncoderLayer default dim_feedforward
NUM_LAYERS = 7
LN_EPS = 1e-5
NEG_INF = -1e30             # additive-mask / padded-vocab "minus infinity"
VOCAB_PAD = 1024            # vocab padded to a lane multiple for the logits matmul
ATTN_SCALE = 1.0 / math.sqrt(HEAD_DIM)


# ---------------------------------------------------------------------------
# Fused kernel: grid = (NUM_LAYERS,). Activation is resident in VMEM scratch.
# ---------------------------------------------------------------------------
def _make_fused_kernel(B, S):
    BS = B * S
    H, D, E = NHEAD, HEAD_DIM, EMB

    def kernel(x_ref, mask_ref,
               wqkv_ref, bqkv_ref, wo_ref, bo_ref,
               ln1w_ref, ln1b_ref, ln2w_ref, ln2b_ref,
               w1_ref, b1_ref, w2_ref, b2_ref,
               wlg_ref, blg_ref,
               out_ref, acc_ref, attn_scr):
        layer = pl.program_id(0)

        # Load the embedded input into the resident activation on the first step.
        @pl.when(layer == 0)
        def _():
            acc_ref[...] = x_ref[...]

        x = acc_ref[...]                                            # (BS, E) f32

        # ---- fused QKV projection: one lane-dense (BS,64)x(64,192) matmul ----
        qkv = jnp.dot(x.astype(jnp.bfloat16), wqkv_ref[0],
                      preferred_element_type=jnp.float32) + bqkv_ref[0]   # (BS, 3E)

        # Head split via static lane slices + leading-axis stack (no lane reshapes).
        qh = jnp.stack([qkv[:, h * D:(h + 1) * D] for h in range(H)], axis=0)
        kh = jnp.stack([qkv[:, E + h * D:E + (h + 1) * D] for h in range(H)], axis=0)
        vh = jnp.stack([qkv[:, 2 * E + h * D:2 * E + (h + 1) * D] for h in range(H)], axis=0)

        # ---- attention over the flattened token axis, all heads batched ------
        # mask is block-diagonal causal (0 within-sequence causal, -1e30 elsewhere),
        # so cross-sequence pairs vanish in the softmax.  1/sqrt(D) is folded into
        # the q columns of wqkv at init time.
        s = jnp.einsum('hqd,hkd->hqk', qh, kh,
                       preferred_element_type=jnp.float32) + mask_ref[...]  # (H,BS,BS)
        m = jnp.max(s, axis=-1, keepdims=True)
        p = jnp.exp(s - m)
        p = p * pl.reciprocal(jnp.sum(p, axis=-1, keepdims=True), approx=True)
        oh = jnp.einsum('hqk,hkd->hqd', p, vh,
                        preferred_element_type=jnp.float32)                 # (H,BS,D)

        # Merge heads back onto lanes via aligned static stores into a VMEM staging
        # buffer, then a single K=64 output-projection matmul.
        for h in range(H):
            attn_scr[:, h * D:(h + 1) * D] = oh[h]
        attn = jnp.dot(attn_scr[...].astype(jnp.bfloat16), wo_ref[0],
                       preferred_element_type=jnp.float32) + bo_ref[0]      # (BS, E)

        # ---- residual + LayerNorm1 (post-norm) ----
        y = x + attn
        mu = jnp.mean(y, axis=-1, keepdims=True)
        var = jnp.mean(jnp.square(y - mu), axis=-1, keepdims=True)
        y = (y - mu) * jax.lax.rsqrt(var + LN_EPS) * ln1w_ref[0] + ln1b_ref[0]

        # ---- feed-forward: Linear(E->FFN) -> ReLU -> Linear(FFN->E) ----
        h1 = jnp.dot(y.astype(jnp.bfloat16), w1_ref[0],
                     preferred_element_type=jnp.float32) + b1_ref[0]
        h1 = jnp.maximum(h1, 0.0)
        ff = jnp.dot(h1.astype(jnp.bfloat16), w2_ref[0],
                     preferred_element_type=jnp.float32) + b2_ref[0]

        # ---- residual + LayerNorm2 ----
        z = y + ff
        mu2 = jnp.mean(z, axis=-1, keepdims=True)
        var2 = jnp.mean(jnp.square(z - mu2), axis=-1, keepdims=True)
        z = (z - mu2) * jax.lax.rsqrt(var2 + LN_EPS) * ln2w_ref[0] + ln2b_ref[0]

        acc_ref[...] = z

        # ---- final projection + log_softmax, fused into the last layer step ----
        @pl.when(layer == pl.num_programs(0) - 1)
        def _():
            logits = jnp.dot(z.astype(jnp.bfloat16), wlg_ref[...],
                             preferred_element_type=jnp.float32) + blg_ref[...]
            mx = jnp.max(logits, axis=-1, keepdims=True)
            lse = jnp.log(jnp.sum(jnp.exp(logits - mx), axis=-1, keepdims=True)) + mx
            out_ref[...] = logits - lse          # full lane-dense (BS, VOCAB_PAD) block

    return kernel


def fused_transformer(x_flat, mask, B, S, layer_stack, wlg, blg):
    """x_flat: (B*S, EMB) f32 embeddings -> (B*S, VOCAB_PAD) log-probs (padded)."""
    BS = B * S
    kernel = _make_fused_kernel(B, S)

    def lspec(trailing):            # per-layer stacked weight: leading axis = layer
        nd = len(trailing)
        return pl.BlockSpec((1,) + tuple(trailing), lambda l: (l,) + (0,) * nd)

    def cspec(shape):               # constant (layer-independent) input
        nd = len(shape)
        return pl.BlockSpec(tuple(shape), lambda l: (0,) * nd)

    in_specs = [
        cspec((BS, EMB)),                          # x (embedded tokens)
        cspec((BS, BS)),                           # block-diagonal causal mask
        lspec((EMB, 3 * EMB)),                     # qkv projection weight (lane-dense)
        lspec((1, 3 * EMB)),                       # qkv projection bias
        lspec((EMB, EMB)),                         # out projection weight
        lspec((1, EMB)),                           # out projection bias
        lspec((1, EMB)), lspec((1, EMB)),          # norm1 w, b
        lspec((1, EMB)), lspec((1, EMB)),          # norm2 w, b
        lspec((EMB, FFN)), lspec((1, FFN)),        # linear1 W, b
        lspec((FFN, EMB)), lspec((1, EMB)),        # linear2 W, b
        cspec((EMB, VOCAB_PAD)),                   # hid_to_logits W (padded)
        cspec((1, VOCAB_PAD)),                     # hid_to_logits b (padded, -1e30)
    ]

    return pl.pallas_call(
        kernel,
        out_shape=jax.ShapeDtypeStruct((BS, VOCAB_PAD), jnp.float32),
        grid=(NUM_LAYERS,),
        in_specs=in_specs,
        out_specs=pl.BlockSpec((BS, VOCAB_PAD), lambda l: (0, 0)),
        scratch_shapes=[pltpu.VMEM((BS, EMB), jnp.float32),    # resident activation
                        pltpu.VMEM((BS, EMB), jnp.float32)],   # head-merge staging
        compiler_params=pltpu.CompilerParams(
            dimension_semantics=("arbitrary",),                # layers are sequential
            vmem_limit_bytes=16 * 1024 * 1024,
        ),
    )(x_flat, mask, *layer_stack, wlg, blg)


# ---------------------------------------------------------------------------
# Parameters (deterministic, random — structurally matching the PyTorch module)
# and full forward pass.
# ---------------------------------------------------------------------------
def init_params(key):
    keys = jax.random.split(key, 11)

    def rnd(k, shape):
        return 0.02 * jax.random.normal(k, shape, jnp.float32)

    L, E = NUM_LAYERS, EMB
    emb_table = rnd(keys[0], (VOCAB, E))

    # Lane-dense per-layer weights stacked on a leading L axis; stored as
    # (in_features, out_features) (transposed vs. PyTorch).  QKV columns are
    # ordered [q | k | v] (head-major within each); the 1/sqrt(head_dim) attention
    # scale is folded into the q columns (weights and bias) at init time.
    qkv_scale = jnp.concatenate([jnp.full((E,), ATTN_SCALE, jnp.float32),
                                 jnp.ones((2 * E,), jnp.float32)])
    wqkv = (rnd(keys[1], (L, E, 3 * E)) * qkv_scale).astype(jnp.bfloat16)
    bqkv = rnd(keys[2], (L, 1, 3 * E)) * qkv_scale
    wo = rnd(keys[3], (L, E, E)).astype(jnp.bfloat16)
    bo = rnd(keys[4], (L, 1, E))
    ln1w = jnp.ones((L, 1, E), jnp.float32)
    ln1b = jnp.zeros((L, 1, E), jnp.float32)
    ln2w = jnp.ones((L, 1, E), jnp.float32)
    ln2b = jnp.zeros((L, 1, E), jnp.float32)
    w1 = rnd(keys[5], (L, E, FFN)).astype(jnp.bfloat16)
    b1 = rnd(keys[6], (L, 1, FFN))
    w2 = rnd(keys[7], (L, FFN, E)).astype(jnp.bfloat16)
    b2 = rnd(keys[8], (L, 1, E))
    layer_stack = (wqkv, bqkv, wo, bo, ln1w, ln1b, ln2w, ln2b, w1, b1, w2, b2)

    # Final projection padded to a lane-aligned width; padded columns get bias -1e30
    # so the in-kernel log_softmax over 1024 columns equals log_softmax over 1000.
    w_out = rnd(keys[9], (E, VOCAB))
    b_out = rnd(keys[10], (VOCAB,))
    wlg = jnp.zeros((E, VOCAB_PAD), jnp.float32).at[:, :VOCAB].set(w_out)
    wlg = wlg.astype(jnp.bfloat16)
    blg = jnp.full((1, VOCAB_PAD), NEG_INF, jnp.float32).at[0, :VOCAB].set(b_out)

    return emb_table, layer_stack, wlg, blg


def build_mask(B, S):
    """Block-diagonal causal additive mask over the flattened (B*S) token axis."""
    BS = B * S
    idx = jnp.arange(BS)
    rows, cols = idx[:, None], idx[None, :]
    allowed = (rows // S == cols // S) & (cols <= rows)
    return jnp.where(allowed, 0.0, NEG_INF).astype(jnp.float32)


def forward(tokens, params):
    emb_table, layer_stack, wlg, blg = params
    B, S = tokens.shape
    # TODO(synk): embedding gather is data-dependent; kept as plain-JAX glue.
    x = jnp.take(emb_table, tokens.reshape(-1), axis=0)           # (B*S, EMB) f32
    mask = build_mask(B, S)                                       # (B*S, B*S)
    logp = fused_transformer(x, mask, B, S, layer_stack, wlg, blg)  # (B*S, VOCAB_PAD)
    return logp[:, :VOCAB].reshape(B, S, VOCAB)


if __name__ == "__main__":
    key = jax.random.PRNGKey(0)
    pkey, xkey = jax.random.split(key)
    params = init_params(pkey)

    B, S = 2, 8
    tokens = jax.random.randint(xkey, (B, S), 0, VOCAB, dtype=jnp.int32)

    logp = jax.jit(forward)(tokens, params)
    jax.block_until_ready(logp)
    assert logp.shape == (B, S, VOCAB)
    assert bool(jnp.isfinite(logp).all())
    print("KERNEL_OK")
</pallas_src>

<mosaic_0001>
module attributes {stable_mosaic.version = 11 : i64} {
  func.func @kernel(%arg0: i32, %arg1: memref<16x64xf32, #tpu.memory_space<vmem>>, %arg2: memref<16x16xf32, #tpu.memory_space<vmem>>, %arg3: memref<1x64x192xbf16, #tpu.memory_space<vmem>>, %arg4: memref<1x1x192xf32, #tpu.memory_space<vmem>>, %arg5: memref<1x64x64xbf16, #tpu.memory_space<vmem>>, %arg6: memref<1x1x64xf32, #tpu.memory_space<vmem>>, %arg7: memref<1x1x64xf32, #tpu.memory_space<vmem>>, %arg8: memref<1x1x64xf32, #tpu.memory_space<vmem>>, %arg9: memref<1x1x64xf32, #tpu.memory_space<vmem>>, %arg10: memref<1x1x64xf32, #tpu.memory_space<vmem>>, %arg11: memref<1x64x2048xbf16, #tpu.memory_space<vmem>>, %arg12: memref<1x1x2048xf32, #tpu.memory_space<vmem>>, %arg13: memref<1x2048x64xbf16, #tpu.memory_space<vmem>>, %arg14: memref<1x1x64xf32, #tpu.memory_space<vmem>>, %arg15: memref<64x1024xbf16, #tpu.memory_space<vmem>>, %arg16: memref<1x1024xf32, #tpu.memory_space<vmem>>, %arg17: memref<16x1024xf32, #tpu.memory_space<vmem>>, %arg18: memref<16x64xf32, #tpu.memory_space<vmem>>, %arg19: memref<16x64xf32, #tpu.memory_space<vmem>>) attributes {dimension_semantics = [#tpu.dimension_semantics<arbitrary>], iteration_bounds = array<i64: 7>, scalar_prefetch = 0 : i64, scratch_operands = 2 : i64, tpu.core_type = #tpu.core_type<tc>, window_params = [{pipeline_mode = #tpu.pipeline_mode<synchronous>, transform_indices = @transform_0, window_bounds = array<i64: 16, 64>}, {pipeline_mode = #tpu.pipeline_mode<synchronous>, transform_indices = @transform_1, window_bounds = array<i64: 16, 16>}, {transform_indices = @transform_2, window_bounds = array<i64: 1, 64, 192>}, {transform_indices = @transform_3, window_bounds = array<i64: 1, 1, 192>}, {transform_indices = @transform_4, window_bounds = array<i64: 1, 64, 64>}, {transform_indices = @transform_5, window_bounds = array<i64: 1, 1, 64>}, {transform_indices = @transform_6, window_bounds = array<i64: 1, 1, 64>}, {transform_indices = @transform_7, window_bounds = array<i64: 1, 1, 64>}, {transform_indices = @transform_8, window_bounds = array<i64: 1, 1, 64>}, {transform_indices = @transform_9, window_bounds = array<i64: 1, 1, 64>}, {transform_indices = @transform_10, window_bounds = array<i64: 1, 64, 2048>}, {transform_indices = @transform_11, window_bounds = array<i64: 1, 1, 2048>}, {transform_indices = @transform_12, window_bounds = array<i64: 1, 2048, 64>}, {transform_indices = @transform_13, window_bounds = array<i64: 1, 1, 64>}, {pipeline_mode = #tpu.pipeline_mode<synchronous>, transform_indices = @transform_14, window_bounds = array<i64: 64, 1024>}, {pipeline_mode = #tpu.pipeline_mode<synchronous>, transform_indices = @transform_15, window_bounds = array<i64: 1, 1024>}, {pipeline_mode = #tpu.pipeline_mode<synchronous>, transform_indices = @transform_16, window_bounds = array<i64: 16, 1024>}]} {
    %c0_i32 = arith.constant 0 : i32
    %0 = arith.cmpi eq, %arg0, %c0_i32 : i32
    %1 = arith.extui %0 : i1 to i32
    %c0_i32_0 = arith.constant 0 : i32
    %2 = arith.cmpi ne, %1, %c0_i32_0 : i32
    scf.if %2 {
      %c0_72 = arith.constant 0 : index
      %c0_73 = arith.constant 0 : index
      %188 = vector.load %arg1[%c0_72, %c0_73] : memref<16x64xf32, #tpu.memory_space<vmem>>, vector<16x64xf32>
      %c0_74 = arith.constant 0 : index
      %c0_75 = arith.constant 0 : index
      %189 = vector.load %arg18[%c0_74, %c0_75] : memref<16x64xf32, #tpu.memory_space<vmem>>, vector<16x64xf32>
      tpu.vector_store %arg18[%c0_74, %c0_75], %188 {strides = array<i32>} : memref<16x64xf32, #tpu.memory_space<vmem>>, vector<16x64xf32>,
    } else {
    }
    %c0 = arith.constant 0 : index
    %c0_1 = arith.constant 0 : index
    %3 = vector.load %arg18[%c0, %c0_1] : memref<16x64xf32, #tpu.memory_space<vmem>>, vector<16x64xf32>
    %4 = arith.truncf %3 : vector<16x64xf32> to vector<16x64xbf16>
    %c0_2 = arith.constant 0 : index
    %c0_3 = arith.constant 0 : index
    %c0_4 = arith.constant 0 : index
    %5 = vector.load %arg3[%c0_2, %c0_3, %c0_4] : memref<1x64x192xbf16, #tpu.memory_space<vmem>>, vector<1x64x192xbf16>
    %6 = vector.shape_cast %5 : vector<1x64x192xbf16> to vector<64x192xbf16>
    %cst = arith.constant dense<0.000000e+00> : vector<16x192xf32>
    %7 = tpu.matmul %4, %6, %cst {dimension_numbers = #tpu.dot_dimension_numbers<[1], [0], [0], [1], [0, 0, 1, 1], [], []>} : vector<16x64xbf16>, vector<64x192xbf16>, vector<16x192xf32> -> vector<16x192xf32>
    %c0_5 = arith.constant 0 : index
    %c0_6 = arith.constant 0 : index
    %c0_7 = arith.constant 0 : index
    %8 = vector.load %arg4[%c0_5, %c0_6, %c0_7] : memref<1x1x192xf32, #tpu.memory_space<vmem>>, vector<1x1x192xf32>
    %9 = vector.shape_cast %8 : vector<1x1x192xf32> to vector<1x192xf32>
    %10 = vector.broadcast %9 : vector<1x192xf32> to vector<16x192xf32>
    %11 = arith.addf %7, %10 : vector<16x192xf32>
    %12 = vector.extract_strided_slice %11 {offsets = [0, 0], sizes = [16, 8], strides = [1, 1]} : vector<16x192xf32> to vector<16x8xf32>
    %13 = vector.extract_strided_slice %11 {offsets = [0, 8], sizes = [16, 8], strides = [1, 1]} : vector<16x192xf32> to vector<16x8xf32>
    %14 = vector.extract_strided_slice %11 {offsets = [0, 16], sizes = [16, 8], strides = [1, 1]} : vector<16x192xf32> to vector<16x8xf32>
    %15 = vector.extract_strided_slice %11 {offsets = [0, 24], sizes = [16, 8], strides = [1, 1]} : vector<16x192xf32> to vector<16x8xf32>
    %16 = vector.extract_strided_slice %11 {offsets = [0, 32], sizes = [16, 8], strides = [1, 1]} : vector<16x192xf32> to vector<16x8xf32>
    %17 = vector.extract_strided_slice %11 {offsets = [0, 40], sizes = [16, 8], strides = [1, 1]} : vector<16x192xf32> to vector<16x8xf32>
    %18 = vector.extract_strided_slice %11 {offsets = [0, 48], sizes = [16, 8], strides = [1, 1]} : vector<16x192xf32> to vector<16x8xf32>
    %19 = vector.extract_strided_slice %11 {offsets = [0, 56], sizes = [16, 8], strides = [1, 1]} : vector<16x192xf32> to vector<16x8xf32>
    %20 = vector.shape_cast %12 : vector<16x8xf32> to vector<1x16x8xf32>
    %21 = vector.shape_cast %13 : vector<16x8xf32> to vector<1x16x8xf32>
    %22 = vector.shape_cast %14 : vector<16x8xf32> to vector<1x16x8xf32>
    %23 = vector.shape_cast %15 : vector<16x8xf32> to vector<1x16x8xf32>
    %24 = vector.shape_cast %16 : vector<16x8xf32> to vector<1x16x8xf32>
    %25 = vector.shape_cast %17 : vector<16x8xf32> to vector<1x16x8xf32>
    %26 = vector.shape_cast %18 : vector<16x8xf32> to vector<1x16x8xf32>
    %27 = vector.shape_cast %19 : vector<16x8xf32> to vector<1x16x8xf32>
    %28 = tpu.concatenate %20, %21, %22, %23, %24, %25, %26, %27 in 0 : vector<1x16x8xf32>, vector<1x16x8xf32>, vector<1x16x8xf32>, vector<1x16x8xf32>, vector<1x16x8xf32>, vector<1x16x8xf32>, vector<1x16x8xf32>, vector<1x16x8xf32> -> vector<8x16x8xf32>
    %29 = vector.extract_strided_slice %11 {offsets = [0, 64], sizes = [16, 8], strides = [1, 1]} : vector<16x192xf32> to vector<16x8xf32>
    %30 = vector.extract_strided_slice %11 {offsets = [0, 72], sizes = [16, 8], strides = [1, 1]} : vector<16x192xf32> to vector<16x8xf32>
    %31 = vector.extract_strided_slice %11 {offsets = [0, 80], sizes = [16, 8], strides = [1, 1]} : vector<16x192xf32> to vector<16x8xf32>
    %32 = vector.extract_strided_slice %11 {offsets = [0, 88], sizes = [16, 8], strides = [1, 1]} : vector<16x192xf32> to vector<16x8xf32>
    %33 = vector.extract_strided_slice %11 {offsets = [0, 96], sizes = [16, 8], strides = [1, 1]} : vector<16x192xf32> to vector<16x8xf32>
    %34 = vector.extract_strided_slice %11 {offsets = [0, 104], sizes = [16, 8], strides = [1, 1]} : vector<16x192xf32> to vector<16x8xf32>
    %35 = vector.extract_strided_slice %11 {offsets = [0, 112], sizes = [16, 8], strides = [1, 1]} : vector<16x192xf32> to vector<16x8xf32>
    %36 = vector.extract_strided_slice %11 {offsets = [0, 120], sizes = [16, 8], strides = [1, 1]} : vector<16x192xf32> to vector<16x8xf32>
    %37 = vector.shape_cast %29 : vector<16x8xf32> to vector<1x16x8xf32>
    %38 = vector.shape_cast %30 : vector<16x8xf32> to vector<1x16x8xf32>
    %39 = vector.shape_cast %31 : vector<16x8xf32> to vector<1x16x8xf32>
    %40 = vector.shape_cast %32 : vector<16x8xf32> to vector<1x16x8xf32>
    %41 = vector.shape_cast %33 : vector<16x8xf32> to vector<1x16x8xf32>
    %42 = vector.shape_cast %34 : vector<16x8xf32> to vector<1x16x8xf32>
    %43 = vector.shape_cast %35 : vector<16x8xf32> to vector<1x16x8xf32>
    %44 = vector.shape_cast %36 : vector<16x8xf32> to vector<1x16x8xf32>
    %45 = tpu.concatenate %37, %38, %39, %40, %41, %42, %43, %44 in 0 : vector<1x16x8xf32>, vector<1x16x8xf32>, vector<1x16x8xf32>, vector<1x16x8xf32>, vector<1x16x8xf32>, vector<1x16x8xf32>, vector<1x16x8xf32>, vector<1x16x8xf32> -> vector<8x16x8xf32>
    %46 = vector.extract_strided_slice %11 {offsets = [0, 128], sizes = [16, 8], strides = [1, 1]} : vector<16x192xf32> to vector<16x8xf32>
    %47 = vector.extract_strided_slice %11 {offsets = [0, 136], sizes = [16, 8], strides = [1, 1]} : vector<16x192xf32> to vector<16x8xf32>
    %48 = vector.extract_strided_slice %11 {offsets = [0, 144], sizes = [16, 8], strides = [1, 1]} : vector<16x192xf32> to vector<16x8xf32>
    %49 = vector.extract_strided_slice %11 {offsets = [0, 152], sizes = [16, 8], strides = [1, 1]} : vector<16x192xf32> to vector<16x8xf32>
    %50 = vector.extract_strided_slice %11 {offsets = [0, 160], sizes = [16, 8], strides = [1, 1]} : vector<16x192xf32> to vector<16x8xf32>
    %51 = vector.extract_strided_slice %11 {offsets = [0, 168], sizes = [16, 8], strides = [1, 1]} : vector<16x192xf32> to vector<16x8xf32>
    %52 = vector.extract_strided_slice %11 {offsets = [0, 176], sizes = [16, 8], strides = [1, 1]} : vector<16x192xf32> to vector<16x8xf32>
    %53 = vector.extract_strided_slice %11 {offsets = [0, 184], sizes = [16, 8], strides = [1, 1]} : vector<16x192xf32> to vector<16x8xf32>
    %54 = vector.shape_cast %46 : vector<16x8xf32> to vector<1x16x8xf32>
    %55 = vector.shape_cast %47 : vector<16x8xf32> to vector<1x16x8xf32>
    %56 = vector.shape_cast %48 : vector<16x8xf32> to vector<1x16x8xf32>
    %57 = vector.shape_cast %49 : vector<16x8xf32> to vector<1x16x8xf32>
    %58 = vector.shape_cast %50 : vector<16x8xf32> to vector<1x16x8xf32>
    %59 = vector.shape_cast %51 : vector<16x8xf32> to vector<1x16x8xf32>
    %60 = vector.shape_cast %52 : vector<16x8xf32> to vector<1x16x8xf32>
    %61 = vector.shape_cast %53 : vector<16x8xf32> to vector<1x16x8xf32>
    %62 = tpu.concatenate %54, %55, %56, %57, %58, %59, %60, %61 in 0 : vector<1x16x8xf32>, vector<1x16x8xf32>, vector<1x16x8xf32>, vector<1x16x8xf32>, vector<1x16x8xf32>, vector<1x16x8xf32>, vector<1x16x8xf32>, vector<1x16x8xf32> -> vector<8x16x8xf32>
    "tpu.trace_start"() <{level = 10 : i32, message = "hqd,hkd->hqk"}> : () -> ()
    %cst_8 = arith.constant dense<0.000000e+00> : vector<8x16x16xf32>
    %63 = tpu.matmul %28, %45, %cst_8 {dimension_numbers = #tpu.dot_dimension_numbers<[2], [2], [1], [1], [0, 0, 0, 1, 1, 1], [0], [0]>} : vector<8x16x8xf32>, vector<8x16x8xf32>, vector<8x16x16xf32> -> vector<8x16x16xf32>
    "tpu.trace_stop"() : () -> ()
    %c0_9 = arith.constant 0 : index
    %c0_10 = arith.constant 0 : index
    %64 = vector.load %arg2[%c0_9, %c0_10] : memref<16x16xf32, #tpu.memory_space<vmem>>, vector<16x16xf32>
    %65 = vector.shape_cast %64 : vector<16x16xf32> to vector<1x16x16xf32>
    %66 = vector.broadcast %65 : vector<1x16x16xf32> to vector<8x16x16xf32>
    %67 = arith.addf %63, %66 : vector<8x16x16xf32>
    %cst_11 = arith.constant dense<0xFF800000> : vector<8x16xf32>
    %68 = vector.multi_reduction <maximumf>, %67, %cst_11 [2] : vector<8x16x16xf32> to vector<8x16xf32>
    %69 = vector.shape_cast %68 : vector<8x16xf32> to vector<8x16x1xf32>
    %70 = vector.broadcast %69 : vector<8x16x1xf32> to vector<8x16x16xf32>
    %71 = arith.subf %67, %70 : vector<8x16x16xf32>
    %72 = math.exp %71 : vector<8x16x16xf32>
    %cst_12 = arith.constant dense<0.000000e+00> : vector<8x16xf32>
    %73 = vector.multi_reduction <add>, %72, %cst_12 [2] : vector<8x16x16xf32> to vector<8x16xf32>
    %74 = vector.shape_cast %73 : vector<8x16xf32> to vector<8x16x1xf32>
    %75 = tpu.reciprocal %74 {approx = true} : vector<8x16x1xf32> -> vector<8x16x1xf32>
    %76 = vector.broadcast %75 : vector<8x16x1xf32> to vector<8x16x16xf32>
    %77 = arith.mulf %72, %76 : vector<8x16x16xf32>
    "tpu.trace_start"() <{level = 10 : i32, message = "hqk,hkd->hqd"}> : () -> ()
    %cst_13 = arith.constant dense<0.000000e+00> : vector<8x16x8xf32>
    %78 = tpu.matmul %77, %62, %cst_13 {dimension_numbers = #tpu.dot_dimension_numbers<[2], [1], [1], [2], [0, 0, 0, 1, 1, 2], [0], [0]>} : vector<8x16x16xf32>, vector<8x16x8xf32>, vector<8x16x8xf32> -> vector<8x16x8xf32>
    "tpu.trace_stop"() : () -> ()
    %79 = vector.extract_strided_slice %78 {offsets = [0, 0, 0], sizes = [1, 16, 8], strides = [1, 1, 1]} : vector<8x16x8xf32> to vector<1x16x8xf32>
    %80 = vector.shape_cast %79 : vector<1x16x8xf32> to vector<16x8xf32>
    %c0_14 = arith.constant 0 : index
    %c0_15 = arith.constant 0 : index
    %81 = vector.load %arg19[%c0_14, %c0_15] : memref<16x64xf32, #tpu.memory_space<vmem>>, vector<16x8xf32>
    tpu.vector_store %arg19[%c0_14, %c0_15], %80 {strides = array<i32>} : memref<16x64xf32, #tpu.memory_space<vmem>>, vector<16x8xf32>,
    %82 = vector.extract_strided_slice %78 {offsets = [1, 0, 0], sizes = [1, 16, 8], strides = [1, 1, 1]} : vector<8x16x8xf32> to vector<1x16x8xf32>
    %83 = vector.shape_cast %82 : vector<1x16x8xf32> to vector<16x8xf32>
    %c0_16 = arith.constant 0 : index
    %c8 = arith.constant 8 : index
    %84 = vector.load %arg19[%c0_16, %c8] : memref<16x64xf32, #tpu.memory_space<vmem>>, vector<16x8xf32>
    tpu.vector_store %arg19[%c0_16, %c8], %83 {strides = array<i32>} : memref<16x64xf32, #tpu.memory_space<vmem>>, vector<16x8xf32>,
    %85 = vector.extract_strided_slice %78 {offsets = [2, 0, 0], sizes = [1, 16, 8], strides = [1, 1, 1]} : vector<8x16x8xf32> to vector<1x16x8xf32>
    %86 = vector.shape_cast %85 : vector<1x16x8xf32> to vector<16x8xf32>
    %c0_17 = arith.constant 0 : index
    %c16 = arith.constant 16 : index
    %87 = vector.load %arg19[%c0_17, %c16] : memref<16x64xf32, #tpu.memory_space<vmem>>, vector<16x8xf32>
    tpu.vector_store %arg19[%c0_17, %c16], %86 {strides = array<i32>} : memref<16x64xf32, #tpu.memory_space<vmem>>, vector<16x8xf32>,
    %88 = vector.extract_strided_slice %78 {offsets = [3, 0, 0], sizes = [1, 16, 8], strides = [1, 1, 1]} : vector<8x16x8xf32> to vector<1x16x8xf32>
    %89 = vector.shape_cast %88 : vector<1x16x8xf32> to vector<16x8xf32>
    %c0_18 = arith.constant 0 : index
    %c24 = arith.constant 24 : index
    %90 = vector.load %arg19[%c0_18, %c24] : memref<16x64xf32, #tpu.memory_space<vmem>>, vector<16x8xf32>
    tpu.vector_store %arg19[%c0_18, %c24], %89 {strides = array<i32>} : memref<16x64xf32, #tpu.memory_space<vmem>>, vector<16x8xf32>,
    %91 = vector.extract_strided_slice %78 {offsets = [4, 0, 0], sizes = [1, 16, 8], strides = [1, 1, 1]} : vector<8x16x8xf32> to vector<1x16x8xf32>
    %92 = vector.shape_cast %91 : vector<1x16x8xf32> to vector<16x8xf32>
    %c0_19 = arith.constant 0 : index
    %c32 = arith.constant 32 : index
    %93 = vector.load %arg19[%c0_19, %c32] : memref<16x64xf32, #tpu.memory_space<vmem>>, vector<16x8xf32>
    tpu.vector_store %arg19[%c0_19, %c32], %92 {strides = array<i32>} : memref<16x64xf32, #tpu.memory_space<vmem>>, vector<16x8xf32>,
    %94 = vector.extract_strided_slice %78 {offsets = [5, 0, 0], sizes = [1, 16, 8], strides = [1, 1, 1]} : vector<8x16x8xf32> to vector<1x16x8xf32>
    %95 = vector.shape_cast %94 : vector<1x16x8xf32> to vector<16x8xf32>
    %c0_20 = arith.constant 0 : index
    %c40 = arith.constant 40 : index
    %96 = vector.load %arg19[%c0_20, %c40] : memref<16x64xf32, #tpu.memory_space<vmem>>, vector<16x8xf32>
    tpu.vector_store %arg19[%c0_20, %c40], %95 {strides = array<i32>} : memref<16x64xf32, #tpu.memory_space<vmem>>, vector<16x8xf32>,
    %97 = vector.extract_strided_slice %78 {offsets = [6, 0, 0], sizes = [1, 16, 8], strides = [1, 1, 1]} : vector<8x16x8xf32> to vector<1x16x8xf32>
    %98 = vector.shape_cast %97 : vector<1x16x8xf32> to vector<16x8xf32>
    %c0_21 = arith.constant 0 : index
    %c48 = arith.constant 48 : index
    %99 = vector.load %arg19[%c0_21, %c48] : memref<16x64xf32, #tpu.memory_space<vmem>>, vector<16x8xf32>
    tpu.vector_store %arg19[%c0_21, %c48], %98 {strides = array<i32>} : memref<16x64xf32, #tpu.memory_space<vmem>>, vector<16x8xf32>,
    %100 = vector.extract_strided_slice %78 {offsets = [7, 0, 0], sizes = [1, 16, 8], strides = [1, 1, 1]} : vector<8x16x8xf32> to vector<1x16x8xf32>
    %101 = vector.shape_cast %100 : vector<1x16x8xf32> to vector<16x8xf32>
    %c0_22 = arith.constant 0 : index
    %c56 = arith.constant 56 : index
    %102 = vector.load %arg19[%c0_22, %c56] : memref<16x64xf32, #tpu.memory_space<vmem>>, vector<16x8xf32>
    tpu.vector_store %arg19[%c0_22, %c56], %101 {strides = array<i32>} : memref<16x64xf32, #tpu.memory_space<vmem>>, vector<16x8xf32>,
    %c0_23 = arith.constant 0 : index
    %c0_24 = arith.constant 0 : index
    %103 = vector.load %arg19[%c0_23, %c0_24] : memref<16x64xf32, #tpu.memory_space<vmem>>, vector<16x64xf32>
    %104 = arith.truncf %103 : vector<16x64xf32> to vector<16x64xbf16>
    %c0_25 = arith.constant 0 : index
    %c0_26 = arith.constant 0 : index
    %c0_27 = arith.constant 0 : index
    %105 = vector.load %arg5[%c0_25, %c0_26, %c0_27] : memref<1x64x64xbf16, #tpu.memory_space<vmem>>, vector<1x64x64xbf16>
    %106 = vector.shape_cast %105 : vector<1x64x64xbf16> to vector<64x64xbf16>
    %cst_28 = arith.constant dense<0.000000e+00> : vector<16x64xf32>
    %107 = tpu.matmul %104, %106, %cst_28 {dimension_numbers = #tpu.dot_dimension_numbers<[1], [0], [0], [1], [0, 0, 1, 1], [], []>} : vector<16x64xbf16>, vector<64x64xbf16>, vector<16x64xf32> -> vector<16x64xf32>
    %c0_29 = arith.constant 0 : index
    %c0_30 = arith.constant 0 : index
    %c0_31 = arith.constant 0 : index
    %108 = vector.load %arg6[%c0_29, %c0_30, %c0_31] : memref<1x1x64xf32, #tpu.memory_space<vmem>>, vector<1x1x64xf32>
    %109 = vector.shape_cast %108 : vector<1x1x64xf32> to vector<1x64xf32>
    %110 = vector.broadcast %109 : vector<1x64xf32> to vector<16x64xf32>
    %111 = arith.addf %107, %110 : vector<16x64xf32>
    %112 = arith.addf %3, %111 : vector<16x64xf32>
    %cst_32 = arith.constant dense<0.000000e+00> : vector<16xf32>
    %113 = vector.multi_reduction <add>, %112, %cst_32 [1] : vector<16x64xf32> to vector<16xf32>
    %114 = vector.shape_cast %113 : vector<16xf32> to vector<16x1xf32>
    %cst_33 = arith.constant 6.400000e+01 : f32
    %115 = vector.broadcast %cst_33 : f32 to vector<16x1xf32>
    %116 = arith.divf %114, %115 : vector<16x1xf32>
    %117 = vector.broadcast %116 : vector<16x1xf32> to vector<16x64xf32>
    %118 = arith.subf %112, %117 : vector<16x64xf32>
    %119 = arith.mulf %118, %118 : vector<16x64xf32>
    %cst_34 = arith.constant dense<0.000000e+00> : vector<16xf32>
    %120 = vector.multi_reduction <add>, %119, %cst_34 [1] : vector<16x64xf32> to vector<16xf32>
    %121 = vector.shape_cast %120 : vector<16xf32> to vector<16x1xf32>
    %cst_35 = arith.constant 6.400000e+01 : f32
    %122 = vector.broadcast %cst_35 : f32 to vector<16x1xf32>
    %123 = arith.divf %121, %122 : vector<16x1xf32>
    %124 = vector.broadcast %116 : vector<16x1xf32> to vector<16x64xf32>
    %125 = arith.subf %112, %124 : vector<16x64xf32>
    %cst_36 = arith.constant 9.99999974E-6 : f32
    %126 = vector.broadcast %cst_36 : f32 to vector<16x1xf32>
    %127 = arith.addf %123, %126 : vector<16x1xf32>
    %128 = math.rsqrt %127 : vector<16x1xf32>
    %129 = vector.broadcast %128 : vector<16x1xf32> to vector<16x64xf32>
    %130 = arith.mulf %125, %129 : vector<16x64xf32>
    %c0_37 = arith.constant 0 : index
    %c0_38 = arith.constant 0 : index
    %c0_39 = arith.constant 0 : index
    %131 = vector.load %arg7[%c0_37, %c0_38, %c0_39] : memref<1x1x64xf32, #tpu.memory_space<vmem>>, vector<1x1x64xf32>
    %132 = vector.shape_cast %131 : vector<1x1x64xf32> to vector<1x64xf32>
    %133 = vector.broadcast %132 : vector<1x64xf32> to vector<16x64xf32>
    %134 = arith.mulf %130, %133 : vector<16x64xf32>
    %c0_40 = arith.constant 0 : index
    %c0_41 = arith.constant 0 : index
    %c0_42 = arith.constant 0 : index
    %135 = vector.load %arg8[%c0_40, %c0_41, %c0_42] : memref<1x1x64xf32, #tpu.memory_space<vmem>>, vector<1x1x64xf32>
    %136 = vector.shape_cast %135 : vector<1x1x64xf32> to vector<1x64xf32>
    %137 = vector.broadcast %136 : vector<1x64xf32> to vector<16x64xf32>
    %138 = arith.addf %134, %137 : vector<16x64xf32>
    %139 = arith.truncf %138 : vector<16x64xf32> to vector<16x64xbf16>
    %c0_43 = arith.constant 0 : index
    %c0_44 = arith.constant 0 : index
    %c0_45 = arith.constant 0 : index
    %140 = vector.load %arg11[%c0_43, %c0_44, %c0_45] : memref<1x64x2048xbf16, #tpu.memory_space<vmem>>, vector<1x64x2048xbf16>
    %141 = vector.shape_cast %140 : vector<1x64x2048xbf16> to vector<64x2048xbf16>
    %cst_46 = arith.constant dense<0.000000e+00> : vector<16x2048xf32>
    %142 = tpu.matmul %139, %141, %cst_46 {dimension_numbers = #tpu.dot_dimension_numbers<[1], [0], [0], [1], [0, 0, 1, 1], [], []>} : vector<16x64xbf16>, vector<64x2048xbf16>, vector<16x2048xf32> -> vector<16x2048xf32>
    %c0_47 = arith.constant 0 : index
    %c0_48 = arith.constant 0 : index
    %c0_49 = arith.constant 0 : index
    %143 = vector.load %arg12[%c0_47, %c0_48, %c0_49] : memref<1x1x2048xf32, #tpu.memory_space<vmem>>, vector<1x1x2048xf32>
    %144 = vector.shape_cast %143 : vector<1x1x2048xf32> to vector<1x2048xf32>
    %145 = vector.broadcast %144 : vector<1x2048xf32> to vector<16x2048xf32>
    %146 = arith.addf %142, %145 : vector<16x2048xf32>
    %cst_50 = arith.constant 0.000000e+00 : f32
    %147 = vector.broadcast %cst_50 : f32 to vector<16x2048xf32>
    %148 = arith.maximumf %146, %147 : vector<16x2048xf32>
    %149 = arith.truncf %148 : vector<16x2048xf32> to vector<16x2048xbf16>
    %c0_51 = arith.constant 0 : index
    %c0_52 = arith.constant 0 : index
    %c0_53 = arith.constant 0 : index
    %150 = vector.load %arg13[%c0_51, %c0_52, %c0_53] : memref<1x2048x64xbf16, #tpu.memory_space<vmem>>, vector<1x2048x64xbf16>
    %151 = vector.shape_cast %150 : vector<1x2048x64xbf16> to vector<2048x64xbf16>
    %cst_54 = arith.constant dense<0.000000e+00> : vector<16x64xf32>
    %152 = tpu.matmul %149, %151, %cst_54 {dimension_numbers = #tpu.dot_dimension_numbers<[1], [0], [0], [1], [0, 0, 1, 1], [], []>} : vector<16x2048xbf16>, vector<2048x64xbf16>, vector<16x64xf32> -> vector<16x64xf32>
    %c0_55 = arith.constant 0 : index
    %c0_56 = arith.constant 0 : index
    %c0_57 = arith.constant 0 : index
    %153 = vector.load %arg14[%c0_55, %c0_56, %c0_57] : memref<1x1x64xf32, #tpu.memory_space<vmem>>, vector<1x1x64xf32>
    %154 = vector.shape_cast %153 : vector<1x1x64xf32> to vector<1x64xf32>
    %155 = vector.broadcast %154 : vector<1x64xf32> to vector<16x64xf32>
    %156 = arith.addf %152, %155 : vector<16x64xf32>
    %157 = arith.addf %138, %156 : vector<16x64xf32>
    %cst_58 = arith.constant dense<0.000000e+00> : vector<16xf32>
    %158 = vector.multi_reduction <add>, %157, %cst_58 [1] : vector<16x64xf32> to vector<16xf32>
    %159 = vector.shape_cast %158 : vector<16xf32> to vector<16x1xf32>
    %cst_59 = arith.constant 6.400000e+01 : f32
    %160 = vector.broadcast %cst_59 : f32 to vector<16x1xf32>
    %161 = arith.divf %159, %160 : vector<16x1xf32>
    %162 = vector.broadcast %161 : vector<16x1xf32> to vector<16x64xf32>
    %163 = arith.subf %157, %162 : vector<16x64xf32>
    %164 = arith.mulf %163, %163 : vector<16x64xf32>
    %cst_60 = arith.constant dense<0.000000e+00> : vector<16xf32>
    %165 = vector.multi_reduction <add>, %164, %cst_60 [1] : vector<16x64xf32> to vector<16xf32>
    %166 = vector.shape_cast %165 : vector<16xf32> to vector<16x1xf32>
    %cst_61 = arith.constant 6.400000e+01 : f32
    %167 = vector.broadcast %cst_61 : f32 to vector<16x1xf32>
    %168 = arith.divf %166, %167 : vector<16x1xf32>
    %169 = vector.broadcast %161 : vector<16x1xf32> to vector<16x64xf32>
    %170 = arith.subf %157, %169 : vector<16x64xf32>
    %cst_62 = arith.constant 9.99999974E-6 : f32
    %171 = vector.broadcast %cst_62 : f32 to vector<16x1xf32>
    %172 = arith.addf %168, %171 : vector<16x1xf32>
    %173 = math.rsqrt %172 : vector<16x1xf32>
    %174 = vector.broadcast %173 : vector<16x1xf32> to vector<16x64xf32>
    %175 = arith.mulf %170, %174 : vector<16x64xf32>
    %c0_63 = arith.constant 0 : index
    %c0_64 = arith.constant 0 : index
    %c0_65 = arith.constant 0 : index
    %176 = vector.load %arg9[%c0_63, %c0_64, %c0_65] : memref<1x1x64xf32, #tpu.memory_space<vmem>>, vector<1x1x64xf32>
    %177 = vector.shape_cast %176 : vector<1x1x64xf32> to vector<1x64xf32>
    %178 = vector.broadcast %177 : vector<1x64xf32> to vector<16x64xf32>
    %179 = arith.mulf %175, %178 : vector<16x64xf32>
    %c0_66 = arith.constant 0 : index
    %c0_67 = arith.constant 0 : index
    %c0_68 = arith.constant 0 : index
    %180 = vector.load %arg10[%c0_66, %c0_67, %c0_68] : memref<1x1x64xf32, #tpu.memory_space<vmem>>, vector<1x1x64xf32>
    %181 = vector.shape_cast %180 : vector<1x1x64xf32> to vector<1x64xf32>
    %182 = vector.broadcast %181 : vector<1x64xf32> to vector<16x64xf32>
    %183 = arith.addf %179, %182 : vector<16x64xf32>
    %c0_69 = arith.constant 0 : index
    %c0_70 = arith.constant 0 : index
    %184 = vector.load %arg18[%c0_69, %c0_70] : memref<16x64xf32, #tpu.memory_space<vmem>>, vector<16x64xf32>
    tpu.vector_store %arg18[%c0_69, %c0_70], %183 {strides = array<i32>} : memref<16x64xf32, #tpu.memory_space<vmem>>, vector<16x64xf32>,
    %c6_i32 = arith.constant 6 : i32
    %185 = arith.cmpi eq, %arg0, %c6_i32 : i32
    %186 = arith.extui %185 : i1 to i32
    %c0_i32_71 = arith.constant 0 : i32
    %187 = arith.cmpi ne, %186, %c0_i32_71 : i32
    scf.if %187 {
      %188 = arith.truncf %183 : vector<16x64xf32> to vector<16x64xbf16>
      %c0_72 = arith.constant 0 : index
      %c0_73 = arith.constant 0 : index
      %189 = vector.load %arg15[%c0_72, %c0_73] : memref<64x1024xbf16, #tpu.memory_space<vmem>>, vector<64x1024xbf16>
      %cst_74 = arith.constant dense<0.000000e+00> : vector<16x1024xf32>
      %190 = tpu.matmul %188, %189, %cst_74 {dimension_numbers = #tpu.dot_dimension_numbers<[1], [0], [0], [1], [0, 0, 1, 1], [], []>} : vector<16x64xbf16>, vector<64x1024xbf16>, vector<16x1024xf32> -> vector<16x1024xf32>
      %c0_75 = arith.constant 0 : index
      %c0_76 = arith.constant 0 : index
      %191 = vector.load %arg16[%c0_75, %c0_76] : memref<1x1024xf32, #tpu.memory_space<vmem>>, vector<1x1024xf32>
      %192 = vector.broadcast %191 : vector<1x1024xf32> to vector<16x1024xf32>
      %193 = arith.addf %190, %192 : vector<16x1024xf32>
      %cst_77 = arith.constant dense<0xFF800000> : vector<16xf32>
      %194 = vector.multi_reduction <maximumf>, %193, %cst_77 [1] : vector<16x1024xf32> to vector<16xf32>
      %195 = vector.shape_cast %194 : vector<16xf32> to vector<16x1xf32>
      %196 = vector.broadcast %195 : vector<16x1xf32> to vector<16x1024xf32>
      %197 = arith.subf %193, %196 : vector<16x1024xf32>
      %198 = math.exp %197 : vector<16x1024xf32>
      %cst_78 = arith.constant dense<0.000000e+00> : vector<16xf32>
      %199 = vector.multi_reduction <add>, %198, %cst_78 [1] : vector<16x1024xf32> to vector<16xf32>
      %200 = vector.shape_cast %199 : vector<16xf32> to vector<16x1xf32>
      %201 = math.log %200 : vector<16x1xf32>
      %202 = arith.addf %201, %195 : vector<16x1xf32>
      %203 = vector.broadcast %202 : vector<16x1xf32> to vector<16x1024xf32>
      %204 = arith.subf %193, %203 : vector<16x1024xf32>
      %c0_79 = arith.constant 0 : index
      %c0_80 = arith.constant 0 : index
      %205 = vector.load %arg17[%c0_79, %c0_80] : memref<16x1024xf32, #tpu.memory_space<vmem>>, vector<16x1024xf32>
      tpu.vector_store %arg17[%c0_79, %c0_80], %204 {strides = array<i32>} : memref<16x1024xf32, #tpu.memory_space<vmem>>, vector<16x1024xf32>,
    } else {
    }
    return
  }
  func.func @transform_0(%arg0: i32) -> (i32, i32) {
    %c0_i32 = arith.constant 0 : i32
    %c0_i32_0 = arith.constant 0 : i32
    %c0_i32_1 = arith.constant 0 : i32
    return %c0_i32, %c0_i32_0 : i32, i32
  }
  func.func @transform_1(%arg0: i32) -> (i32, i32) {
    %c0_i32 = arith.constant 0 : i32
    %c0_i32_0 = arith.constant 0 : i32
    %c0_i32_1 = arith.constant 0 : i32
    return %c0_i32, %c0_i32_0 : i32, i32
  }
  func.func @transform_2(%arg0: i32) -> (i32, i32, i32) {
    %c0_i32 = arith.constant 0 : i32
    %c0_i32_0 = arith.constant 0 : i32
    %c0_i32_1 = arith.constant 0 : i32
    return %arg0, %c0_i32, %c0_i32_0 : i32, i32, i32
  }
  func.func @transform_3(%arg0: i32) -> (i32, i32, i32) {
    %c0_i32 = arith.constant 0 : i32
    %c0_i32_0 = arith.constant 0 : i32
    %c0_i32_1 = arith.constant 0 : i32
    return %arg0, %c0_i32, %c0_i32_0 : i32, i32, i32
  }
  func.func @transform_4(%arg0: i32) -> (i32, i32, i32) {
    %c0_i32 = arith.constant 0 : i32
    %c0_i32_0 = arith.constant 0 : i32
    %c0_i32_1 = arith.constant 0 : i32
    return %arg0, %c0_i32, %c0_i32_0 : i32, i32, i32
  }
  func.func @transform_5(%arg0: i32) -> (i32, i32, i32) {
    %c0_i32 = arith.constant 0 : i32
    %c0_i32_0 = arith.constant 0 : i32
    %c0_i32_1 = arith.constant 0 : i32
    return %arg0, %c0_i32, %c0_i32_0 : i32, i32, i32
  }
  func.func @transform_6(%arg0: i32) -> (i32, i32, i32) {
    %c0_i32 = arith.constant 0 : i32
    %c0_i32_0 = arith.constant 0 : i32
    %c0_i32_1 = arith.constant 0 : i32
    return %arg0, %c0_i32, %c0_i32_0 : i32, i32, i32
  }
  func.func @transform_7(%arg0: i32) -> (i32, i32, i32) {
    %c0_i32 = arith.constant 0 : i32
    %c0_i32_0 = arith.constant 0 : i32
    %c0_i32_1 = arith.constant 0 : i32
    return %arg0, %c0_i32, %c0_i32_0 : i32, i32, i32
  }
  func.func @transform_8(%arg0: i32) -> (i32, i32, i32) {
    %c0_i32 = arith.constant 0 : i32
    %c0_i32_0 = arith.constant 0 : i32
    %c0_i32_1 = arith.constant 0 : i32
    return %arg0, %c0_i32, %c0_i32_0 : i32, i32, i32
  }
  func.func @transform_9(%arg0: i32) -> (i32, i32, i32) {
    %c0_i32 = arith.constant 0 : i32
    %c0_i32_0 = arith.constant 0 : i32
    %c0_i32_1 = arith.constant 0 : i32
    return %arg0, %c0_i32, %c0_i32_0 : i32, i32, i32
  }
  func.func @transform_10(%arg0: i32) -> (i32, i32, i32) {
    %c0_i32 = arith.constant 0 : i32
    %c0_i32_0 = arith.constant 0 : i32
    %c0_i32_1 = arith.constant 0 : i32
    return %arg0, %c0_i32, %c0_i32_0 : i32, i32, i32
  }
  func.func @transform_11(%arg0: i32) -> (i32, i32, i32) {
    %c0_i32 = arith.constant 0 : i32
    %c0_i32_0 = arith.constant 0 : i32
    %c0_i32_1 = arith.constant 0 : i32
    return %arg0, %c0_i32, %c0_i32_0 : i32, i32, i32
  }
  func.func @transform_12(%arg0: i32) -> (i32, i32, i32) {
    %c0_i32 = arith.constant 0 : i32
    %c0_i32_0 = arith.constant 0 : i32
    %c0_i32_1 = arith.constant 0 : i32
    return %arg0, %c0_i32, %c0_i32_0 : i32, i32, i32
  }
  func.func @transform_13(%arg0: i32) -> (i32, i32, i32) {
    %c0_i32 = arith.constant 0 : i32
    %c0_i32_0 = arith.constant 0 : i32
    %c0_i32_1 = arith.constant 0 : i32
    return %arg0, %c0_i32, %c0_i32_0 : i32, i32, i32
  }
  func.func @transform_14(%arg0: i32) -> (i32, i32) {
    %c0_i32 = arith.constant 0 : i32
    %c0_i32_0 = arith.constant 0 : i32
    %c0_i32_1 = arith.constant 0 : i32
    return %c0_i32, %c0_i32_0 : i32, i32
  }
  func.func @transform_15(%arg0: i32) -> (i32, i32) {
    %c0_i32 = arith.constant 0 : i32
    %c0_i32_0 = arith.constant 0 : i32
    %c0_i32_1 = arith.constant 0 : i32
    return %c0_i32, %c0_i32_0 : i32, i32
  }
  func.func @transform_16(%arg0: i32) -> (i32, i32) {
    %c0_i32 = arith.constant 0 : i32
    %c0_i32_0 = arith.constant 0 : i32
    %c0_i32_1 = arith.constant 0 : i32
    return %c0_i32, %c0_i32_0 : i32, i32
  }
}

</mosaic_0001>

<llo_original>
// kernel: forward.1
$region0: #{forward.1}
  #allocation0 [shape = 'u32[]', space=smem, size = 0x4, offset = 0x4, fixed_abs, tag = 'smem constant byte address 0x4 - core index']
  #allocation1 [shape = 'u32[72,128]{1,0:T(1,128)}', space=vmem, size = 0x9000, scoped, tag = 'internal scratch']
  #allocation2 [shape = 'f32[16,64]{1,0:T(8,128)}', space=vmem, size = 0x2000, scoped, tag = 'scratch operand']
  #allocation3 [shape = 'f32[16,64]{1,0:T(8,128)}', space=vmem, size = 0x2000, scoped, tag = 'scratch operand']
  %s0 = inlined_call_operand.vmem [shape: f32[16,64], index: 0, kind: input, shape index: {}]
  %s1 = inlined_call_operand.vmem [shape: f32[16,16], index: 1, kind: input, shape index: {}]
  %s2 = inlined_call_operand.vmem [shape: bf16[7,64,192], index: 2, kind: input, shape index: {}]
  %s3 = inlined_call_operand.vmem [shape: f32[7,1,192], index: 3, kind: input, shape index: {}]
  %s4 = inlined_call_operand.vmem [shape: bf16[7,64,64], index: 4, kind: input, shape index: {}]
  %s5 = inlined_call_operand.vmem [shape: f32[7,1,64], index: 5, kind: input, shape index: {}]
  %s6 = inlined_call_operand.vmem [shape: f32[7,1,64], index: 6, kind: input, shape index: {}]
  %s7 = inlined_call_operand.vmem [shape: f32[7,1,64], index: 7, kind: input, shape index: {}]
  %s8 = inlined_call_operand.vmem [shape: f32[7,1,64], index: 8, kind: input, shape index: {}]
  %s9 = inlined_call_operand.vmem [shape: f32[7,1,64], index: 9, kind: input, shape index: {}]
  %s10 = inlined_call_operand.vmem [shape: bf16[7,64,2048], index: 10, kind: input, shape index: {}]
  %s11 = inlined_call_operand.vmem [shape: f32[7,1,2048], index: 11, kind: input, shape index: {}]
  %s12 = inlined_call_operand.vmem [shape: bf16[7,2048,64], index: 12, kind: input, shape index: {}]
  %s13 = inlined_call_operand.vmem [shape: f32[7,1,64], index: 13, kind: input, shape index: {}]
  %s14 = inlined_call_operand.vmem [shape: bf16[64,1024], index: 14, kind: input, shape index: {}]
  %s15 = inlined_call_operand.vmem [shape: f32[1,1024], index: 15, kind: input, shape index: {}]
  %s16 = inlined_call_operand.vmem [shape: f32[16,1024], index: 16, kind: output, shape index: {}]
  %s17 = sld [smem:[#allocation0]]
  $region105: #{forward.1} parent=0
    _
  %s19 = ssub.s32 1, %s17
  %s20 = scalar_select 0, %s19, %s17
  loop: start=0, step=1, limit=9
  $region2: #{forward.1} parent=0 // loop_pre_header
    _
  $region3: #{forward.1} parent=0 // loop_header
    %s22 = sphi 0, %s26
    %p23 = scmp.ge.s32.totalorder %s22, 9
    %s30 = sphi 0, %s30
    %s32 = sphi 0, %s30
    %s33 = sphi 0, %s32
    %s47 = sphi 0, %s33
    %s51 = sphi 0, %s51
    %s53 = sphi 0, %s51
    %s54 = sphi 0, %s53
    %s68 = sphi 0, %s54
    %s74 = sphi 0, %s76
    %s77 = sphi 0, %s74
    %s78 = sphi 0, %s77
    %s94 = sphi 0, %s78
    %s100 = sphi 0, %s102
    %s103 = sphi 0, %s100
    %s104 = sphi 0, %s103
    %s120 = sphi 0, %s104
    %s126 = sphi 0, %s128
    %s129 = sphi 0, %s126
    %s130 = sphi 0, %s129
    %s146 = sphi 0, %s130
    %s152 = sphi 0, %s154
    %s155 = sphi 0, %s152
    %s156 = sphi 0, %s155
    %s172 = sphi 0, %s156
    %s178 = sphi 0, %s180
    %s181 = sphi 0, %s178
    %s182 = sphi 0, %s181
    %s198 = sphi 0, %s182
    %s204 = sphi 0, %s206
    %s207 = sphi 0, %s204
    %s208 = sphi 0, %s207
    %s224 = sphi 0, %s208
    %s230 = sphi 0, %s232
    %s233 = sphi 0, %s230
    %s234 = sphi 0, %s233
    %s250 = sphi 0, %s234
    %s256 = sphi 0, %s258
    %s259 = sphi 0, %s256
    %s260 = sphi 0, %s259
    %s276 = sphi 0, %s260
    %s282 = sphi 0, %s284
    %s285 = sphi 0, %s282
    %s286 = sphi 0, %s285
    %s302 = sphi 0, %s286
    %s308 = sphi 0, %s310
    %s311 = sphi 0, %s308
    %s312 = sphi 0, %s311
    %s328 = sphi 0, %s312
    %s334 = sphi 0, %s336
    %s337 = sphi 0, %s334
    %s338 = sphi 0, %s337
    %s354 = sphi 0, %s338
    %s360 = sphi 0, %s362
    %s363 = sphi 0, %s360
    %s364 = sphi 0, %s363
    %s380 = sphi 0, %s364
    %s384 = sphi 0, %s384
    %s386 = sphi 0, %s384
    %s387 = sphi 0, %s386
    %s401 = sphi 0, %s387
    %s405 = sphi 0, %s405
    %s407 = sphi 0, %s405
    %s408 = sphi 0, %s407
    %s422 = sphi 0, %s408
    %s426 = sphi 0, %s426
    %s428 = sphi 0, %s426
    %s429 = sphi 0, %s428
    %s443 = sphi 0, %s429
  $region4: #{forward.1} parent=0 // loop_header_branch
    %25 = sbr.rel (%p23) target = $region8
  $region5: #{forward.1} parent=0 // loop_body
    %s27 = ssub.s32 %s22, 1
    %s28 = ssub.s32 %s22, 2
    %s29 = sadd.s32 %s22, 1
    %s31 = sadd.s32 %s30, 1
    %p34 = scmp.eq.s32.totalorder %s22, 6
    %p35 = scmp.ne.s32.totalorder %s30, %s32
    %p36 = scmp.eq.s32.totalorder %s22, 0
    %p37 = por %p35, %p36
    %p38 = scmp.ne.s32.totalorder %s30, %s32
    %p39 = scmp.eq.s32.totalorder %s27, 6
    %p40 = por %p38, %p39
    %p41 = scmp.ne.s32.totalorder %s32, %s33
    %p42 = scmp.eq.s32.totalorder %s27, 0
    %p43 = por %p41, %p42
    %p44 = scmp.ne.s32.totalorder %s32, %s33
    %p45 = scmp.eq.s32.totalorder %s28, 6
    %p46 = por %p44, %p45
    %p48 = scmp.ne.s32.totalorder %s33, %s47
    %p49 = scmp.eq.s32.totalorder %s28, 0
    %p50 = por %p48, %p49
    %s52 = sadd.s32 %s51, 1
    %p55 = scmp.eq.s32.totalorder %s22, 6
    %p56 = scmp.ne.s32.totalorder %s51, %s53
    %p57 = scmp.eq.s32.totalorder %s22, 0
    %p58 = por %p56, %p57
    %p59 = scmp.ne.s32.totalorder %s51, %s53
    %p60 = scmp.eq.s32.totalorder %s27, 6
    %p61 = por %p59, %p60
    %p62 = scmp.ne.s32.totalorder %s53, %s54
    %p63 = scmp.eq.s32.totalorder %s27, 0
    %p64 = por %p62, %p63
    %p65 = scmp.ne.s32.totalorder %s53, %s54
    %p66 = scmp.eq.s32.totalorder %s28, 6
    %p67 = por %p65, %p66
    %p69 = scmp.ne.s32.totalorder %s54, %s68
    %p70 = scmp.eq.s32.totalorder %s28, 0
    %p71 = por %p69, %p70
    %s72 = ssub.s32 %s22, %s29
    %p73 = scmp.eq.s32.totalorder %s72, 0
    %s75 = sadd.s32 %s74, 1
    %s76 = scalar_select %p73, %s74, %s75
    %p79 = pneg %p73
    %p80 = scmp.eq.s32.totalorder %s22, 6
    %p81 = por %p79, %p80
    %p82 = scmp.ne.s32.totalorder %s74, %s77
    %p83 = scmp.eq.s32.totalorder %s22, 0
    %p84 = por %p82, %p83
    %p85 = scmp.ne.s32.totalorder %s74, %s77
    %p86 = scmp.eq.s32.totalorder %s27, 6
    %p87 = por %p85, %p86
    %p88 = scmp.ne.s32.totalorder %s77, %s78
    %p89 = scmp.eq.s32.totalorder %s27, 0
    %p90 = por %p88, %p89
    %p91 = scmp.ne.s32.totalorder %s77, %s78
    %p92 = scmp.eq.s32.totalorder %s28, 6
    %p93 = por %p91, %p92
    %p95 = scmp.ne.s32.totalorder %s78, %s94
    %p96 = scmp.eq.s32.totalorder %s28, 0
    %p97 = por %p95, %p96
    %s98 = ssub.s32 %s22, %s29
    %p99 = scmp.eq.s32.totalorder %s98, 0
    %s101 = sadd.s32 %s100, 1
    %s102 = scalar_select %p99, %s100, %s101
    %p105 = pneg %p99
    %p106 = scmp.eq.s32.totalorder %s22, 6
    %p107 = por %p105, %p106
    %p108 = scmp.ne.s32.totalorder %s100, %s103
    %p109 = scmp.eq.s32.totalorder %s22, 0
    %p110 = por %p108, %p109
    %p111 = scmp.ne.s32.totalorder %s100, %s103
    %p112 = scmp.eq.s32.totalorder %s27, 6
    %p113 = por %p111, %p112
    %p114 = scmp.ne.s32.totalorder %s103, %s104
    %p115 = scmp.eq.s32.totalorder %s27, 0
    %p116 = por %p114, %p115
    %p117 = scmp.ne.s32.totalorder %s103, %s104
    %p118 = scmp.eq.s32.totalorder %s28, 6
    %p119 = por %p117, %p118
    %p121 = scmp.ne.s32.totalorder %s104, %s120
    %p122 = scmp.eq.s32.totalorder %s28, 0
    %p123 = por %p121, %p122
    %s124 = ssub.s32 %s22, %s29
    %p125 = scmp.eq.s32.totalorder %s124, 0
    %s127 = sadd.s32 %s126, 1
    %s128 = scalar_select %p125, %s126, %s127
    %p131 = pneg %p125
    %p132 = scmp.eq.s32.totalorder %s22, 6
    %p133 = por %p131, %p132
    %p134 = scmp.ne.s32.totalorder %s126, %s129
    %p135 = scmp.eq.s32.totalorder %s22, 0
    %p136 = por %p134, %p135
    %p137 = scmp.ne.s32.totalorder %s126, %s129
    %p138 = scmp.eq.s32.totalorder %s27, 6
    %p139 = por %p137, %p138
    %p140 = scmp.ne.s32.totalorder %s129, %s130
    %p141 = scmp.eq.s32.totalorder %s27, 0
    %p142 = por %p140, %p141
    %p143 = scmp.ne.s32.totalorder %s129, %s130
    %p144 = scmp.eq.s32.totalorder %s28, 6
    %p145 = por %p143, %p144
    %p147 = scmp.ne.s32.totalorder %s130, %s146
    %p148 = scmp.eq.s32.totalorder %s28, 0
    %p149 = por %p147, %p148
    %s150 = ssub.s32 %s22, %s29
    %p151 = scmp.eq.s32.totalorder %s150, 0
    %s153 = sadd.s32 %s152, 1
    %s154 = scalar_select %p151, %s152, %s153
    %p157 = pneg %p151
    %p158 = scmp.eq.s32.totalorder %s22, 6
    %p159 = por %p157, %p158
    %p160 = scmp.ne.s32.totalorder %s152, %s155
    %p161 = scmp.eq.s32.totalorder %s22, 0
    %p162 = por %p160, %p161
    %p163 = scmp.ne.s32.totalorder %s152, %s155
    %p164 = scmp.eq.s32.totalorder %s27, 6
    %p165 = por %p163, %p164
    %p166 = scmp.ne.s32.totalorder %s155, %s156
    %p167 = scmp.eq.s32.totalorder %s27, 0
    %p168 = por %p166, %p167
    %p169 = scmp.ne.s32.totalorder %s155, %s156
    %p170 = scmp.eq.s32.totalorder %s28, 6
    %p171 = por %p169, %p170
    %p173 = scmp.ne.s32.totalorder %s156, %s172
    %p174 = scmp.eq.s32.totalorder %s28, 0
    %p175 = por %p173, %p174
    %s176 = ssub.s32 %s22, %s29
    %p177 = scmp.eq.s32.totalorder %s176, 0
    %s179 = sadd.s32 %s178, 1
    %s180 = scalar_select %p177, %s178, %s179
    %p183 = pneg %p177
    %p184 = scmp.eq.s32.totalorder %s22, 6
    %p185 = por %p183, %p184
    %p186 = scmp.ne.s32.totalorder %s178, %s181
    %p187 = scmp.eq.s32.totalorder %s22, 0
    %p188 = por %p186, %p187
    %p189 = scmp.ne.s32.totalorder %s178, %s181
    %p190 = scmp.eq.s32.totalorder %s27, 6
    %p191 = por %p189, %p190
    %p192 = scmp.ne.s32.totalorder %s181, %s182
    %p193 = scmp.eq.s32.totalorder %s27, 0
    %p194 = por %p192, %p193
    %p195 = scmp.ne.s32.totalorder %s181, %s182
    %p196 = scmp.eq.s32.totalorder %s28, 6
    %p197 = por %p195, %p196
    %p199 = scmp.ne.s32.totalorder %s182, %s198
    %p200 = scmp.eq.s32.totalorder %s28, 0
    %p201 = por %p199, %p200
    %s202 = ssub.s32 %s22, %s29
    %p203 = scmp.eq.s32.totalorder %s202, 0
    %s205 = sadd.s32 %s204, 1
    %s206 = scalar_select %p203, %s204, %s205
    %p209 = pneg %p203
    %p210 = scmp.eq.s32.totalorder %s22, 6
    %p211 = por %p209, %p210
    %p212 = scmp.ne.s32.totalorder %s204, %s207
    %p213 = scmp.eq.s32.totalorder %s22, 0
    %p214 = por %p212, %p213
    %p215 = scmp.ne.s32.totalorder %s204, %s207
    %p216 = scmp.eq.s32.totalorder %s27, 6
    %p217 = por %p215, %p216
    %p218 = scmp.ne.s32.totalorder %s207, %s208
    %p219 = scmp.eq.s32.totalorder %s27, 0
    %p220 = por %p218, %p219
    %p221 = scmp.ne.s32.totalorder %s207, %s208
    %p222 = scmp.eq.s32.totalorder %s28, 6
    %p223 = por %p221, %p222
    %p225 = scmp.ne.s32.totalorder %s208, %s224
    %p226 = scmp.eq.s32.totalorder %s28, 0
    %p227 = por %p225, %p226
    %s228 = ssub.s32 %s22, %s29
    %p229 = scmp.eq.s32.totalorder %s228, 0
    %s231 = sadd.s32 %s230, 1
    %s232 = scalar_select %p229, %s230, %s231
    %p235 = pneg %p229
    %p236 = scmp.eq.s32.totalorder %s22, 6
    %p237 = por %p235, %p236
    %p238 = scmp.ne.s32.totalorder %s230, %s233
    %p239 = scmp.eq.s32.totalorder %s22, 0
    %p240 = por %p238, %p239
    %p241 = scmp.ne.s32.totalorder %s230, %s233
    %p242 = scmp.eq.s32.totalorder %s27, 6
    %p243 = por %p241, %p242
    %p244 = scmp.ne.s32.totalorder %s233, %s234
    %p245 = scmp.eq.s32.totalorder %s27, 0
    %p246 = por %p244, %p245
    %p247 = scmp.ne.s32.totalorder %s233, %s234
    %p248 = scmp.eq.s32.totalorder %s28, 6
    %p249 = por %p247, %p248
    %p251 = scmp.ne.s32.totalorder %s234, %s250
    %p252 = scmp.eq.s32.totalorder %s28, 0
    %p253 = por %p251, %p252
    %s254 = ssub.s32 %s22, %s29
    %p255 = scmp.eq.s32.totalorder %s254, 0
    %s257 = sadd.s32 %s256, 1
    %s258 = scalar_select %p255, %s256, %s257
    %p261 = pneg %p255
    %p262 = scmp.eq.s32.totalorder %s22, 6
    %p263 = por %p261, %p262
    %p264 = scmp.ne.s32.totalorder %s256, %s259
    %p265 = scmp.eq.s32.totalorder %s22, 0
    %p266 = por %p264, %p265
    %p267 = scmp.ne.s32.totalorder %s256, %s259
    %p268 = scmp.eq.s32.totalorder %s27, 6
    %p269 = por %p267, %p268
    %p270 = scmp.ne.s32.totalorder %s259, %s260
    %p271 = scmp.eq.s32.totalorder %s27, 0
    %p272 = por %p270, %p271
    %p273 = scmp.ne.s32.totalorder %s259, %s260
    %p274 = scmp.eq.s32.totalorder %s28, 6
    %p275 = por %p273, %p274
    %p277 = scmp.ne.s32.totalorder %s260, %s276
    %p278 = scmp.eq.s32.totalorder %s28, 0
    %p279 = por %p277, %p278
    %s280 = ssub.s32 %s22, %s29
    %p281 = scmp.eq.s32.totalorder %s280, 0
    %s283 = sadd.s32 %s282, 1
    %s284 = scalar_select %p281, %s282, %s283
    %p287 = pneg %p281
    %p288 = scmp.eq.s32.totalorder %s22, 6
    %p289 = por %p287, %p288
    %p290 = scmp.ne.s32.totalorder %s282, %s285
    %p291 = scmp.eq.s32.totalorder %s22, 0
    %p292 = por %p290, %p291
    %p293 = scmp.ne.s32.totalorder %s282, %s285
    %p294 = scmp.eq.s32.totalorder %s27, 6
    %p295 = por %p293, %p294
    %p296 = scmp.ne.s32.totalorder %s285, %s286
    %p297 = scmp.eq.s32.totalorder %s27, 0
    %p298 = por %p296, %p297
    %p299 = scmp.ne.s32.totalorder %s285, %s286
    %p300 = scmp.eq.s32.totalorder %s28, 6
    %p301 = por %p299, %p300
    %p303 = scmp.ne.s32.totalorder %s286, %s302
    %p304 = scmp.eq.s32.totalorder %s28, 0
    %p305 = por %p303, %p304
    %s306 = ssub.s32 %s22, %s29
    %p307 = scmp.eq.s32.totalorder %s306, 0
    %s309 = sadd.s32 %s308, 1
    %s310 = scalar_select %p307, %s308, %s309
    %p313 = pneg %p307
    %p314 = scmp.eq.s32.totalorder %s22, 6
    %p315 = por %p313, %p314
    %p316 = scmp.ne.s32.totalorder %s308, %s311
    %p317 = scmp.eq.s32.totalorder %s22, 0
    %p318 = por %p316, %p317
    %p319 = scmp.ne.s32.totalorder %s308, %s311
    %p320 = scmp.eq.s32.totalorder %s27, 6
    %p321 = por %p319, %p320
    %p322 = scmp.ne.s32.totalorder %s311, %s312
    %p323 = scmp.eq.s32.totalorder %s27, 0
    %p324 = por %p322, %p323
    %p325 = scmp.ne.s32.totalorder %s311, %s312
    %p326 = scmp.eq.s32.totalorder %s28, 6
    %p327 = por %p325, %p326
    %p329 = scmp.ne.s32.totalorder %s312, %s328
    %p330 = scmp.eq.s32.totalorder %s28, 0
    %p331 = por %p329, %p330
    %s332 = ssub.s32 %s22, %s29
    %p333 = scmp.eq.s32.totalorder %s332, 0
    %s335 = sadd.s32 %s334, 1
    %s336 = scalar_select %p333, %s334, %s335
    %p339 = pneg %p333
    %p340 = scmp.eq.s32.totalorder %s22, 6
    %p341 = por %p339, %p340
    %p342 = scmp.ne.s32.totalorder %s334, %s337
    %p343 = scmp.eq.s32.totalorder %s22, 0
    %p344 = por %p342, %p343
    %p345 = scmp.ne.s32.totalorder %s334, %s337
    %p346 = scmp.eq.s32.totalorder %s27, 6
    %p347 = por %p345, %p346
    %p348 = scmp.ne.s32.totalorder %s337, %s338
    %p349 = scmp.eq.s32.totalorder %s27, 0
    %p350 = por %p348, %p349
    %p351 = scmp.ne.s32.totalorder %s337, %s338
    %p352 = scmp.eq.s32.totalorder %s28, 6
    %p353 = por %p351, %p352
    %p355 = scmp.ne.s32.totalorder %s338, %s354
    %p356 = scmp.eq.s32.totalorder %s28, 0
    %p357 = por %p355, %p356
    %s358 = ssub.s32 %s22, %s29
    %p359 = scmp.eq.s32.totalorder %s358, 0
    %s361 = sadd.s32 %s360, 1
    %s362 = scalar_select %p359, %s360, %s361
    %p365 = pneg %p359
    %p366 = scmp.eq.s32.totalorder %s22, 6
    %p367 = por %p365, %p366
    %p368 = scmp.ne.s32.totalorder %s360, %s363
    %p369 = scmp.eq.s32.totalorder %s22, 0
    %p370 = por %p368, %p369
    %p371 = scmp.ne.s32.totalorder %s360, %s363
    %p372 = scmp.eq.s32.totalorder %s27, 6
    %p373 = por %p371, %p372
    %p374 = scmp.ne.s32.totalorder %s363, %s364
    %p375 = scmp.eq.s32.totalorder %s27, 0
    %p376 = por %p374, %p375
    %p377 = scmp.ne.s32.totalorder %s363, %s364
    %p378 = scmp.eq.s32.totalorder %s28, 6
    %p379 = por %p377, %p378
    %p381 = scmp.ne.s32.totalorder %s364, %s380
    %p382 = scmp.eq.s32.totalorder %s28, 0
    %p383 = por %p381, %p382
    %s385 = sadd.s32 %s384, 1
    %p388 = scmp.eq.s32.totalorder %s22, 6
    %p389 = scmp.ne.s32.totalorder %s384, %s386
    %p390 = scmp.eq.s32.totalorder %s22, 0
    %p391 = por %p389, %p390
    %p392 = scmp.ne.s32.totalorder %s384, %s386
    %p393 = scmp.eq.s32.totalorder %s27, 6
    %p394 = por %p392, %p393
    %p395 = scmp.ne.s32.totalorder %s386, %s387
    %p396 = scmp.eq.s32.totalorder %s27, 0
    %p397 = por %p395, %p396
    %p398 = scmp.ne.s32.totalorder %s386, %s387
    %p399 = scmp.eq.s32.totalorder %s28, 6
    %p400 = por %p398, %p399
    %p402 = scmp.ne.s32.totalorder %s387, %s401
    %p403 = scmp.eq.s32.totalorder %s28, 0
    %p404 = por %p402, %p403
    %s406 = sadd.s32 %s405, 1
    %p409 = scmp.eq.s32.totalorder %s22, 6
    %p410 = scmp.ne.s32.totalorder %s405, %s407
    %p411 = scmp.eq.s32.totalorder %s22, 0
    %p412 = por %p410, %p411
    %p413 = scmp.ne.s32.totalorder %s405, %s407
    %p414 = scmp.eq.s32.totalorder %s27, 6
    %p415 = por %p413, %p414
    %p416 = scmp.ne.s32.totalorder %s407, %s408
    %p417 = scmp.eq.s32.totalorder %s27, 0
    %p418 = por %p416, %p417
    %p419 = scmp.ne.s32.totalorder %s407, %s408
    %p420 = scmp.eq.s32.totalorder %s28, 6
    %p421 = por %p419, %p420
    %p423 = scmp.ne.s32.totalorder %s408, %s422
    %p424 = scmp.eq.s32.totalorder %s28, 0
    %p425 = por %p423, %p424
    %s427 = sadd.s32 %s426, 1
    %p430 = scmp.eq.s32.totalorder %s22, 6
    %p431 = scmp.ne.s32.totalorder %s426, %s428
    %p432 = scmp.eq.s32.totalorder %s22, 0
    %p433 = por %p431, %p432
    %p434 = scmp.ne.s32.totalorder %s426, %s428
    %p435 = scmp.eq.s32.totalorder %s27, 6
    %p436 = por %p434, %p435
    %p437 = scmp.ne.s32.totalorder %s428, %s429
    %p438 = scmp.eq.s32.totalorder %s27, 0
    %p439 = por %p437, %p438
    %p440 = scmp.ne.s32.totalorder %s428, %s429
    %p441 = scmp.eq.s32.totalorder %s28, 6
    %p442 = por %p440, %p441
    %p444 = scmp.ne.s32.totalorder %s429, %s443
    %p445 = scmp.eq.s32.totalorder %s28, 0
    %p446 = por %p444, %p445
    %p447 = scmp.le.s32.totalorder 1, %s22
    %p448 = scmp.lt.s32.totalorder %s22, 8
    %p449 = pnand %p447, %p448
    %p450 = pneg %p449
    // Predicated region
    $region9: #{forward.1} parent=5 // pred_check
      _
    $region10: #{forward.1} parent=5 // pred_check_branch
      %452 = sbr.rel (%p449) target = $region12
    $region11: #{forward.1} parent=5 // pred_region
      %s453 = ssub.s32 %s22, 1
      // Predicated region
      $region13: #{forward.1} parent=11 // pred_check
        %p454 = pneg %p43
      $region14: #{forward.1} parent=11 // pred_check_branch
        %456 = sbr.rel (%p454) target = $region16
      $region15: #{forward.1} parent=11 // pred_region
        _
      $region16: #{forward.1} parent=11 // pred_fallthru
        _
      // Predicated region
      $region17: #{forward.1} parent=11 // pred_check
        %p457 = pneg %p64
      $region18: #{forward.1} parent=11 // pred_check_branch
        %459 = sbr.rel (%p457) target = $region20
      $region19: #{forward.1} parent=11 // pred_region
        _
      $region20: #{forward.1} parent=11 // pred_fallthru
        _
      // Predicated region
      $region21: #{forward.1} parent=11 // pred_check
        %p460 = pneg %p397
      $region22: #{forward.1} parent=11 // pred_check_branch
        %462 = sbr.rel (%p460) target = $region24
      $region23: #{forward.1} parent=11 // pred_region
        _
      $region24: #{forward.1} parent=11 // pred_fallthru
        _
      // Predicated region
      $region25: #{forward.1} parent=11 // pred_check
        %p463 = pneg %p418
      $region26: #{forward.1} parent=11 // pred_check_branch
        %465 = sbr.rel (%p463) target = $region28
      $region27: #{forward.1} parent=11 // pred_region
        _
      $region28: #{forward.1} parent=11 // pred_fallthru
        _
    $region12: #{forward.1} parent=5 // pred_fallthru
      _
    %p466 = scmp.lt.s32.totalorder %s22, 7
    // Predicated region
    $region29: #{forward.1} parent=5 // pred_check
      %p467 = pneg %p466
    $region30: #{forward.1} parent=5 // pred_check_branch
      %469 = sbr.rel (%p467) target = $region32
    $region31: #{forward.1} parent=5 // pred_region
      // Predicated region
      $region33: #{forward.1} parent=31 // pred_check
        %p470 = pneg %p84
      $region34: #{forward.1} parent=31 // pred_check_branch
        %472 = sbr.rel (%p470) target = $region36
      $region35: #{forward.1} parent=31 // pred_region
        %p473 = scmp.lt.s32.totalorder %s22, 6
        %s474 = scalar_select %p473, %s22, 6
        %s475 = smul.addr %s474, 16
        %s476 = smul.addr %s475, 4
        %s477 = scalar_lea.vmem %s2, %s476
      $region36: #{forward.1} parent=31 // pred_fallthru
        _
      // Predicated region
      $region37: #{forward.1} parent=31 // pred_check
        %p478 = pneg %p110
      $region38: #{forward.1} parent=31 // pred_check_branch
        %480 = sbr.rel (%p478) target = $region40
      $region39: #{forward.1} parent=31 // pred_region
        %p481 = scmp.lt.s32.totalorder %s22, 6
        %s482 = scalar_select %p481, %s22, 6
        %s483 = smul.addr %s482, 2
        %s484 = scalar_lea.vmem %s3, %s483
      $region40: #{forward.1} parent=31 // pred_fallthru
        _
      // Predicated region
      $region41: #{forward.1} parent=31 // pred_check
        %p485 = pneg %p136
      $region42: #{forward.1} parent=31 // pred_check_branch
        %487 = sbr.rel (%p485) target = $region44
      $region43: #{forward.1} parent=31 // pred_region
        %p488 = scmp.lt.s32.totalorder %s22, 6
        %s489 = scalar_select %p488, %s22, 6
        %s490 = smul.addr %s489, 8
        %s491 = smul.addr %s490, 4
        %s492 = scalar_lea.vmem %s4, %s491
      $region44: #{forward.1} parent=31 // pred_fallthru
        _
      // Predicated region
      $region45: #{forward.1} parent=31 // pred_check
        %p493 = pneg %p162
      $region46: #{forward.1} parent=31 // pred_check_branch
        %495 = sbr.rel (%p493) target = $region48
      $region47: #{forward.1} parent=31 // pred_region
        %p496 = scmp.lt.s32.totalorder %s22, 6
        %s497 = scalar_select %p496, %s22, 6
        %s498 = scalar_lea.vmem %s5, %s497
      $region48: #{forward.1} parent=31 // pred_fallthru
        _
      // Predicated region
      $region49: #{forward.1} parent=31 // pred_check
        %p499 = pneg %p188
      $region50: #{forward.1} parent=31 // pred_check_branch
        %501 = sbr.rel (%p499) target = $region52
      $region51: #{forward.1} parent=31 // pred_region
        %p502 = scmp.lt.s32.totalorder %s22, 6
        %s503 = scalar_select %p502, %s22, 6
        %s504 = scalar_lea.vmem %s6, %s503
      $region52: #{forward.1} parent=31 // pred_fallthru
        _
      // Predicated region
      $region53: #{forward.1} parent=31 // pred_check
        %p505 = pneg %p214
      $region54: #{forward.1} parent=31 // pred_check_branch
        %507 = sbr.rel (%p505) target = $region56
      $region55: #{forward.1} parent=31 // pred_region
        %p508 = scmp.lt.s32.totalorder %s22, 6
        %s509 = scalar_select %p508, %s22, 6
        %s510 = scalar_lea.vmem %s7, %s509
      $region56: #{forward.1} parent=31 // pred_fallthru
        _
      // Predicated region
      $region57: #{forward.1} parent=31 // pred_check
        %p511 = pneg %p240
      $region58: #{forward.1} parent=31 // pred_check_branch
        %513 = sbr.rel (%p511) target = $region60
      $region59: #{forward.1} parent=31 // pred_region
        %p514 = scmp.lt.s32.totalorder %s22, 6
        %s515 = scalar_select %p514, %s22, 6
        %s516 = scalar_lea.vmem %s8, %s515
      $region60: #{forward.1} parent=31 // pred_fallthru
        _
      // Predicated region
      $region61: #{forward.1} parent=31 // pred_check
        %p517 = pneg %p266
      $region62: #{forward.1} parent=31 // pred_check_branch
        %519 = sbr.rel (%p517) target = $region64
      $region63: #{forward.1} parent=31 // pred_region
        %p520 = scmp.lt.s32.totalorder %s22, 6
        %s521 = scalar_select %p520, %s22, 6
        %s522 = scalar_lea.vmem %s9, %s521
      $region64: #{forward.1} parent=31 // pred_fallthru
        _
      // Predicated region
      $region65: #{forward.1} parent=31 // pred_check
        %p523 = pneg %p292
      $region66: #{forward.1} parent=31 // pred_check_branch
        %525 = sbr.rel (%p523) target = $region68
      $region67: #{forward.1} parent=31 // pred_region
        %p526 = scmp.lt.s32.totalorder %s22, 6
        %s527 = scalar_select %p526, %s22, 6
        %s528 = smul.addr %s527, 128
        %s529 = smul.addr %s528, 4
        %s530 = scalar_lea.vmem %s10, %s529
      $region68: #{forward.1} parent=31 // pred_fallthru
        _
      // Predicated region
      $region69: #{forward.1} parent=31 // pred_check
        %p531 = pneg %p318
      $region70: #{forward.1} parent=31 // pred_check_branch
        %533 = sbr.rel (%p531) target = $region72
      $region71: #{forward.1} parent=31 // pred_region
        %p534 = scmp.lt.s32.totalorder %s22, 6
        %s535 = scalar_select %p534, %s22, 6
        %s536 = smul.addr %s535, 16
        %s537 = scalar_lea.vmem %s11, %s536
      $region72: #{forward.1} parent=31 // pred_fallthru
        _
      // Predicated region
      $region73: #{forward.1} parent=31 // pred_check
        %p538 = pneg %p344
      $region74: #{forward.1} parent=31 // pred_check_branch
        %540 = sbr.rel (%p538) target = $region76
      $region75: #{forward.1} parent=31 // pred_region
        %p541 = scmp.lt.s32.totalorder %s22, 6
        %s542 = scalar_select %p541, %s22, 6
        %s543 = smul.addr %s542, 256
        %s544 = smul.addr %s543, 4
        %s545 = scalar_lea.vmem %s12, %s544
      $region76: #{forward.1} parent=31 // pred_fallthru
        _
      // Predicated region
      $region77: #{forward.1} parent=31 // pred_check
        %p546 = pneg %p370
      $region78: #{forward.1} parent=31 // pred_check_branch
        %548 = sbr.rel (%p546) target = $region80
      $region79: #{forward.1} parent=31 // pred_region
        %p549 = scmp.lt.s32.totalorder %s22, 6
        %s550 = scalar_select %p549, %s22, 6
        %s551 = scalar_lea.vmem %s13, %s550
      $region80: #{forward.1} parent=31 // pred_fallthru
        _
    $region32: #{forward.1} parent=5 // pred_fallthru
      _
    %p552 = scmp.le.s32.totalorder 1, %s22
    %p553 = scmp.lt.s32.totalorder %s22, 8
    %p554 = pnand %p552, %p553
    %p555 = pneg %p554
    // Predicated region
    $region81: #{forward.1} parent=5 // pred_check
      _
    $region82: #{forward.1} parent=5 // pred_check_branch
      %557 = sbr.rel (%p554) target = $region84
    $region83: #{forward.1} parent=5 // pred_region
      %s558 = ssub.s32 %s22, 1
      %p559 = pneg %p43
      %p560 = pneg %p40
      %p561 = pneg %p64
      %p562 = pneg %p61
      %p563 = scmp.lt.s32.totalorder %s27, 6
      %s564 = scalar_select %p563, %s27, 6
      %s565 = smul.addr %s564, 16
      %s566 = smul.addr %s565, 4
      %s567 = scalar_lea.vmem %s2, %s566
      %p568 = pneg %p90
      %p569 = pneg %p87
      %p570 = scmp.lt.s32.totalorder %s27, 6
      %s571 = scalar_select %p570, %s27, 6
      %s572 = smul.addr %s571, 2
      %s573 = scalar_lea.vmem %s3, %s572
      %p574 = pneg %p116
      %p575 = pneg %p113
      %p576 = scmp.lt.s32.totalorder %s27, 6
      %s577 = scalar_select %p576, %s27, 6
      %s578 = smul.addr %s577, 8
      %s579 = smul.addr %s578, 4
      %s580 = scalar_lea.vmem %s4, %s579
      %p581 = pneg %p142
      %p582 = pneg %p139
      %p583 = scmp.lt.s32.totalorder %s27, 6
      %s584 = scalar_select %p583, %s27, 6
      %s585 = scalar_lea.vmem %s5, %s584
      %p586 = pneg %p168
      %p587 = pneg %p165
      %p588 = scmp.lt.s32.totalorder %s27, 6
      %s589 = scalar_select %p588, %s27, 6
      %s590 = scalar_lea.vmem %s6, %s589
      %p591 = pneg %p194
      %p592 = pneg %p191
      %p593 = scmp.lt.s32.totalorder %s27, 6
      %s594 = scalar_select %p593, %s27, 6
      %s595 = scalar_lea.vmem %s7, %s594
      %p596 = pneg %p220
      %p597 = pneg %p217
      %p598 = scmp.lt.s32.totalorder %s27, 6
      %s599 = scalar_select %p598, %s27, 6
      %s600 = scalar_lea.vmem %s8, %s599
      %p601 = pneg %p246
      %p602 = pneg %p243
      %p603 = scmp.lt.s32.totalorder %s27, 6
      %s604 = scalar_select %p603, %s27, 6
      %s605 = scalar_lea.vmem %s9, %s604
      %p606 = pneg %p272
      %p607 = pneg %p269
      %p608 = scmp.lt.s32.totalorder %s27, 6
      %s609 = scalar_select %p608, %s27, 6
      %s610 = smul.addr %s609, 128
      %s611 = smul.addr %s610, 4
      %s612 = scalar_lea.vmem %s10, %s611
      %p613 = pneg %p298
      %p614 = pneg %p295
      %p615 = scmp.lt.s32.totalorder %s27, 6
      %s616 = scalar_select %p615, %s27, 6
      %s617 = smul.addr %s616, 16
      %s618 = scalar_lea.vmem %s11, %s617
      %p619 = pneg %p324
      %p620 = pneg %p321
      %p621 = scmp.lt.s32.totalorder %s27, 6
      %s622 = scalar_select %p621, %s27, 6
      %s623 = smul.addr %s622, 256
      %s624 = smul.addr %s623, 4
      %s625 = scalar_lea.vmem %s12, %s624
      %p626 = pneg %p350
      %p627 = pneg %p347
      %p628 = scmp.lt.s32.totalorder %s27, 6
      %s629 = scalar_select %p628, %s27, 6
      %s630 = scalar_lea.vmem %s13, %s629
      %p631 = pneg %p376
      %p632 = pneg %p373
      %p633 = pneg %p397
      %p634 = pneg %p394
      %p635 = pneg %p418
      %p636 = pneg %p415
      %p637 = pneg %p439
      %p638 = pneg %p436
      %p639 = scmp.lt.s32.totalorder %s27, 6
      %s640 = scalar_select %p639, %s27, 6
      %s641 = smul.addr %s640, 16
      %s642 = smul.addr %s641, 4
      %s643 = scalar_lea.vmem %s2, %s642
      %p644 = scmp.lt.s32.totalorder %s27, 6
      %s645 = scalar_select %p644, %s27, 6
      %s646 = smul.addr %s645, 2
      %s647 = scalar_lea.vmem %s3, %s646
      %p648 = scmp.lt.s32.totalorder %s27, 6
      %s649 = scalar_select %p648, %s27, 6
      %s650 = smul.addr %s649, 8
      %s651 = smul.addr %s650, 4
      %s652 = scalar_lea.vmem %s4, %s651
      %p653 = scmp.lt.s32.totalorder %s27, 6
      %s654 = scalar_select %p653, %s27, 6
      %s655 = scalar_lea.vmem %s5, %s654
      %p656 = scmp.lt.s32.totalorder %s27, 6
      %s657 = scalar_select %p656, %s27, 6
      %s658 = scalar_lea.vmem %s6, %s657
      %p659 = scmp.lt.s32.totalorder %s27, 6
      %s660 = scalar_select %p659, %s27, 6
      %s661 = scalar_lea.vmem %s7, %s660
      %p662 = scmp.lt.s32.totalorder %s27, 6
      %s663 = scalar_select %p662, %s27, 6
      %s664 = scalar_lea.vmem %s8, %s663
      %p665 = scmp.lt.s32.totalorder %s27, 6
      %s666 = scalar_select %p665, %s27, 6
      %s667 = scalar_lea.vmem %s9, %s666
      %p668 = scmp.lt.s32.totalorder %s27, 6
      %s669 = scalar_select %p668, %s27, 6
      %s670 = smul.addr %s669, 128
      %s671 = smul.addr %s670, 4
      %s672 = scalar_lea.vmem %s10, %s671
      %p673 = scmp.lt.s32.totalorder %s27, 6
      %s674 = scalar_select %p673, %s27, 6
      %s675 = smul.addr %s674, 16
      %s676 = scalar_lea.vmem %s11, %s675
      %p677 = scmp.lt.s32.totalorder %s27, 6
      %s678 = scalar_select %p677, %s27, 6
      %s679 = smul.addr %s678, 256
      %s680 = smul.addr %s679, 4
      %s681 = scalar_lea.vmem %s12, %s680
      %p682 = scmp.lt.s32.totalorder %s27, 6
      %s683 = scalar_select %p682, %s27, 6
      %s684 = scalar_lea.vmem %s13, %s683
      %p686 = scmp.eq.s32.totalorder %s27, 0
      // Predicated region
      $region85: #{forward.1} parent=83 // pred_check
        %p687 = pneg %p686
      $region86: #{forward.1} parent=83 // pred_check_branch
        %689 = sbr.rel (%p687) target = $region88
      $region87: #{forward.1} parent=83 // pred_region
        %v690 = vld [vmem:[%s0] sm:$0xff]
        %v691 = vld [vmem:[%s0 + $0x8] sm:$0xff]
        %vm692 = vcmask 523264
        %693 = vst.msk [vmem:[#allocation2] sm:$0xff] %vm692, %v690
        %694 = vst.msk [vmem:[#allocation2 + $0x8] sm:$0xff] %vm692, %v691
      $region88: #{forward.1} parent=83 // pred_fallthru
        _
      %v695 = vld [vmem:[#allocation2] sm:$0xff]
      %v696 = vld [vmem:[#allocation2 + $0x8] sm:$0xff]
      %v697 = vpack.c.bf16 %v696, %v695
      %v698 = vld [vmem:[%s643] sm:$0xff]
      %v699 = vld [vmem:[%s643 + $0x8] sm:$0xff]
      %v700 = vld [vmem:[%s643 + $0x10] sm:$0xff]
      %v701 = vld [vmem:[%s643 + $0x18] sm:$0xff]
      %v702 = vld [vmem:[%s643 + $0x20] sm:$0xff]
      %v703 = vld [vmem:[%s643 + $0x28] sm:$0xff]
      %v704 = vld [vmem:[%s643 + $0x30] sm:$0xff]
      %v705 = vld [vmem:[%s643 + $0x38] sm:$0xff]
      %v706 = vld [vmem:[%s647] sm:$0x3]
      %v708 = vperm.slane %v706, 0
      %v709 = vperm.slane %v706, 1
      %v720 = vunpack.c.l.b16 %v698
      %v721 = vunpack.c.h.b16 %v698
      %v722 = vunpack.c.l.b16 %v699
      %v723 = vunpack.c.h.b16 %v699
      %v724 = vunpack.c.l.b16 %v700
      %v725 = vunpack.c.h.b16 %v700
      %v726 = vunpack.c.l.b16 %v701
      %v727 = vunpack.c.h.b16 %v701
      %v728 = vunpack.c.l.b16 %v702
      %v729 = vunpack.c.h.b16 %v702
      %v730 = vunpack.c.l.b16 %v703
      %v731 = vunpack.c.h.b16 %v703
      %v732 = vunpack.c.l.b16 %v704
      %v733 = vunpack.c.h.b16 %v704
      %v734 = vunpack.c.l.b16 %v705
      %v735 = vunpack.c.h.b16 %v705
      %v736 = vpack.c.b16 %v722, %v720
      %v737 = vpack.c.b16 %v723, %v721
      %v738 = vpack.c.b16 %v726, %v724
      %v739 = vpack.c.b16 %v727, %v725
      %v740 = vpack.c.b16 %v730, %v728
      %v741 = vpack.c.b16 %v731, %v729
      %v742 = vpack.c.b16 %v734, %v732
      %v743 = vpack.c.b16 %v735, %v733
      %vm752 = vcmask 523264
      %v754 = vsel %vm752, %v697, 0
      %756 = vmatpush.bf16.msra.mxu0 0
      %757 = vmatpush.bf16.msra.mxu0 0
      %758 = vmatpush.bf16.msra.mxu0 0
      %759 = vmatpush.bf16.msra.mxu0 0
      %760 = vmatpush.bf16.msra.mxu0 %v742
      %761 = vmatpush.bf16.msra.mxu0 %v740
      %762 = vmatpush.bf16.msra.mxu0 %v738
      %763 = vmatpush.bf16.msra.mxu0 %v736
      %764 = vmatmul.bf16.gmra.mxu0 %v754
      %v765 = vpop.f32.mrf.mxu0
      %v766 = vadd.f32 %v708, %v765
      %v767 = vpop.f32.mrf.mxu0
      %v768 = vadd.f32 %v708, %v767
      %769 = vdwg.mxu0
      %770 = vmatpush.bf16.msra.mxu0 0
      %771 = vmatpush.bf16.msra.mxu0 0
      %772 = vmatpush.bf16.msra.mxu0 0
      %773 = vmatpush.bf16.msra.mxu0 0
      %774 = vmatpush.bf16.msra.mxu0 %v743
      %775 = vmatpush.bf16.msra.mxu0 %v741
      %776 = vmatpush.bf16.msra.mxu0 %v739
      %777 = vmatpush.bf16.msra.mxu0 %v737
      %778 = vmatmul.bf16.gmra.mxu0 %v754
      %v779 = vpop.f32.mrf.mxu0
      %v780 = vadd.f32 %v709, %v779
      %v781 = vpop.f32.mrf.mxu0
      %v782 = vadd.f32 %v709, %v781
      %783 = vdwg.mxu0
      %786 = vrot.lane.b32.xlu0 %v766, 120
      %v787 = vpop.permute.xlu0 %786
      %788 = vrot.lane.b32.xlu0 %v768, 120
      %v789 = vpop.permute.xlu0 %788
      %790 = vrot.lane.b32.xlu0 %v766, 112
      %v791 = vpop.permute.xlu0 %790
      %792 = vrot.lane.b32.xlu0 %v768, 112
      %v793 = vpop.permute.xlu0 %792
      %794 = vrot.lane.b32.xlu0 %v766, 104
      %v795 = vpop.permute.xlu0 %794
      %796 = vrot.lane.b32.xlu0 %v768, 104
      %v797 = vpop.permute.xlu0 %796
      %798 = vrot.lane.b32.xlu0 %v766, 96
      %v799 = vpop.permute.xlu0 %798
      %800 = vrot.lane.b32.xlu0 %v768, 96
      %v801 = vpop.permute.xlu0 %800
      %802 = vrot.lane.b32.xlu0 %v766, 88
      %v803 = vpop.permute.xlu0 %802
      %804 = vrot.lane.b32.xlu0 %v768, 88
      %v805 = vpop.permute.xlu0 %804
      %806 = vrot.lane.b32.xlu0 %v766, 80
      %v807 = vpop.permute.xlu0 %806
      %808 = vrot.lane.b32.xlu0 %v768, 80
      %v809 = vpop.permute.xlu0 %808
      %810 = vrot.lane.b32.xlu0 %v766, 72
      %v811 = vpop.permute.xlu0 %810
      %812 = vrot.lane.b32.xlu0 %v768, 72
      %v813 = vpop.permute.xlu0 %812
      %816 = vrot.lane.b32.xlu0 %v780, 120
      %v817 = vpop.permute.xlu0 %816
      %818 = vrot.lane.b32.xlu0 %v782, 120
      %v819 = vpop.permute.xlu0 %818
      %822 = vrot.lane.b32.xlu0 %v780, 112
      %v823 = vpop.permute.xlu0 %822
      %824 = vrot.lane.b32.xlu0 %v782, 112
      %v825 = vpop.permute.xlu0 %824
      %828 = vrot.lane.b32.xlu0 %v780, 104
      %v829 = vpop.permute.xlu0 %828
      %830 = vrot.lane.b32.xlu0 %v782, 104
      %v831 = vpop.permute.xlu0 %830
      %834 = vrot.lane.b32.xlu0 %v780, 96
      %v835 = vpop.permute.xlu0 %834
      %836 = vrot.lane.b32.xlu0 %v782, 96
      %v837 = vpop.permute.xlu0 %836
      %840 = vrot.lane.b32.xlu0 %v780, 88
      %v841 = vpop.permute.xlu0 %840
      %842 = vrot.lane.b32.xlu0 %v782, 88
      %v843 = vpop.permute.xlu0 %842
      %846 = vrot.lane.b32.xlu0 %v780, 80
      %v847 = vpop.permute.xlu0 %846
      %848 = vrot.lane.b32.xlu0 %v782, 80
      %v849 = vpop.permute.xlu0 %848
      %852 = vrot.lane.b32.xlu0 %v780, 72
      %v853 = vpop.permute.xlu0 %852
      %854 = vrot.lane.b32.xlu0 %v782, 72
      %v855 = vpop.permute.xlu0 %854
      %v858 = vld [vmem:[%s1] sm:$0xff]
      %v859 = vld [vmem:[%s1 + $0x8] sm:$0xff]
      %860 = vrot.lane.b32.xlu0 %v766, 64
      %v861 = vpop.permute.xlu0 %860
      %862 = vrot.lane.b32.xlu0 %v768, 64
      %v863 = vpop.permute.xlu0 %862
      %vm864 = vcmask 64512
      %v865 = vsel %vm864, %v766, 0
      %v867 = vsel %vm864, %v768, 0
      %v869 = vsel %vm864, %v861, 0
      %v871 = vsel %vm864, %v863, 0
      %873 = vmatpush.xpose.msra.mxu0 0.0
      %874 = vmatpush.xpose.msra.mxu0 0.0
      %875 = vmatpush.xpose.msra.mxu0 0.0
      %876 = vmatpush.xpose.msra.mxu0 0.0
      %877 = vmatpush.xpose.msra.mxu0 0.0
      %878 = vmatpush.xpose.msra.mxu0 0.0
      %879 = vmatpush.xpose.msra.mxu0 0.0
      %880 = vmatpush.xpose.msra.mxu0 0.0
      %881 = vmatpush.xpose.msra.mxu0 0.0
      %882 = vmatpush.xpose.msra.mxu0 0.0
      %883 = vmatpush.xpose.msra.mxu0 0.0
      %884 = vmatpush.xpose.msra.mxu0 0.0
      %885 = vmatpush.xpose.msra.mxu0 0.0
      %886 = vmatpush.xpose.msra.mxu0 0.0
      %887 = vmatpush.xpose.msra.mxu0 %v871
      %888 = vmatpush.xpose.msra.mxu0 %v869
      %889 = vmatmul.f32.gmra.mxu0 %v865
      %v890 = vpop.f32.mrf.mxu0
      %v891 = vadd.f32 %v858, %v890
      %892 = vmatmul.f32.gmra.mxu0 %v867
      %v893 = vpop.f32.mrf.mxu0
      %v894 = vadd.f32 %v859, %v893
      %895 = vdwg.mxu0
      %896 = vrot.lane.b32.xlu0 %v787, 64
      %v897 = vpop.permute.xlu0 %896
      %898 = vrot.lane.b32.xlu0 %v789, 64
      %v899 = vpop.permute.xlu0 %898
      %v900 = vsel %vm864, %v787, 0
      %v902 = vsel %vm864, %v789, 0
      %v904 = vsel %vm864, %v897, 0
      %v906 = vsel %vm864, %v899, 0
      %908 = vmatpush.xpose.msra.mxu0 0.0
      %909 = vmatpush.xpose.msra.mxu0 0.0
      %910 = vmatpush.xpose.msra.mxu0 0.0
      %911 = vmatpush.xpose.msra.mxu0 0.0
      %912 = vmatpush.xpose.msra.mxu0 0.0
      %913 = vmatpush.xpose.msra.mxu0 0.0
      %914 = vmatpush.xpose.msra.mxu0 0.0
      %915 = vmatpush.xpose.msra.mxu0 0.0
      %916 = vmatpush.xpose.msra.mxu0 0.0
      %917 = vmatpush.xpose.msra.mxu0 0.0
      %918 = vmatpush.xpose.msra.mxu0 0.0
      %919 = vmatpush.xpose.msra.mxu0 0.0
      %920 = vmatpush.xpose.msra.mxu0 0.0
      %921 = vmatpush.xpose.msra.mxu0 0.0
      %922 = vmatpush.xpose.msra.mxu0 %v906
      %923 = vmatpush.xpose.msra.mxu0 %v904
      %924 = vmatmul.f32.gmra.mxu0 %v900
      %v925 = vpop.f32.mrf.mxu0
      %v926 = vadd.f32 %v858, %v925
      %927 = vmatmul.f32.gmra.mxu0 %v902
      %v928 = vpop.f32.mrf.mxu0
      %v929 = vadd.f32 %v859, %v928
      %930 = vdwg.mxu0
      %931 = vrot.lane.b32.xlu0 %v791, 64
      %v932 = vpop.permute.xlu0 %931
      %933 = vrot.lane.b32.xlu0 %v793, 64
      %v934 = vpop.permute.xlu0 %933
      %v935 = vsel %vm864, %v791, 0
      %v937 = vsel %vm864, %v793, 0
      %v939 = vsel %vm864, %v932, 0
      %v941 = vsel %vm864, %v934, 0
      %943 = vmatpush.xpose.msra.mxu0 0.0
      %944 = vmatpush.xpose.msra.mxu0 0.0
      %945 = vmatpush.xpose.msra.mxu0 0.0
      %946 = vmatpush.xpose.msra.mxu0 0.0
      %947 = vmatpush.xpose.msra.mxu0 0.0
      %948 = vmatpush.xpose.msra.mxu0 0.0
      %949 = vmatpush.xpose.msra.mxu0 0.0
      %950 = vmatpush.xpose.msra.mxu0 0.0
      %951 = vmatpush.xpose.msra.mxu0 0.0
      %952 = vmatpush.xpose.msra.mxu0 0.0
      %953 = vmatpush.xpose.msra.mxu0 0.0
      %954 = vmatpush.xpose.msra.mxu0 0.0
      %955 = vmatpush.xpose.msra.mxu0 0.0
      %956 = vmatpush.xpose.msra.mxu0 0.0
      %957 = vmatpush.xpose.msra.mxu0 %v941
      %958 = vmatpush.xpose.msra.mxu0 %v939
      %959 = vmatmul.f32.gmra.mxu0 %v935
      %v960 = vpop.f32.mrf.mxu0
      %v961 = vadd.f32 %v858, %v960
      %962 = vmatmul.f32.gmra.mxu0 %v937
      %v963 = vpop.f32.mrf.mxu0
      %v964 = vadd.f32 %v859, %v963
      %965 = vdwg.mxu0
      %966 = vrot.lane.b32.xlu0 %v795, 64
      %v967 = vpop.permute.xlu0 %966
      %968 = vrot.lane.b32.xlu0 %v797, 64
      %v969 = vpop.permute.xlu0 %968
      %v970 = vsel %vm864, %v795, 0
      %v972 = vsel %vm864, %v797, 0
      %v974 = vsel %vm864, %v967, 0
      %v976 = vsel %vm864, %v969, 0
      %978 = vmatpush.xpose.msra.mxu0 0.0
      %979 = vmatpush.xpose.msra.mxu0 0.0
      %980 = vmatpush.xpose.msra.mxu0 0.0
      %981 = vmatpush.xpose.msra.mxu0 0.0
      %982 = vmatpush.xpose.msra.mxu0 0.0
      %983 = vmatpush.xpose.msra.mxu0 0.0
      %984 = vmatpush.xpose.msra.mxu0 0.0
      %985 = vmatpush.xpose.msra.mxu0 0.0
      %986 = vmatpush.xpose.msra.mxu0 0.0
      %987 = vmatpush.xpose.msra.mxu0 0.0
      %988 = vmatpush.xpose.msra.mxu0 0.0
      %989 = vmatpush.xpose.msra.mxu0 0.0
      %990 = vmatpush.xpose.msra.mxu0 0.0
      %991 = vmatpush.xpose.msra.mxu0 0.0
      %992 = vmatpush.xpose.msra.mxu0 %v976
      %993 = vmatpush.xpose.msra.mxu0 %v974
      %994 = vmatmul.f32.gmra.mxu0 %v970
      %v995 = vpop.f32.mrf.mxu0
      %v996 = vadd.f32 %v858, %v995
      %997 = vmatmul.f32.gmra.mxu0 %v972
      %v998 = vpop.f32.mrf.mxu0
      %v999 = vadd.f32 %v859, %v998
      %1000 = vdwg.mxu0
      %1001 = vrot.lane.b32.xlu0 %v799, 64
      %v1002 = vpop.permute.xlu0 %1001
      %1003 = vrot.lane.b32.xlu0 %v801, 64
      %v1004 = vpop.permute.xlu0 %1003
      %v1005 = vsel %vm864, %v799, 0
      %v1007 = vsel %vm864, %v801, 0
      %v1009 = vsel %vm864, %v1002, 0
      %v1011 = vsel %vm864, %v1004, 0
      %1013 = vmatpush.xpose.msra.mxu0 0.0
      %1014 = vmatpush.xpose.msra.mxu0 0.0
      %1015 = vmatpush.xpose.msra.mxu0 0.0
      %1016 = vmatpush.xpose.msra.mxu0 0.0
      %1017 = vmatpush.xpose.msra.mxu0 0.0
      %1018 = vmatpush.xpose.msra.mxu0 0.0
      %1019 = vmatpush.xpose.msra.mxu0 0.0
      %1020 = vmatpush.xpose.msra.mxu0 0.0
      %1021 = vmatpush.xpose.msra.mxu0 0.0
      %1022 = vmatpush.xpose.msra.mxu0 0.0
      %1023 = vmatpush.xpose.msra.mxu0 0.0
      %1024 = vmatpush.xpose.msra.mxu0 0.0
      %1025 = vmatpush.xpose.msra.mxu0 0.0
      %1026 = vmatpush.xpose.msra.mxu0 0.0
      %1027 = vmatpush.xpose.msra.mxu0 %v1011
      %1028 = vmatpush.xpose.msra.mxu0 %v1009
      %1029 = vmatmul.f32.gmra.mxu0 %v1005
      %v1030 = vpop.f32.mrf.mxu0
      %v1031 = vadd.f32 %v858, %v1030
      %1032 = vmatmul.f32.gmra.mxu0 %v1007
      %v1033 = vpop.f32.mrf.mxu0
      %v1034 = vadd.f32 %v859, %v1033
      %1035 = vdwg.mxu0
      %1036 = vrot.lane.b32.xlu0 %v803, 64
      %v1037 = vpop.permute.xlu0 %1036
      %1038 = vrot.lane.b32.xlu0 %v805, 64
      %v1039 = vpop.permute.xlu0 %1038
      %v1040 = vsel %vm864, %v803, 0
      %v1042 = vsel %vm864, %v805, 0
      %v1044 = vsel %vm864, %v1037, 0
      %v1046 = vsel %vm864, %v1039, 0
      %1048 = vmatpush.xpose.msra.mxu0 0.0
      %1049 = vmatpush.xpose.msra.mxu0 0.0
      %1050 = vmatpush.xpose.msra.mxu0 0.0
      %1051 = vmatpush.xpose.msra.mxu0 0.0
      %1052 = vmatpush.xpose.msra.mxu0 0.0
      %1053 = vmatpush.xpose.msra.mxu0 0.0
      %1054 = vmatpush.xpose.msra.mxu0 0.0
      %1055 = vmatpush.xpose.msra.mxu0 0.0
      %1056 = vmatpush.xpose.msra.mxu0 0.0
      %1057 = vmatpush.xpose.msra.mxu0 0.0
      %1058 = vmatpush.xpose.msra.mxu0 0.0
      %1059 = vmatpush.xpose.msra.mxu0 0.0
      %1060 = vmatpush.xpose.msra.mxu0 0.0
      %1061 = vmatpush.xpose.msra.mxu0 0.0
      %1062 = vmatpush.xpose.msra.mxu0 %v1046
      %1063 = vmatpush.xpose.msra.mxu0 %v1044
      %1064 = vmatmul.f32.gmra.mxu0 %v1040
      %v1065 = vpop.f32.mrf.mxu0
      %v1066 = vadd.f32 %v858, %v1065
      %1067 = vmatmul.f32.gmra.mxu0 %v1042
      %v1068 = vpop.f32.mrf.mxu0
      %v1069 = vadd.f32 %v859, %v1068
      %1070 = vdwg.mxu0
      %1071 = vrot.lane.b32.xlu0 %v807, 64
      %v1072 = vpop.permute.xlu0 %1071
      %1073 = vrot.lane.b32.xlu0 %v809, 64
      %v1074 = vpop.permute.xlu0 %1073
      %v1075 = vsel %vm864, %v807, 0
      %v1077 = vsel %vm864, %v809, 0
      %v1079 = vsel %vm864, %v1072, 0
      %v1081 = vsel %vm864, %v1074, 0
      %1083 = vmatpush.xpose.msra.mxu0 0.0
      %1084 = vmatpush.xpose.msra.mxu0 0.0
      %1085 = vmatpush.xpose.msra.mxu0 0.0
      %1086 = vmatpush.xpose.msra.mxu0 0.0
      %1087 = vmatpush.xpose.msra.mxu0 0.0
      %1088 = vmatpush.xpose.msra.mxu0 0.0
      %1089 = vmatpush.xpose.msra.mxu0 0.0
      %1090 = vmatpush.xpose.msra.mxu0 0.0
      %1091 = vmatpush.xpose.msra.mxu0 0.0
      %1092 = vmatpush.xpose.msra.mxu0 0.0
      %1093 = vmatpush.xpose.msra.mxu0 0.0
      %1094 = vmatpush.xpose.msra.mxu0 0.0
      %1095 = vmatpush.xpose.msra.mxu0 0.0
      %1096 = vmatpush.xpose.msra.mxu0 0.0
      %1097 = vmatpush.xpose.msra.mxu0 %v1081
      %1098 = vmatpush.xpose.msra.mxu0 %v1079
      %1099 = vmatmul.f32.gmra.mxu0 %v1075
      %v1100 = vpop.f32.mrf.mxu0
      %v1101 = vadd.f32 %v858, %v1100
      %1102 = vmatmul.f32.gmra.mxu0 %v1077
      %v1103 = vpop.f32.mrf.mxu0
      %v1104 = vadd.f32 %v859, %v1103
      %1105 = vdwg.mxu0
      %1106 = vrot.lane.b32.xlu0 %v811, 64
      %v1107 = vpop.permute.xlu0 %1106
      %1108 = vrot.lane.b32.xlu0 %v813, 64
      %v1109 = vpop.permute.xlu0 %1108
      %v1110 = vsel %vm864, %v811, 0
      %v1112 = vsel %vm864, %v813, 0
      %v1114 = vsel %vm864, %v1107, 0
      %v1116 = vsel %vm864, %v1109, 0
      %1118 = vmatpush.xpose.msra.mxu0 0.0
      %1119 = vmatpush.xpose.msra.mxu0 0.0
      %1120 = vmatpush.xpose.msra.mxu0 0.0
      %1121 = vmatpush.xpose.msra.mxu0 0.0
      %1122 = vmatpush.xpose.msra.mxu0 0.0
      %1123 = vmatpush.xpose.msra.mxu0 0.0
      %1124 = vmatpush.xpose.msra.mxu0 0.0
      %1125 = vmatpush.xpose.msra.mxu0 0.0
      %1126 = vmatpush.xpose.msra.mxu0 0.0
      %1127 = vmatpush.xpose.msra.mxu0 0.0
      %1128 = vmatpush.xpose.msra.mxu0 0.0
      %1129 = vmatpush.xpose.msra.mxu0 0.0
      %1130 = vmatpush.xpose.msra.mxu0 0.0
      %1131 = vmatpush.xpose.msra.mxu0 0.0
      %1132 = vmatpush.xpose.msra.mxu0 %v1116
      %1133 = vmatpush.xpose.msra.mxu0 %v1114
      %1134 = vmatmul.f32.gmra.mxu0 %v1110
      %v1135 = vpop.f32.mrf.mxu0
      %v1136 = vadd.f32 %v858, %v1135
      %1137 = vmatmul.f32.gmra.mxu0 %v1112
      %v1138 = vpop.f32.mrf.mxu0
      %v1139 = vadd.f32 %v859, %v1138
      %1140 = vdwg.mxu0
      %vm1141 = vcmask 130048
      %v1142 = vsel %vm1141, %v891, -inf
      %1143 = vmax.xlane.f32.xlu0 %v1142
      %v1144 = vpop.xlane.xlu0 %1143
      %v1145 = vsel %vm1141, %v894, -inf
      %1146 = vmax.xlane.f32.xlu0 %v1145
      %v1147 = vpop.xlane.xlu0 %1146
      %v1148 = vsel %vm1141, %v926, -inf
      %1149 = vmax.xlane.f32.xlu0 %v1148
      %v1150 = vpop.xlane.xlu0 %1149
      %v1151 = vsel %vm1141, %v929, -inf
      %1152 = vmax.xlane.f32.xlu0 %v1151
      %v1153 = vpop.xlane.xlu0 %1152
      %v1154 = vsel %vm1141, %v961, -inf
      %1155 = vmax.xlane.f32.xlu0 %v1154
      %v1156 = vpop.xlane.xlu0 %1155
      %v1157 = vsel %vm1141, %v964, -inf
      %1158 = vmax.xlane.f32.xlu0 %v1157
      %v1159 = vpop.xlane.xlu0 %1158
      %v1160 = vsel %vm1141, %v996, -inf
      %1161 = vmax.xlane.f32.xlu0 %v1160
      %v1162 = vpop.xlane.xlu0 %1161
      %v1163 = vsel %vm1141, %v999, -inf
      %1164 = vmax.xlane.f32.xlu0 %v1163
      %v1165 = vpop.xlane.xlu0 %1164
      %v1166 = vsel %vm1141, %v1031, -inf
      %1167 = vmax.xlane.f32.xlu0 %v1166
      %v1168 = vpop.xlane.xlu0 %1167
      %v1169 = vsel %vm1141, %v1034, -inf
      %1170 = vmax.xlane.f32.xlu0 %v1169
      %v1171 = vpop.xlane.xlu0 %1170
      %v1172 = vsel %vm1141, %v1066, -inf
      %1173 = vmax.xlane.f32.xlu0 %v1172
      %v1174 = vpop.xlane.xlu0 %1173
      %v1175 = vsel %vm1141, %v1069, -inf
      %1176 = vmax.xlane.f32.xlu0 %v1175
      %v1177 = vpop.xlane.xlu0 %1176
      %v1178 = vsel %vm1141, %v1101, -inf
      %1179 = vmax.xlane.f32.xlu0 %v1178
      %v1180 = vpop.xlane.xlu0 %1179
      %v1181 = vsel %vm1141, %v1104, -inf
      %1182 = vmax.xlane.f32.xlu0 %v1181
      %v1183 = vpop.xlane.xlu0 %1182
      %v1184 = vsel %vm1141, %v1136, -inf
      %1185 = vmax.xlane.f32.xlu0 %v1184
      %v1186 = vpop.xlane.xlu0 %1185
      %v1187 = vsel %vm1141, %v1139, -inf
      %1188 = vmax.xlane.f32.xlu0 %v1187
      %v1189 = vpop.xlane.xlu0 %1188
      %v1190 = vsub.f32 %v891, %v1144
      %v1191 = vsub.f32 %v894, %v1147
      %v1192 = vsub.f32 %v926, %v1150
      %v1193 = vsub.f32 %v929, %v1153
      %v1194 = vsub.f32 %v961, %v1156
      %v1195 = vsub.f32 %v964, %v1159
      %v1196 = vsub.f32 %v996, %v1162
      %v1197 = vsub.f32 %v999, %v1165
      %v1198 = vsub.f32 %v1031, %v1168
      %v1199 = vsub.f32 %v1034, %v1171
      %v1200 = vsub.f32 %v1066, %v1174
      %v1201 = vsub.f32 %v1069, %v1177
      %v1202 = vsub.f32 %v1101, %v1180
      %v1203 = vsub.f32 %v1104, %v1183
      %v1204 = vsub.f32 %v1136, %v1186
      %v1205 = vsub.f32 %v1139, %v1189
      %v1206 = vmul.f32 %v1190, 1.442695
      %v1207 = vpow.pop %v1206
      %v1208 = vmul.f32 %v1191, 1.442695
      %v1209 = vpow.pop %v1208
      %v1210 = vmul.f32 %v1192, 1.442695
      %v1211 = vpow.pop %v1210
      %v1212 = vmul.f32 %v1193, 1.442695
      %v1213 = vpow.pop %v1212
      %v1214 = vmul.f32 %v1194, 1.442695
      %v1215 = vpow.pop %v1214
      %v1216 = vmul.f32 %v1195, 1.442695
      %v1217 = vpow.pop %v1216
      %v1218 = vmul.f32 %v1196, 1.442695
      %v1219 = vpow.pop %v1218
      %v1220 = vmul.f32 %v1197, 1.442695
      %v1221 = vpow.pop %v1220
      %v1222 = vmul.f32 %v1198, 1.442695
      %v1223 = vpow.pop %v1222
      %v1224 = vmul.f32 %v1199, 1.442695
      %v1225 = vpow.pop %v1224
      %v1226 = vmul.f32 %v1200, 1.442695
      %v1227 = vpow.pop %v1226
      %v1228 = vmul.f32 %v1201, 1.442695
      %v1229 = vpow.pop %v1228
      %v1230 = vmul.f32 %v1202, 1.442695
      %v1231 = vpow.pop %v1230
      %v1232 = vmul.f32 %v1203, 1.442695
      %v1233 = vpow.pop %v1232
      %v1234 = vmul.f32 %v1204, 1.442695
      %v1235 = vpow.pop %v1234
      %v1236 = vmul.f32 %v1205, 1.442695
      %v1237 = vpow.pop %v1236
      %v1238 = vsel %vm1141, %v1207, 0.0
      %1239 = vadd.xlane.f32.xlu0 %v1238
      %v1240 = vpop.xlane.xlu0 %1239
      %v1241 = vsel %vm1141, %v1209, 0.0
      %1242 = vadd.xlane.f32.xlu0 %v1241
      %v1243 = vpop.xlane.xlu0 %1242
      %v1244 = vsel %vm1141, %v1211, 0.0
      %1245 = vadd.xlane.f32.xlu0 %v1244
      %v1246 = vpop.xlane.xlu0 %1245
      %v1247 = vsel %vm1141, %v1213, 0.0
      %1248 = vadd.xlane.f32.xlu0 %v1247
      %v1249 = vpop.xlane.xlu0 %1248
      %v1250 = vsel %vm1141, %v1215, 0.0
      %1251 = vadd.xlane.f32.xlu0 %v1250
      %v1252 = vpop.xlane.xlu0 %1251
      %v1253 = vsel %vm1141, %v1217, 0.0
      %1254 = vadd.xlane.f32.xlu0 %v1253
      %v1255 = vpop.xlane.xlu0 %1254
      %v1256 = vsel %vm1141, %v1219, 0.0
      %1257 = vadd.xlane.f32.xlu0 %v1256
      %v1258 = vpop.xlane.xlu0 %1257
      %v1259 = vsel %vm1141, %v1221, 0.0
      %1260 = vadd.xlane.f32.xlu0 %v1259
      %v1261 = vpop.xlane.xlu0 %1260
      %v1262 = vsel %vm1141, %v1223, 0.0
      %1263 = vadd.xlane.f32.xlu0 %v1262
      %v1264 = vpop.xlane.xlu0 %1263
      %v1265 = vsel %vm1141, %v1225, 0.0
      %1266 = vadd.xlane.f32.xlu0 %v1265
      %v1267 = vpop.xlane.xlu0 %1266
      %v1268 = vsel %vm1141, %v1227, 0.0
      %1269 = vadd.xlane.f32.xlu0 %v1268
      %v1270 = vpop.xlane.xlu0 %1269
      %v1271 = vsel %vm1141, %v1229, 0.0
      %1272 = vadd.xlane.f32.xlu0 %v1271
      %v1273 = vpop.xlane.xlu0 %1272
      %v1274 = vsel %vm1141, %v1231, 0.0
      %1275 = vadd.xlane.f32.xlu0 %v1274
      %v1276 = vpop.xlane.xlu0 %1275
      %v1277 = vsel %vm1141, %v1233, 0.0
      %1278 = vadd.xlane.f32.xlu0 %v1277
      %v1279 = vpop.xlane.xlu0 %1278
      %v1280 = vsel %vm1141, %v1235, 0.0
      %1281 = vadd.xlane.f32.xlu0 %v1280
      %v1282 = vpop.xlane.xlu0 %1281
      %v1283 = vsel %vm1141, %v1237, 0.0
      %1284 = vadd.xlane.f32.xlu0 %v1283
      %v1285 = vpop.xlane.xlu0 %1284
      %v1286 = vrcp.pop %v1240
      %v1287 = vrcp.pop %v1243
      %v1288 = vrcp.pop %v1246
      %v1289 = vrcp.pop %v1249
      %v1290 = vrcp.pop %v1252
      %v1291 = vrcp.pop %v1255
      %v1292 = vrcp.pop %v1258
      %v1293 = vrcp.pop %v1261
      %v1294 = vrcp.pop %v1264
      %v1295 = vrcp.pop %v1267
      %v1296 = vrcp.pop %v1270
      %v1297 = vrcp.pop %v1273
      %v1298 = vrcp.pop %v1276
      %v1299 = vrcp.pop %v1279
      %v1300 = vrcp.pop %v1282
      %v1301 = vrcp.pop %v1285
      %v1302 = vmul.f32 %v1207, %v1286
      %v1303 = vmul.f32 %v1209, %v1287
      %v1304 = vmul.f32 %v1211, %v1288
      %v1305 = vmul.f32 %v1213, %v1289
      %v1306 = vmul.f32 %v1215, %v1290
      %v1307 = vmul.f32 %v1217, %v1291
      %v1308 = vmul.f32 %v1219, %v1292
      %v1309 = vmul.f32 %v1221, %v1293
      %v1310 = vmul.f32 %v1223, %v1294
      %v1311 = vmul.f32 %v1225, %v1295
      %v1312 = vmul.f32 %v1227, %v1296
      %v1313 = vmul.f32 %v1229, %v1297
      %v1314 = vmul.f32 %v1231, %v1298
      %v1315 = vmul.f32 %v1233, %v1299
      %v1316 = vmul.f32 %v1235, %v1300
      %v1317 = vmul.f32 %v1237, %v1301
      %v1319 = vsel %vm1141, %v1302, 0
      %v1322 = vsel %vm1141, %v1303, 0
      %1324 = vmatpush.msra.mxu0 0.0
      %1325 = vmatpush.msra.mxu0 0.0
      %1326 = vmatpush.msra.mxu0 0.0
      %1327 = vmatpush.msra.mxu0 0.0
      %1328 = vmatpush.msra.mxu0 0.0
      %1329 = vmatpush.msra.mxu0 0.0
      %1330 = vmatpush.msra.mxu0 0.0
      %1331 = vmatpush.msra.mxu0 0.0
      %1332 = vmatpush.msra.mxu0 0.0
      %1333 = vmatpush.msra.mxu0 0.0
      %1334 = vmatpush.msra.mxu0 0.0
      %1335 = vmatpush.msra.mxu0 0.0
      %1336 = vmatpush.msra.mxu0 0.0
      %1337 = vmatpush.msra.mxu0 0.0
      %1338 = vmatpush.msra.mxu0 %v782
      %1339 = vmatpush.msra.mxu0 %v780
      %1340 = vmatmul.f32.gmra.mxu0 %v1319
      %v1341 = vpop.f32.mrf.mxu0
      %v1342 = vadd.f32 0.0, %v1341
      %1343 = vmatmul.f32.gmra.mxu0 %v1322
      %v1344 = vpop.f32.mrf.mxu0
      %v1345 = vadd.f32 0.0, %v1344
      %1346 = vdwg.mxu0
      %v1348 = vsel %vm1141, %v1304, 0
      %v1351 = vsel %vm1141, %v1305, 0
      %1353 = vmatpush.msra.mxu0 0.0
      %1354 = vmatpush.msra.mxu0 0.0
      %1355 = vmatpush.msra.mxu0 0.0
      %1356 = vmatpush.msra.mxu0 0.0
      %1357 = vmatpush.msra.mxu0 0.0
      %1358 = vmatpush.msra.mxu0 0.0
      %1359 = vmatpush.msra.mxu0 0.0
      %1360 = vmatpush.msra.mxu0 0.0
      %1361 = vmatpush.msra.mxu0 0.0
      %1362 = vmatpush.msra.mxu0 0.0
      %1363 = vmatpush.msra.mxu0 0.0
      %1364 = vmatpush.msra.mxu0 0.0
      %1365 = vmatpush.msra.mxu0 0.0
      %1366 = vmatpush.msra.mxu0 0.0
      %1367 = vmatpush.msra.mxu0 %v819
      %1368 = vmatpush.msra.mxu0 %v817
      %1369 = vmatmul.f32.gmra.mxu0 %v1348
      %v1370 = vpop.f32.mrf.mxu0
      %v1371 = vadd.f32 0.0, %v1370
      %1372 = vmatmul.f32.gmra.mxu0 %v1351
      %v1373 = vpop.f32.mrf.mxu0
      %v1374 = vadd.f32 0.0, %v1373
      %1375 = vdwg.mxu0
      %v1377 = vsel %vm1141, %v1306, 0
      %v1380 = vsel %vm1141, %v1307, 0
      %1382 = vmatpush.msra.mxu0 0.0
      %1383 = vmatpush.msra.mxu0 0.0
      %1384 = vmatpush.msra.mxu0 0.0
      %1385 = vmatpush.msra.mxu0 0.0
      %1386 = vmatpush.msra.mxu0 0.0
      %1387 = vmatpush.msra.mxu0 0.0
      %1388 = vmatpush.msra.mxu0 0.0
      %1389 = vmatpush.msra.mxu0 0.0
      %1390 = vmatpush.msra.mxu0 0.0
      %1391 = vmatpush.msra.mxu0 0.0
      %1392 = vmatpush.msra.mxu0 0.0
      %1393 = vmatpush.msra.mxu0 0.0
      %1394 = vmatpush.msra.mxu0 0.0
      %1395 = vmatpush.msra.mxu0 0.0
      %1396 = vmatpush.msra.mxu0 %v825
      %1397 = vmatpush.msra.mxu0 %v823
      %1398 = vmatmul.f32.gmra.mxu0 %v1377
      %v1399 = vpop.f32.mrf.mxu0
      %v1400 = vadd.f32 0.0, %v1399
      %1401 = vmatmul.f32.gmra.mxu0 %v1380
      %v1402 = vpop.f32.mrf.mxu0
      %v1403 = vadd.f32 0.0, %v1402
      %1404 = vdwg.mxu0
      %v1406 = vsel %vm1141, %v1308, 0
      %v1409 = vsel %vm1141, %v1309, 0
      %1411 = vmatpush.msra.mxu0 0.0
      %1412 = vmatpush.msra.mxu0 0.0
      %1413 = vmatpush.msra.mxu0 0.0
      %1414 = vmatpush.msra.mxu0 0.0
      %1415 = vmatpush.msra.mxu0 0.0
      %1416 = vmatpush.msra.mxu0 0.0
      %1417 = vmatpush.msra.mxu0 0.0
      %1418 = vmatpush.msra.mxu0 0.0
      %1419 = vmatpush.msra.mxu0 0.0
      %1420 = vmatpush.msra.mxu0 0.0
      %1421 = vmatpush.msra.mxu0 0.0
      %1422 = vmatpush.msra.mxu0 0.0
      %1423 = vmatpush.msra.mxu0 0.0
      %1424 = vmatpush.msra.mxu0 0.0
      %1425 = vmatpush.msra.mxu0 %v831
      %1426 = vmatpush.msra.mxu0 %v829
      %1427 = vmatmul.f32.gmra.mxu0 %v1406
      %v1428 = vpop.f32.mrf.mxu0
      %v1429 = vadd.f32 0.0, %v1428
      %1430 = vmatmul.f32.gmra.mxu0 %v1409
      %v1431 = vpop.f32.mrf.mxu0
      %v1432 = vadd.f32 0.0, %v1431
      %1433 = vdwg.mxu0
      %v1435 = vsel %vm1141, %v1310, 0
      %v1438 = vsel %vm1141, %v1311, 0
      %1440 = vmatpush.msra.mxu0 0.0
      %1441 = vmatpush.msra.mxu0 0.0
      %1442 = vmatpush.msra.mxu0 0.0
      %1443 = vmatpush.msra.mxu0 0.0
      %1444 = vmatpush.msra.mxu0 0.0
      %1445 = vmatpush.msra.mxu0 0.0
      %1446 = vmatpush.msra.mxu0 0.0
      %1447 = vmatpush.msra.mxu0 0.0
      %1448 = vmatpush.msra.mxu0 0.0
      %1449 = vmatpush.msra.mxu0 0.0
      %1450 = vmatpush.msra.mxu0 0.0
      %1451 = vmatpush.msra.mxu0 0.0
      %1452 = vmatpush.msra.mxu0 0.0
      %1453 = vmatpush.msra.mxu0 0.0
      %1454 = vmatpush.msra.mxu0 %v837
      %1455 = vmatpush.msra.mxu0 %v835
      %1456 = vmatmul.f32.gmra.mxu0 %v1435
      %v1457 = vpop.f32.mrf.mxu0
      %v1458 = vadd.f32 0.0, %v1457
      %1459 = vmatmul.f32.gmra.mxu0 %v1438
      %v1460 = vpop.f32.mrf.mxu0
      %v1461 = vadd.f32 0.0, %v1460
      %1462 = vdwg.mxu0
      %v1464 = vsel %vm1141, %v1312, 0
      %v1467 = vsel %vm1141, %v1313, 0
      %1469 = vmatpush.msra.mxu0 0.0
      %1470 = vmatpush.msra.mxu0 0.0
      %1471 = vmatpush.msra.mxu0 0.0
      %1472 = vmatpush.msra.mxu0 0.0
      %1473 = vmatpush.msra.mxu0 0.0
      %1474 = vmatpush.msra.mxu0 0.0
      %1475 = vmatpush.msra.mxu0 0.0
      %1476 = vmatpush.msra.mxu0 0.0
      %1477 = vmatpush.msra.mxu0 0.0
      %1478 = vmatpush.msra.mxu0 0.0
      %1479 = vmatpush.msra.mxu0 0.0
      %1480 = vmatpush.msra.mxu0 0.0
      %1481 = vmatpush.msra.mxu0 0.0
      %1482 = vmatpush.msra.mxu0 0.0
      %1483 = vmatpush.msra.mxu0 %v843
      %1484 = vmatpush.msra.mxu0 %v841
      %1485 = vmatmul.f32.gmra.mxu0 %v1464
      %v1486 = vpop.f32.mrf.mxu0
      %v1487 = vadd.f32 0.0, %v1486
      %1488 = vmatmul.f32.gmra.mxu0 %v1467
      %v1489 = vpop.f32.mrf.mxu0
      %v1490 = vadd.f32 0.0, %v1489
      %1491 = vdwg.mxu0
      %v1493 = vsel %vm1141, %v1314, 0
      %v1496 = vsel %vm1141, %v1315, 0
      %1498 = vmatpush.msra.mxu0 0.0
      %1499 = vmatpush.msra.mxu0 0.0
      %1500 = vmatpush.msra.mxu0 0.0
      %1501 = vmatpush.msra.mxu0 0.0
      %1502 = vmatpush.msra.mxu0 0.0
      %1503 = vmatpush.msra.mxu0 0.0
      %1504 = vmatpush.msra.mxu0 0.0
      %1505 = vmatpush.msra.mxu0 0.0
      %1506 = vmatpush.msra.mxu0 0.0
      %1507 = vmatpush.msra.mxu0 0.0
      %1508 = vmatpush.msra.mxu0 0.0
      %1509 = vmatpush.msra.mxu0 0.0
      %1510 = vmatpush.msra.mxu0 0.0
      %1511 = vmatpush.msra.mxu0 0.0
      %1512 = vmatpush.msra.mxu0 %v849
      %1513 = vmatpush.msra.mxu0 %v847
      %1514 = vmatmul.f32.gmra.mxu0 %v1493
      %v1515 = vpop.f32.mrf.mxu0
      %v1516 = vadd.f32 0.0, %v1515
      %1517 = vmatmul.f32.gmra.mxu0 %v1496
      %v1518 = vpop.f32.mrf.mxu0
      %v1519 = vadd.f32 0.0, %v1518
      %1520 = vdwg.mxu0
      %v1522 = vsel %vm1141, %v1316, 0
      %v1525 = vsel %vm1141, %v1317, 0
      %1527 = vmatpush.msra.mxu0 0.0
      %1528 = vmatpush.msra.mxu0 0.0
      %1529 = vmatpush.msra.mxu0 0.0
      %1530 = vmatpush.msra.mxu0 0.0
      %1531 = vmatpush.msra.mxu0 0.0
      %1532 = vmatpush.msra.mxu0 0.0
      %1533 = vmatpush.msra.mxu0 0.0
      %1534 = vmatpush.msra.mxu0 0.0
      %1535 = vmatpush.msra.mxu0 0.0
      %1536 = vmatpush.msra.mxu0 0.0
      %1537 = vmatpush.msra.mxu0 0.0
      %1538 = vmatpush.msra.mxu0 0.0
      %1539 = vmatpush.msra.mxu0 0.0
      %1540 = vmatpush.msra.mxu0 0.0
      %1541 = vmatpush.msra.mxu0 %v855
      %1542 = vmatpush.msra.mxu0 %v853
      %1543 = vmatmul.f32.gmra.mxu0 %v1522
      %v1544 = vpop.f32.mrf.mxu0
      %v1545 = vadd.f32 0.0, %v1544
      %1546 = vmatmul.f32.gmra.mxu0 %v1525
      %v1547 = vpop.f32.mrf.mxu0
      %v1548 = vadd.f32 0.0, %v1547
      %1549 = vdwg.mxu0
      %1550 = vst.msk [vmem:[#allocation3] sm:$0xff] %vm864, %v1342
      %1551 = vst.msk [vmem:[#allocation3 + $0x8] sm:$0xff] %vm864, %v1345
      %1554 = vrot.lane.b32.xlu0 %v1371, 8
      %v1555 = vpop.permute.xlu0 %1554
      %1556 = vrot.lane.b32.xlu0 %v1374, 8
      %v1557 = vpop.permute.xlu0 %1556
      %vm1560 = vcmask 130112
      %1561 = vst.msk [vmem:[#allocation3] sm:$0xff] %vm1560, %v1555
      %1562 = vst.msk [vmem:[#allocation3 + $0x8] sm:$0xff] %vm1560, %v1557
      %1565 = vrot.lane.b32.xlu0 %v1400, 16
      %v1566 = vpop.permute.xlu0 %1565
      %1567 = vrot.lane.b32.xlu0 %v1403, 16
      %v1568 = vpop.permute.xlu0 %1567
      %vm1571 = vcmask 195712
      %1572 = vst.msk [vmem:[#allocation3] sm:$0xff] %vm1571, %v1566
      %1573 = vst.msk [vmem:[#allocation3 + $0x8] sm:$0xff] %vm1571, %v1568
      %1576 = vrot.lane.b32.xlu0 %v1429, 24
      %v1577 = vpop.permute.xlu0 %1576
      %1578 = vrot.lane.b32.xlu0 %v1432, 24
      %v1579 = vpop.permute.xlu0 %1578
      %vm1582 = vcmask 261312
      %1583 = vst.msk [vmem:[#allocation3] sm:$0xff] %vm1582, %v1577
      %1584 = vst.msk [vmem:[#allocation3 + $0x8] sm:$0xff] %vm1582, %v1579
      %1587 = vrot.lane.b32.xlu0 %v1458, 32
      %v1588 = vpop.permute.xlu0 %1587
      %1589 = vrot.lane.b32.xlu0 %v1461, 32
      %v1590 = vpop.permute.xlu0 %1589
      %vm1593 = vcmask 326912
      %1594 = vst.msk [vmem:[#allocation3] sm:$0xff] %vm1593, %v1588
      %1595 = vst.msk [vmem:[#allocation3 + $0x8] sm:$0xff] %vm1593, %v1590
      %1598 = vrot.lane.b32.xlu0 %v1487, 40
      %v1599 = vpop.permute.xlu0 %1598
      %1600 = vrot.lane.b32.xlu0 %v1490, 40
      %v1601 = vpop.permute.xlu0 %1600
      %vm1604 = vcmask 392512
      %1605 = vst.msk [vmem:[#allocation3] sm:$0xff] %vm1604, %v1599
      %1606 = vst.msk [vmem:[#allocation3 + $0x8] sm:$0xff] %vm1604, %v1601
      %1609 = vrot.lane.b32.xlu0 %v1516, 48
      %v1610 = vpop.permute.xlu0 %1609
      %1611 = vrot.lane.b32.xlu0 %v1519, 48
      %v1612 = vpop.permute.xlu0 %1611
      %vm1615 = vcmask 458112
      %1616 = vst.msk [vmem:[#allocation3] sm:$0xff] %vm1615, %v1610
      %1617 = vst.msk [vmem:[#allocation3 + $0x8] sm:$0xff] %vm1615, %v1612
      %1620 = vrot.lane.b32.xlu0 %v1545, 56
      %v1621 = vpop.permute.xlu0 %1620
      %1622 = vrot.lane.b32.xlu0 %v1548, 56
      %v1623 = vpop.permute.xlu0 %1622
      %vm1626 = vcmask 523712
      %1627 = vst.msk [vmem:[#allocation3] sm:$0xff] %vm1626, %v1621
      %1628 = vst.msk [vmem:[#allocation3 + $0x8] sm:$0xff] %vm1626, %v1623
      %v1629 = vld [vmem:[#allocation3] sm:$0xff]
      %v1630 = vld [vmem:[#allocation3 + $0x8] sm:$0xff]
      %v1631 = vpack.c.bf16 %v1630, %v1629
      %v1632 = vld [vmem:[%s652] sm:$0xf]
      %v1633 = vld [vmem:[%s652 + $0x4] sm:$0xf]
      %v1634 = vld [vmem:[%s652 + $0x8] sm:$0xf]
      %v1635 = vld [vmem:[%s652 + $0xc] sm:$0xf]
      %v1636 = vld [vmem:[%s652 + $0x10] sm:$0xf]
      %v1637 = vld [vmem:[%s652 + $0x14] sm:$0xf]
      %v1638 = vld [vmem:[%s652 + $0x18] sm:$0xf]
      %v1639 = vld [vmem:[%s652 + $0x1c] sm:$0xf]
      %v1640 = vld [vmem:[%s655] sm:$0x1]
      %v1642 = vperm.slane %v1640, 0
      %v1652 = vunpack.c.l.b16 %v1632
      %v1653 = vunpack.c.l.b16 %v1633
      %v1654 = vunpack.c.l.b16 %v1634
      %v1655 = vunpack.c.l.b16 %v1635
      %v1656 = vunpack.c.l.b16 %v1636
      %v1657 = vunpack.c.l.b16 %v1637
      %v1658 = vunpack.c.l.b16 %v1638
      %v1659 = vunpack.c.l.b16 %v1639
      %v1660 = vpack.c.b16 %v1653, %v1652
      %v1661 = vpack.c.b16 %v1655, %v1654
      %v1662 = vpack.c.b16 %v1657, %v1656
      %v1663 = vpack.c.b16 %v1659, %v1658
      %v1669 = vsel %vm752, %v1631, 0
      %1671 = vmatpush.bf16.msra.mxu0 0
      %1672 = vmatpush.bf16.msra.mxu0 0
      %1673 = vmatpush.bf16.msra.mxu0 0
      %1674 = vmatpush.bf16.msra.mxu0 0
      %1675 = vmatpush.bf16.msra.mxu0 %v1663
      %1676 = vmatpush.bf16.msra.mxu0 %v1662
      %1677 = vmatpush.bf16.msra.mxu0 %v1661
      %1678 = vmatpush.bf16.msra.mxu0 %v1660
      %1679 = vmatmul.bf16.gmra.mxu0 %v1669
      %v1680 = vpop.f32.mrf.mxu0
      %v1681 = vadd.f32 %v1642, %v1680
      %v1682 = vpop.f32.mrf.mxu0
      %v1683 = vadd.f32 %v1642, %v1682
      %1684 = vdwg.mxu0
      %v1685 = vadd.f32 %v695, %v1681
      %v1686 = vadd.f32 %v696, %v1683
      %v1687 = vsel %vm752, %v1685, 0.0
      %1688 = vadd.xlane.f32.xlu0 %v1687
      %v1689 = vpop.xlane.xlu0 %1688
      %v1690 = vsel %vm752, %v1686, 0.0
      %1691 = vadd.xlane.f32.xlu0 %v1690
      %v1692 = vpop.xlane.xlu0 %1691
      %v1693 = vrcp.pop 64.0
      %v1694 = vmul.f32 64.0, %v1693
      %v1695 = vsub.f32 1.0, %v1694
      %v1696 = vmul.f32 %v1693, %v1695
      %v1697 = vadd.f32 %v1693, %v1696
      %vm1698 = vweird.f32 %v1693
      %v1699 = vsel %vm1698, %v1693, %v1697
      %v1700 = vmul.f32 %v1689, %v1699
      %v1701 = vmul.f32 %v1692, %v1699
      %v1702 = vsub.f32 %v1685, %v1700
      %v1703 = vsub.f32 %v1686, %v1701
      %v1704 = vmul.f32 %v1702, %v1702
      %v1705 = vmul.f32 %v1703, %v1703
      %v1706 = vsel %vm752, %v1704, 0.0
      %1707 = vadd.xlane.f32.xlu0 %v1706
      %v1708 = vpop.xlane.xlu0 %1707
      %v1709 = vsel %vm752, %v1705, 0.0
      %1710 = vadd.xlane.f32.xlu0 %v1709
      %v1711 = vpop.xlane.xlu0 %1710
      %v1712 = vmul.f32 %v1708, %v1699
      %v1713 = vmul.f32 %v1711, %v1699
      %v1714 = vadd.f32 %v1712, 1e-05
      %v1715 = vadd.f32 %v1713, 1e-05
      %v1716 = vrsqrt.pop %v1714
      %v1717 = vmul.f32 %v1716, %v1714
      %v1718 = vmul.f32 %v1717, %v1716
      %v1719 = vmul.f32 0.5, %v1718
      %v1720 = vsub.f32 1.5, %v1719
      %v1721 = vmul.f32 %v1716, %v1720
      %vm1722 = vweird.f32 %v1714
      %vm1723 = vweird.f32 %v1716
      %vm1724 = vmor %vm1722, %vm1723
      %v1725 = vsel %vm1724, %v1716, %v1721
      %v1726 = vrsqrt.pop %v1715
      %v1727 = vmul.f32 %v1726, %v1715
      %v1728 = vmul.f32 %v1727, %v1726
      %v1729 = vmul.f32 0.5, %v1728
      %v1730 = vsub.f32 1.5, %v1729
      %v1731 = vmul.f32 %v1726, %v1730
      %vm1732 = vweird.f32 %v1715
      %vm1733 = vweird.f32 %v1726
      %vm1734 = vmor %vm1732, %vm1733
      %v1735 = vsel %vm1734, %v1726, %v1731
      %v1736 = vmul.f32 %v1702, %v1725
      %v1737 = vmul.f32 %v1703, %v1735
      %v1738 = vld [vmem:[%s658] sm:$0x1]
      %v1740 = vperm.slane %v1738, 0
      %v1742 = vmul.f32 %v1736, %v1740
      %v1743 = vmul.f32 %v1737, %v1740
      %v1744 = vld [vmem:[%s661] sm:$0x1]
      %v1746 = vperm.slane %v1744, 0
      %v1748 = vadd.f32 %v1742, %v1746
      %v1749 = vadd.f32 %v1743, %v1746
      %v1750 = vpack.c.bf16 %v1749, %v1748
      %v1751 = vld [vmem:[%s672] sm:$0xff]
      %v1752 = vld [vmem:[%s672 + $0x8] sm:$0xff]
      %v1753 = vld [vmem:[%s672 + $0x10] sm:$0xff]
      %v1754 = vld [vmem:[%s672 + $0x18] sm:$0xff]
      %v1755 = vld [vmem:[%s672 + $0x20] sm:$0xff]
      %v1756 = vld [vmem:[%s672 + $0x28] sm:$0xff]
      %v1757 = vld [vmem:[%s672 + $0x30] sm:$0xff]
      %v1758 = vld [vmem:[%s672 + $0x38] sm:$0xff]
      %v1759 = vld [vmem:[%s672 + $0x40] sm:$0xff]
      %v1760 = vld [vmem:[%s672 + $0x48] sm:$0xff]
      %v1761 = vld [vmem:[%s672 + $0x50] sm:$0xff]
      %v1762 = vld [vmem:[%s672 + $0x58] sm:$0xff]
      %v1763 = vld [vmem:[%s672 + $0x60] sm:$0xff]
      %v1764 = vld [vmem:[%s672 + $0x68] sm:$0xff]
      %v1765 = vld [vmem:[%s672 + $0x70] sm:$0xff]
      %v1766 = vld [vmem:[%s672 + $0x78] sm:$0xff]
      %v1767 = vld [vmem:[%s672 + $0x80] sm:$0xff]
      %v1768 = vld [vmem:[%s672 + $0x88] sm:$0xff]
      %v1769 = vld [vmem:[%s672 + $0x90] sm:$0xff]
      %v1770 = vld [vmem:[%s672 + $0x98] sm:$0xff]
      %v1771 = vld [vmem:[%s672 + $0xa0] sm:$0xff]
      %v1772 = vld [vmem:[%s672 + $0xa8] sm:$0xff]
      %v1773 = vld [vmem:[%s672 + $0xb0] sm:$0xff]
      %v1774 = vld [vmem:[%s672 + $0xb8] sm:$0xff]
      %v1775 = vld [vmem:[%s672 + $0xc0] sm:$0xff]
      %v1776 = vld [vmem:[%s672 + $0xc8] sm:$0xff]
      %v1777 = vld [vmem:[%s672 + $0xd0] sm:$0xff]
      %v1778 = vld [vmem:[%s672 + $0xd8] sm:$0xff]
      %v1779 = vld [vmem:[%s672 + $0xe0] sm:$0xff]
      %v1780 = vld [vmem:[%s672 + $0xe8] sm:$0xff]
      %v1781 = vld [vmem:[%s672 + $0xf0] sm:$0xff]
      %v1782 = vld [vmem:[%s672 + $0xf8] sm:$0xff]
      %v1783 = vld [vmem:[%s672 + $0x100] sm:$0xff]
      %v1784 = vld [vmem:[%s672 + $0x108] sm:$0xff]
      %v1785 = vld [vmem:[%s672 + $0x110] sm:$0xff]
      %v1786 = vld [vmem:[%s672 + $0x118] sm:$0xff]
      %v1787 = vld [vmem:[%s672 + $0x120] sm:$0xff]
      %v1788 = vld [vmem:[%s672 + $0x128] sm:$0xff]
      %v1789 = vld [vmem:[%s672 + $0x130] sm:$0xff]
      %v1790 = vld [vmem:[%s672 + $0x138] sm:$0xff]
      %v1791 = vld [vmem:[%s672 + $0x140] sm:$0xff]
      %v1792 = vld [vmem:[%s672 + $0x148] sm:$0xff]
      %v1793 = vld [vmem:[%s672 + $0x150] sm:$0xff]
      %v1794 = vld [vmem:[%s672 + $0x158] sm:$0xff]
      %v1795 = vld [vmem:[%s672 + $0x160] sm:$0xff]
      %v1796 = vld [vmem:[%s672 + $0x168] sm:$0xff]
      %v1797 = vld [vmem:[%s672 + $0x170] sm:$0xff]
      %v1798 = vld [vmem:[%s672 + $0x178] sm:$0xff]
      %v1799 = vld [vmem:[%s672 + $0x180] sm:$0xff]
      %v1800 = vld [vmem:[%s672 + $0x188] sm:$0xff]
      %v1801 = vld [vmem:[%s672 + $0x190] sm:$0xff]
      %v1802 = vld [vmem:[%s672 + $0x198] sm:$0xff]
      %v1803 = vld [vmem:[%s672 + $0x1a0] sm:$0xff]
      %v1804 = vld [vmem:[%s672 + $0x1a8] sm:$0xff]
      %v1805 = vld [vmem:[%s672 + $0x1b0] sm:$0xff]
      %v1806 = vld [vmem:[%s672 + $0x1b8] sm:$0xff]
      %v1807 = vld [vmem:[%s672 + $0x1c0] sm:$0xff]
      %v1808 = vld [vmem:[%s672 + $0x1c8] sm:$0xff]
      %v1809 = vld [vmem:[%s672 + $0x1d0] sm:$0xff]
      %v1810 = vld [vmem:[%s672 + $0x1d8] sm:$0xff]
      %v1811 = vld [vmem:[%s672 + $0x1e0] sm:$0xff]
      %v1812 = vld [vmem:[%s672 + $0x1e8] sm:$0xff]
      %v1813 = vld [vmem:[%s672 + $0x1f0] sm:$0xff]
      %v1814 = vld [vmem:[%s672 + $0x1f8] sm:$0xff]
      %v1815 = vld [vmem:[%s676] sm:$0xff]
      %v1816 = vld [vmem:[%s676 + $0x8] sm:$0xff]
      %v1819 = vperm.slane %v1815, 0
      %v1820 = vperm.slane %v1815, 1
      %v1821 = vperm.slane %v1815, 2
      %v1822 = vperm.slane %v1815, 3
      %v1823 = vperm.slane %v1815, 4
      %v1824 = vperm.slane %v1815, 5
      %v1825 = vperm.slane %v1815, 6
      %v1826 = vperm.slane %v1815, 7
      %v1827 = vperm.slane %v1816, 0
      %v1828 = vperm.slane %v1816, 1
      %v1829 = vperm.slane %v1816, 2
      %v1830 = vperm.slane %v1816, 3
      %v1831 = vperm.slane %v1816, 4
      %v1832 = vperm.slane %v1816, 5
      %v1833 = vperm.slane %v1816, 6
      %v1834 = vperm.slane %v1816, 7
      %v1915 = vunpack.c.l.b16 %v1751
      %v1916 = vunpack.c.h.b16 %v1751
      %v1917 = vunpack.c.l.b16 %v1752
      %v1918 = vunpack.c.h.b16 %v1752
      %v1919 = vunpack.c.l.b16 %v1753
      %v1920 = vunpack.c.h.b16 %v1753
      %v1921 = vunpack.c.l.b16 %v1754
      %v1922 = vunpack.c.h.b16 %v1754
      %v1923 = vunpack.c.l.b16 %v1755
      %v1924 = vunpack.c.h.b16 %v1755
      %v1925 = vunpack.c.l.b16 %v1756
      %v1926 = vunpack.c.h.b16 %v1756
      %v1927 = vunpack.c.l.b16 %v1757
      %v1928 = vunpack.c.h.b16 %v1757
      %v1929 = vunpack.c.l.b16 %v1758
      %v1930 = vunpack.c.h.b16 %v1758
      %v1931 = vunpack.c.l.b16 %v1759
      %v1932 = vunpack.c.h.b16 %v1759
      %v1933 = vunpack.c.l.b16 %v1760
      %v1934 = vunpack.c.h.b16 %v1760
      %v1935 = vunpack.c.l.b16 %v1761
      %v1936 = vunpack.c.h.b16 %v1761
      %v1937 = vunpack.c.l.b16 %v1762
      %v1938 = vunpack.c.h.b16 %v1762
      %v1939 = vunpack.c.l.b16 %v1763
      %v1940 = vunpack.c.h.b16 %v1763
      %v1941 = vunpack.c.l.b16 %v1764
      %v1942 = vunpack.c.h.b16 %v1764
      %v1943 = vunpack.c.l.b16 %v1765
      %v1944 = vunpack.c.h.b16 %v1765
      %v1945 = vunpack.c.l.b16 %v1766
      %v1946 = vunpack.c.h.b16 %v1766
      %v1947 = vunpack.c.l.b16 %v1767
      %v1948 = vunpack.c.h.b16 %v1767
      %v1949 = vunpack.c.l.b16 %v1768
      %v1950 = vunpack.c.h.b16 %v1768
      %v1951 = vunpack.c.l.b16 %v1769
      %v1952 = vunpack.c.h.b16 %v1769
      %v1953 = vunpack.c.l.b16 %v1770
      %v1954 = vunpack.c.h.b16 %v1770
      %v1955 = vunpack.c.l.b16 %v1771
      %v1956 = vunpack.c.h.b16 %v1771
      %v1957 = vunpack.c.l.b16 %v1772
      %v1958 = vunpack.c.h.b16 %v1772
      %v1959 = vunpack.c.l.b16 %v1773
      %v1960 = vunpack.c.h.b16 %v1773
      %v1961 = vunpack.c.l.b16 %v1774
      %v1962 = vunpack.c.h.b16 %v1774
      %v1963 = vunpack.c.l.b16 %v1775
      %v1964 = vunpack.c.h.b16 %v1775
      %v1965 = vunpack.c.l.b16 %v1776
      %v1966 = vunpack.c.h.b16 %v1776
      %v1967 = vunpack.c.l.b16 %v1777
      %v1968 = vunpack.c.h.b16 %v1777
      %v1969 = vunpack.c.l.b16 %v1778
      %v1970 = vunpack.c.h.b16 %v1778
      %v1971 = vunpack.c.l.b16 %v1779
      %v1972 = vunpack.c.h.b16 %v1779
      %v1973 = vunpack.c.l.b16 %v1780
      %v1974 = vunpack.c.h.b16 %v1780
      %v1975 = vunpack.c.l.b16 %v1781
      %v1976 = vunpack.c.h.b16 %v1781
      %v1977 = vunpack.c.l.b16 %v1782
      %v1978 = vunpack.c.h.b16 %v1782
      %v1979 = vunpack.c.l.b16 %v1783
      %v1980 = vunpack.c.h.b16 %v1783
      %v1981 = vunpack.c.l.b16 %v1784
      %v1982 = vunpack.c.h.b16 %v1784
      %v1983 = vunpack.c.l.b16 %v1785
      %v1984 = vunpack.c.h.b16 %v1785
      %v1985 = vunpack.c.l.b16 %v1786
      %v1986 = vunpack.c.h.b16 %v1786
      %v1987 = vunpack.c.l.b16 %v1787
      %v1988 = vunpack.c.h.b16 %v1787
      %v1989 = vunpack.c.l.b16 %v1788
      %v1990 = vunpack.c.h.b16 %v1788
      %v1991 = vunpack.c.l.b16 %v1789
      %v1992 = vunpack.c.h.b16 %v1789
      %v1993 = vunpack.c.l.b16 %v1790
      %v1994 = vunpack.c.h.b16 %v1790
      %v1995 = vunpack.c.l.b16 %v1791
      %v1996 = vunpack.c.h.b16 %v1791
      %v1997 = vunpack.c.l.b16 %v1792
      %v1998 = vunpack.c.h.b16 %v1792
      %v1999 = vunpack.c.l.b16 %v1793
      %v2000 = vunpack.c.h.b16 %v1793
      %v2001 = vunpack.c.l.b16 %v1794
      %v2002 = vunpack.c.h.b16 %v1794
      %v2003 = vunpack.c.l.b16 %v1795
      %v2004 = vunpack.c.h.b16 %v1795
      %v2005 = vunpack.c.l.b16 %v1796
      %v2006 = vunpack.c.h.b16 %v1796
      %v2007 = vunpack.c.l.b16 %v1797
      %v2008 = vunpack.c.h.b16 %v1797
      %v2009 = vunpack.c.l.b16 %v1798
      %v2010 = vunpack.c.h.b16 %v1798
      %v2011 = vunpack.c.l.b16 %v1799
      %v2012 = vunpack.c.h.b16 %v1799
      %v2013 = vunpack.c.l.b16 %v1800
      %v2014 = vunpack.c.h.b16 %v1800
      %v2015 = vunpack.c.l.b16 %v1801
      %v2016 = vunpack.c.h.b16 %v1801
      %v2017 = vunpack.c.l.b16 %v1802
      %v2018 = vunpack.c.h.b16 %v1802
      %v2019 = vunpack.c.l.b16 %v1803
      %v2020 = vunpack.c.h.b16 %v1803
      %v2021 = vunpack.c.l.b16 %v1804
      %v2022 = vunpack.c.h.b16 %v1804
      %v2023 = vunpack.c.l.b16 %v1805
      %v2024 = vunpack.c.h.b16 %v1805
      %v2025 = vunpack.c.l.b16 %v1806
      %v2026 = vunpack.c.h.b16 %v1806
      %v2027 = vunpack.c.l.b16 %v1807
      %v2028 = vunpack.c.h.b16 %v1807
      %v2029 = vunpack.c.l.b16 %v1808
      %v2030 = vunpack.c.h.b16 %v1808
      %v2031 = vunpack.c.l.b16 %v1809
      %v2032 = vunpack.c.h.b16 %v1809
      %v2033 = vunpack.c.l.b16 %v1810
      %v2034 = vunpack.c.h.b16 %v1810
      %v2035 = vunpack.c.l.b16 %v1811
      %v2036 = vunpack.c.h.b16 %v1811
      %v2037 = vunpack.c.l.b16 %v1812
      %v2038 = vunpack.c.h.b16 %v1812
      %v2039 = vunpack.c.l.b16 %v1813
      %v2040 = vunpack.c.h.b16 %v1813
      %v2041 = vunpack.c.l.b16 %v1814
      %v2042 = vunpack.c.h.b16 %v1814
      %v2043 = vpack.c.b16 %v1931, %v1915
      %v2044 = vpack.c.b16 %v1932, %v1916
      %v2045 = vpack.c.b16 %v1933, %v1917
      %v2046 = vpack.c.b16 %v1934, %v1918
      %v2047 = vpack.c.b16 %v1935, %v1919
      %v2048 = vpack.c.b16 %v1936, %v1920
      %v2049 = vpack.c.b16 %v1937, %v1921
      %v2050 = vpack.c.b16 %v1938, %v1922
      %v2051 = vpack.c.b16 %v1939, %v1923
      %v2052 = vpack.c.b16 %v1940, %v1924
      %v2053 = vpack.c.b16 %v1941, %v1925
      %v2054 = vpack.c.b16 %v1942, %v1926
      %v2055 = vpack.c.b16 %v1943, %v1927
      %v2056 = vpack.c.b16 %v1944, %v1928
      %v2057 = vpack.c.b16 %v1945, %v1929
      %v2058 = vpack.c.b16 %v1946, %v1930
      %v2059 = vpack.c.b16 %v1963, %v1947
      %v2060 = vpack.c.b16 %v1964, %v1948
      %v2061 = vpack.c.b16 %v1965, %v1949
      %v2062 = vpack.c.b16 %v1966, %v1950
      %v2063 = vpack.c.b16 %v1967, %v1951
      %v2064 = vpack.c.b16 %v1968, %v1952
      %v2065 = vpack.c.b16 %v1969, %v1953
      %v2066 = vpack.c.b16 %v1970, %v1954
      %v2067 = vpack.c.b16 %v1971, %v1955
      %v2068 = vpack.c.b16 %v1972, %v1956
      %v2069 = vpack.c.b16 %v1973, %v1957
      %v2070 = vpack.c.b16 %v1974, %v1958
      %v2071 = vpack.c.b16 %v1975, %v1959
      %v2072 = vpack.c.b16 %v1976, %v1960
      %v2073 = vpack.c.b16 %v1977, %v1961
      %v2074 = vpack.c.b16 %v1978, %v1962
      %v2075 = vpack.c.b16 %v1995, %v1979
      %v2076 = vpack.c.b16 %v1996, %v1980
      %v2077 = vpack.c.b16 %v1997, %v1981
      %v2078 = vpack.c.b16 %v1998, %v1982
      %v2079 = vpack.c.b16 %v1999, %v1983
      %v2080 = vpack.c.b16 %v2000, %v1984
      %v2081 = vpack.c.b16 %v2001, %v1985
      %v2082 = vpack.c.b16 %v2002, %v1986
      %v2083 = vpack.c.b16 %v2003, %v1987
      %v2084 = vpack.c.b16 %v2004, %v1988
      %v2085 = vpack.c.b16 %v2005, %v1989
      %v2086 = vpack.c.b16 %v2006, %v1990
      %v2087 = vpack.c.b16 %v2007, %v1991
      %v2088 = vpack.c.b16 %v2008, %v1992
      %v2089 = vpack.c.b16 %v2009, %v1993
      %v2090 = vpack.c.b16 %v2010, %v1994
      %v2091 = vpack.c.b16 %v2027, %v2011
      %v2092 = vpack.c.b16 %v2028, %v2012
      %v2093 = vpack.c.b16 %v2029, %v2013
      %v2094 = vpack.c.b16 %v2030, %v2014
      %v2095 = vpack.c.b16 %v2031, %v2015
      %v2096 = vpack.c.b16 %v2032, %v2016
      %v2097 = vpack.c.b16 %v2033, %v2017
      %v2098 = vpack.c.b16 %v2034, %v2018
      %v2099 = vpack.c.b16 %v2035, %v2019
      %v2100 = vpack.c.b16 %v2036, %v2020
      %v2101 = vpack.c.b16 %v2037, %v2021
      %v2102 = vpack.c.b16 %v2038, %v2022
      %v2103 = vpack.c.b16 %v2039, %v2023
      %v2104 = vpack.c.b16 %v2040, %v2024
      %v2105 = vpack.c.b16 %v2041, %v2025
      %v2106 = vpack.c.b16 %v2042, %v2026
      %v2172 = vsel %vm752, %v1750, 0
      %2174 = vmatpush.bf16.msra.mxu0 0
      %2175 = vmatpush.bf16.msra.mxu0 0
      %2176 = vmatpush.bf16.msra.mxu0 0
      %2177 = vmatpush.bf16.msra.mxu0 0
      %2178 = vmatpush.bf16.msra.mxu0 %v2091
      %2179 = vmatpush.bf16.msra.mxu0 %v2075
      %2180 = vmatpush.bf16.msra.mxu0 %v2059
      %2181 = vmatpush.bf16.msra.mxu0 %v2043
      %2182 = vmatmul.bf16.gmra.mxu0 %v2172
      %v2183 = vpop.f32.mrf.mxu0
      %v2184 = vadd.f32 %v1819, %v2183
      %v2185 = vpop.f32.mrf.mxu0
      %v2186 = vadd.f32 %v1819, %v2185
      %2187 = vdwg.mxu0
      %2188 = vmatpush.bf16.msra.mxu0 0
      %2189 = vmatpush.bf16.msra.mxu0 0
      %2190 = vmatpush.bf16.msra.mxu0 0
      %2191 = vmatpush.bf16.msra.mxu0 0
      %2192 = vmatpush.bf16.msra.mxu0 %v2092
      %2193 = vmatpush.bf16.msra.mxu0 %v2076
      %2194 = vmatpush.bf16.msra.mxu0 %v2060
      %2195 = vmatpush.bf16.msra.mxu0 %v2044
      %2196 = vmatmul.bf16.gmra.mxu0 %v2172
      %v2197 = vpop.f32.mrf.mxu0
      %v2198 = vadd.f32 %v1820, %v2197
      %v2199 = vpop.f32.mrf.mxu0
      %v2200 = vadd.f32 %v1820, %v2199
      %2201 = vdwg.mxu0
      %2202 = vmatpush.bf16.msra.mxu0 0
      %2203 = vmatpush.bf16.msra.mxu0 0
      %2204 = vmatpush.bf16.msra.mxu0 0
      %2205 = vmatpush.bf16.msra.mxu0 0
      %2206 = vmatpush.bf16.msra.mxu0 %v2093
      %2207 = vmatpush.bf16.msra.mxu0 %v2077
      %2208 = vmatpush.bf16.msra.mxu0 %v2061
      %2209 = vmatpush.bf16.msra.mxu0 %v2045
      %2210 = vmatmul.bf16.gmra.mxu0 %v2172
      %v2211 = vpop.f32.mrf.mxu0
      %v2212 = vadd.f32 %v1821, %v2211
      %v2213 = vpop.f32.mrf.mxu0
      %v2214 = vadd.f32 %v1821, %v2213
      %2215 = vdwg.mxu0
      %2216 = vmatpush.bf16.msra.mxu0 0
      %2217 = vmatpush.bf16.msra.mxu0 0
      %2218 = vmatpush.bf16.msra.mxu0 0
      %2219 = vmatpush.bf16.msra.mxu0 0
      %2220 = vmatpush.bf16.msra.mxu0 %v2094
      %2221 = vmatpush.bf16.msra.mxu0 %v2078
      %2222 = vmatpush.bf16.msra.mxu0 %v2062
      %2223 = vmatpush.bf16.msra.mxu0 %v2046
      %2224 = vmatmul.bf16.gmra.mxu0 %v2172
      %v2225 = vpop.f32.mrf.mxu0
      %v2226 = vadd.f32 %v1822, %v2225
      %v2227 = vpop.f32.mrf.mxu0
      %v2228 = vadd.f32 %v1822, %v2227
      %2229 = vdwg.mxu0
      %2230 = vmatpush.bf16.msra.mxu0 0
      %2231 = vmatpush.bf16.msra.mxu0 0
      %2232 = vmatpush.bf16.msra.mxu0 0
      %2233 = vmatpush.bf16.msra.mxu0 0
      %2234 = vmatpush.bf16.msra.mxu0 %v2095
      %2235 = vmatpush.bf16.msra.mxu0 %v2079
      %2236 = vmatpush.bf16.msra.mxu0 %v2063
      %2237 = vmatpush.bf16.msra.mxu0 %v2047
      %2238 = vmatmul.bf16.gmra.mxu0 %v2172
      %v2239 = vpop.f32.mrf.mxu0
      %v2240 = vadd.f32 %v1823, %v2239
      %v2241 = vpop.f32.mrf.mxu0
      %v2242 = vadd.f32 %v1823, %v2241
      %2243 = vdwg.mxu0
      %2244 = vmatpush.bf16.msra.mxu0 0
      %2245 = vmatpush.bf16.msra.mxu0 0
      %2246 = vmatpush.bf16.msra.mxu0 0
      %2247 = vmatpush.bf16.msra.mxu0 0
      %2248 = vmatpush.bf16.msra.mxu0 %v2096
      %2249 = vmatpush.bf16.msra.mxu0 %v2080
      %2250 = vmatpush.bf16.msra.mxu0 %v2064
      %2251 = vmatpush.bf16.msra.mxu0 %v2048
      %2252 = vmatmul.bf16.gmra.mxu0 %v2172
      %v2253 = vpop.f32.mrf.mxu0
      %v2254 = vadd.f32 %v1824, %v2253
      %v2255 = vpop.f32.mrf.mxu0
      %v2256 = vadd.f32 %v1824, %v2255
      %2257 = vdwg.mxu0
      %2258 = vmatpush.bf16.msra.mxu0 0
      %2259 = vmatpush.bf16.msra.mxu0 0
      %2260 = vmatpush.bf16.msra.mxu0 0
      %2261 = vmatpush.bf16.msra.mxu0 0
      %2262 = vmatpush.bf16.msra.mxu0 %v2097
      %2263 = vmatpush.bf16.msra.mxu0 %v2081
      %2264 = vmatpush.bf16.msra.mxu0 %v2065
      %2265 = vmatpush.bf16.msra.mxu0 %v2049
      %2266 = vmatmul.bf16.gmra.mxu0 %v2172
      %v2267 = vpop.f32.mrf.mxu0
      %v2268 = vadd.f32 %v1825, %v2267
      %v2269 = vpop.f32.mrf.mxu0
      %v2270 = vadd.f32 %v1825, %v2269
      %2271 = vdwg.mxu0
      %2272 = vmatpush.bf16.msra.mxu0 0
      %2273 = vmatpush.bf16.msra.mxu0 0
      %2274 = vmatpush.bf16.msra.mxu0 0
      %2275 = vmatpush.bf16.msra.mxu0 0
      %2276 = vmatpush.bf16.msra.mxu0 %v2098
      %2277 = vmatpush.bf16.msra.mxu0 %v2082
      %2278 = vmatpush.bf16.msra.mxu0 %v2066
      %2279 = vmatpush.bf16.msra.mxu0 %v2050
      %2280 = vmatmul.bf16.gmra.mxu0 %v2172
      %v2281 = vpop.f32.mrf.mxu0
      %v2282 = vadd.f32 %v1826, %v2281
      %v2283 = vpop.f32.mrf.mxu0
      %v2284 = vadd.f32 %v1826, %v2283
      %2285 = vdwg.mxu0
      %2286 = vmatpush.bf16.msra.mxu0 0
      %2287 = vmatpush.bf16.msra.mxu0 0
      %2288 = vmatpush.bf16.msra.mxu0 0
      %2289 = vmatpush.bf16.msra.mxu0 0
      %2290 = vmatpush.bf16.msra.mxu0 %v2099
      %2291 = vmatpush.bf16.msra.mxu0 %v2083
      %2292 = vmatpush.bf16.msra.mxu0 %v2067
      %2293 = vmatpush.bf16.msra.mxu0 %v2051
      %2294 = vmatmul.bf16.gmra.mxu0 %v2172
      %v2295 = vpop.f32.mrf.mxu0
      %v2296 = vadd.f32 %v1827, %v2295
      %v2297 = vpop.f32.mrf.mxu0
      %v2298 = vadd.f32 %v1827, %v2297
      %2299 = vdwg.mxu0
      %2300 = vmatpush.bf16.msra.mxu0 0
      %2301 = vmatpush.bf16.msra.mxu0 0
      %2302 = vmatpush.bf16.msra.mxu0 0
      %2303 = vmatpush.bf16.msra.mxu0 0
      %2304 = vmatpush.bf16.msra.mxu0 %v2100
      %2305 = vmatpush.bf16.msra.mxu0 %v2084
      %2306 = vmatpush.bf16.msra.mxu0 %v2068
      %2307 = vmatpush.bf16.msra.mxu0 %v2052
      %2308 = vmatmul.bf16.gmra.mxu0 %v2172
      %v2309 = vpop.f32.mrf.mxu0
      %v2310 = vadd.f32 %v1828, %v2309
      %v2311 = vpop.f32.mrf.mxu0
      %v2312 = vadd.f32 %v1828, %v2311
      %2313 = vdwg.mxu0
      %2314 = vmatpush.bf16.msra.mxu0 0
      %2315 = vmatpush.bf16.msra.mxu0 0
      %2316 = vmatpush.bf16.msra.mxu0 0
      %2317 = vmatpush.bf16.msra.mxu0 0
      %2318 = vmatpush.bf16.msra.mxu0 %v2101
      %2319 = vmatpush.bf16.msra.mxu0 %v2085
      %2320 = vmatpush.bf16.msra.mxu0 %v2069
      %2321 = vmatpush.bf16.msra.mxu0 %v2053
      %2322 = vmatmul.bf16.gmra.mxu0 %v2172
      %v2323 = vpop.f32.mrf.mxu0
      %v2324 = vadd.f32 %v1829, %v2323
      %v2325 = vpop.f32.mrf.mxu0
      %v2326 = vadd.f32 %v1829, %v2325
      %2327 = vdwg.mxu0
      %2328 = vmatpush.bf16.msra.mxu0 0
      %2329 = vmatpush.bf16.msra.mxu0 0
      %2330 = vmatpush.bf16.msra.mxu0 0
      %2331 = vmatpush.bf16.msra.mxu0 0
      %2332 = vmatpush.bf16.msra.mxu0 %v2102
      %2333 = vmatpush.bf16.msra.mxu0 %v2086
      %2334 = vmatpush.bf16.msra.mxu0 %v2070
      %2335 = vmatpush.bf16.msra.mxu0 %v2054
      %2336 = vmatmul.bf16.gmra.mxu0 %v2172
      %v2337 = vpop.f32.mrf.mxu0
      %v2338 = vadd.f32 %v1830, %v2337
      %v2339 = vpop.f32.mrf.mxu0
      %v2340 = vadd.f32 %v1830, %v2339
      %2341 = vdwg.mxu0
      %2342 = vmatpush.bf16.msra.mxu0 0
      %2343 = vmatpush.bf16.msra.mxu0 0
      %2344 = vmatpush.bf16.msra.mxu0 0
      %2345 = vmatpush.bf16.msra.mxu0 0
      %2346 = vmatpush.bf16.msra.mxu0 %v2103
      %2347 = vmatpush.bf16.msra.mxu0 %v2087
      %2348 = vmatpush.bf16.msra.mxu0 %v2071
      %2349 = vmatpush.bf16.msra.mxu0 %v2055
      %2350 = vmatmul.bf16.gmra.mxu0 %v2172
      %v2351 = vpop.f32.mrf.mxu0
      %v2352 = vadd.f32 %v1831, %v2351
      %v2353 = vpop.f32.mrf.mxu0
      %v2354 = vadd.f32 %v1831, %v2353
      %2355 = vdwg.mxu0
      %2356 = vmatpush.bf16.msra.mxu0 0
      %2357 = vmatpush.bf16.msra.mxu0 0
      %2358 = vmatpush.bf16.msra.mxu0 0
      %2359 = vmatpush.bf16.msra.mxu0 0
      %2360 = vmatpush.bf16.msra.mxu0 %v2104
      %2361 = vmatpush.bf16.msra.mxu0 %v2088
      %2362 = vmatpush.bf16.msra.mxu0 %v2072
      %2363 = vmatpush.bf16.msra.mxu0 %v2056
      %2364 = vmatmul.bf16.gmra.mxu0 %v2172
      %v2365 = vpop.f32.mrf.mxu0
      %v2366 = vadd.f32 %v1832, %v2365
      %v2367 = vpop.f32.mrf.mxu0
      %v2368 = vadd.f32 %v1832, %v2367
      %2369 = vdwg.mxu0
      %2370 = vmatpush.bf16.msra.mxu0 0
      %2371 = vmatpush.bf16.msra.mxu0 0
      %2372 = vmatpush.bf16.msra.mxu0 0
      %2373 = vmatpush.bf16.msra.mxu0 0
      %2374 = vmatpush.bf16.msra.mxu0 %v2105
      %2375 = vmatpush.bf16.msra.mxu0 %v2089
      %2376 = vmatpush.bf16.msra.mxu0 %v2073
      %2377 = vmatpush.bf16.msra.mxu0 %v2057
      %2378 = vmatmul.bf16.gmra.mxu0 %v2172
      %v2379 = vpop.f32.mrf.mxu0
      %v2380 = vadd.f32 %v1833, %v2379
      %v2381 = vpop.f32.mrf.mxu0
      %v2382 = vadd.f32 %v1833, %v2381
      %2383 = vdwg.mxu0
      %2384 = vmatpush.bf16.msra.mxu0 0
      %2385 = vmatpush.bf16.msra.mxu0 0
      %2386 = vmatpush.bf16.msra.mxu0 0
      %2387 = vmatpush.bf16.msra.mxu0 0
      %2388 = vmatpush.bf16.msra.mxu0 %v2106
      %2389 = vmatpush.bf16.msra.mxu0 %v2090
      %2390 = vmatpush.bf16.msra.mxu0 %v2074
      %2391 = vmatpush.bf16.msra.mxu0 %v2058
      %2392 = vmatmul.bf16.gmra.mxu0 %v2172
      %v2393 = vpop.f32.mrf.mxu0
      %v2394 = vadd.f32 %v1834, %v2393
      %v2395 = vpop.f32.mrf.mxu0
      %v2396 = vadd.f32 %v1834, %v2395
      %2397 = vdwg.mxu0
      %v2398 = vmax.f32 %v2184, 0.0
      %v2399 = vmax.f32 %v2198, 0.0
      %v2400 = vmax.f32 %v2212, 0.0
      %v2401 = vmax.f32 %v2226, 0.0
      %v2402 = vmax.f32 %v2240, 0.0
      %v2403 = vmax.f32 %v2254, 0.0
      %v2404 = vmax.f32 %v2268, 0.0
      %v2405 = vmax.f32 %v2282, 0.0
      %v2406 = vmax.f32 %v2296, 0.0
      %v2407 = vmax.f32 %v2310, 0.0
      %v2408 = vmax.f32 %v2324, 0.0
      %v2409 = vmax.f32 %v2338, 0.0
      %v2410 = vmax.f32 %v2352, 0.0
      %v2411 = vmax.f32 %v2366, 0.0
      %v2412 = vmax.f32 %v2380, 0.0
      %v2413 = vmax.f32 %v2394, 0.0
      %v2414 = vmax.f32 %v2186, 0.0
      %v2415 = vmax.f32 %v2200, 0.0
      %v2416 = vmax.f32 %v2214, 0.0
      %v2417 = vmax.f32 %v2228, 0.0
      %v2418 = vmax.f32 %v2242, 0.0
      %v2419 = vmax.f32 %v2256, 0.0
      %v2420 = vmax.f32 %v2270, 0.0
      %v2421 = vmax.f32 %v2284, 0.0
      %v2422 = vmax.f32 %v2298, 0.0
      %v2423 = vmax.f32 %v2312, 0.0
      %v2424 = vmax.f32 %v2326, 0.0
      %v2425 = vmax.f32 %v2340, 0.0
      %v2426 = vmax.f32 %v2354, 0.0
      %v2427 = vmax.f32 %v2368, 0.0
      %v2428 = vmax.f32 %v2382, 0.0
      %v2429 = vmax.f32 %v2396, 0.0
      %v2430 = vpack.c.bf16 %v2414, %v2398
      %v2431 = vpack.c.bf16 %v2415, %v2399
      %v2432 = vpack.c.bf16 %v2416, %v2400
      %v2433 = vpack.c.bf16 %v2417, %v2401
      %v2434 = vpack.c.bf16 %v2418, %v2402
      %v2435 = vpack.c.bf16 %v2419, %v2403
      %v2436 = vpack.c.bf16 %v2420, %v2404
      %v2437 = vpack.c.bf16 %v2421, %v2405
      %v2438 = vpack.c.bf16 %v2422, %v2406
      %v2439 = vpack.c.bf16 %v2423, %v2407
      %v2440 = vpack.c.bf16 %v2424, %v2408
      %v2441 = vpack.c.bf16 %v2425, %v2409
      %v2442 = vpack.c.bf16 %v2426, %v2410
      %v2443 = vpack.c.bf16 %v2427, %v2411
      %v2444 = vpack.c.bf16 %v2428, %v2412
      %v2445 = vpack.c.bf16 %v2429, %v2413
      %v2446 = vld [vmem:[%s681] sm:$0xf]
      %v2447 = vld [vmem:[%s681 + $0x4] sm:$0xf]
      %v2448 = vld [vmem:[%s681 + $0x8] sm:$0xf]
      %v2449 = vld [vmem:[%s681 + $0xc] sm:$0xf]
      %v2450 = vld [vmem:[%s681 + $0x10] sm:$0xf]
      %v2451 = vld [vmem:[%s681 + $0x14] sm:$0xf]
      %v2452 = vld [vmem:[%s681 + $0x18] sm:$0xf]
      %v2453 = vld [vmem:[%s681 + $0x1c] sm:$0xf]
      %v2454 = vld [vmem:[%s681 + $0x20] sm:$0xf]
      %v2455 = vld [vmem:[%s681 + $0x24] sm:$0xf]
      %v2456 = vld [vmem:[%s681 + $0x28] sm:$0xf]
      %v2457 = vld [vmem:[%s681 + $0x2c] sm:$0xf]
      %v2458 = vld [vmem:[%s681 + $0x30] sm:$0xf]
      %v2459 = vld [vmem:[%s681 + $0x34] sm:$0xf]
      %v2460 = vld [vmem:[%s681 + $0x38] sm:$0xf]
      %v2461 = vld [vmem:[%s681 + $0x3c] sm:$0xf]
      %v2462 = vld [vmem:[%s681 + $0x40] sm:$0xf]
      %v2463 = vld [vmem:[%s681 + $0x44] sm:$0xf]
      %v2464 = vld [vmem:[%s681 + $0x48] sm:$0xf]
      %v2465 = vld [vmem:[%s681 + $0x4c] sm:$0xf]
      %v2466 = vld [vmem:[%s681 + $0x50] sm:$0xf]
      %v2467 = vld [vmem:[%s681 + $0x54] sm:$0xf]
      %v2468 = vld [vmem:[%s681 + $0x58] sm:$0xf]
      %v2469 = vld [vmem:[%s681 + $0x5c] sm:$0xf]
      %v2470 = vld [vmem:[%s681 + $0x60] sm:$0xf]
      %v2471 = vld [vmem:[%s681 + $0x64] sm:$0xf]
      %v2472 = vld [vmem:[%s681 + $0x68] sm:$0xf]
      %v2473 = vld [vmem:[%s681 + $0x6c] sm:$0xf]
      %v2474 = vld [vmem:[%s681 + $0x70] sm:$0xf]
      %v2475 = vld [vmem:[%s681 + $0x74] sm:$0xf]
      %v2476 = vld [vmem:[%s681 + $0x78] sm:$0xf]
      %v2477 = vld [vmem:[%s681 + $0x7c] sm:$0xf]
      %v2478 = vld [vmem:[%s681 + $0x80] sm:$0xf]
      %v2479 = vld [vmem:[%s681 + $0x84] sm:$0xf]
      %v2480 = vld [vmem:[%s681 + $0x88] sm:$0xf]
      %v2481 = vld [vmem:[%s681 + $0x8c] sm:$0xf]
      %v2482 = vld [vmem:[%s681 + $0x90] sm:$0xf]
      %v2483 = vld [vmem:[%s681 + $0x94] sm:$0xf]
      %v2484 = vld [vmem:[%s681 + $0x98] sm:$0xf]
      %v2485 = vld [vmem:[%s681 + $0x9c] sm:$0xf]
      %v2486 = vld [vmem:[%s681 + $0xa0] sm:$0xf]
      %v2487 = vld [vmem:[%s681 + $0xa4] sm:$0xf]
      %v2488 = vld [vmem:[%s681 + $0xa8] sm:$0xf]
      %v2489 = vld [vmem:[%s681 + $0xac] sm:$0xf]
      %v2490 = vld [vmem:[%s681 + $0xb0] sm:$0xf]
      %v2491 = vld [vmem:[%s681 + $0xb4] sm:$0xf]
      %v2492 = vld [vmem:[%s681 + $0xb8] sm:$0xf]
      %v2493 = vld [vmem:[%s681 + $0xbc] sm:$0xf]
      %v2494 = vld [vmem:[%s681 + $0xc0] sm:$0xf]
      %v2495 = vld [vmem:[%s681 + $0xc4] sm:$0xf]
      %v2496 = vld [vmem:[%s681 + $0xc8] sm:$0xf]
      %v2497 = vld [vmem:[%s681 + $0xcc] sm:$0xf]
      %v2498 = vld [vmem:[%s681 + $0xd0] sm:$0xf]
      %v2499 = vld [vmem:[%s681 + $0xd4] sm:$0xf]
      %v2500 = vld [vmem:[%s681 + $0xd8] sm:$0xf]
      %v2501 = vld [vmem:[%s681 + $0xdc] sm:$0xf]
      %v2502 = vld [vmem:[%s681 + $0xe0] sm:$0xf]
      %v2503 = vld [vmem:[%s681 + $0xe4] sm:$0xf]
      %v2504 = vld [vmem:[%s681 + $0xe8] sm:$0xf]
      %v2505 = vld [vmem:[%s681 + $0xec] sm:$0xf]
      %v2506 = vld [vmem:[%s681 + $0xf0] sm:$0xf]
      %v2507 = vld [vmem:[%s681 + $0xf4] sm:$0xf]
      %v2508 = vld [vmem:[%s681 + $0xf8] sm:$0xf]
      %v2509 = vld [vmem:[%s681 + $0xfc] sm:$0xf]
      %v2510 = vld [vmem:[%s681 + $0x100] sm:$0xf]
      %v2511 = vld [vmem:[%s681 + $0x104] sm:$0xf]
      %v2512 = vld [vmem:[%s681 + $0x108] sm:$0xf]
      %v2513 = vld [vmem:[%s681 + $0x10c] sm:$0xf]
      %v2514 = vld [vmem:[%s681 + $0x110] sm:$0xf]
      %v2515 = vld [vmem:[%s681 + $0x114] sm:$0xf]
      %v2516 = vld [vmem:[%s681 + $0x118] sm:$0xf]
      %v2517 = vld [vmem:[%s681 + $0x11c] sm:$0xf]
      %v2518 = vld [vmem:[%s681 + $0x120] sm:$0xf]
      %v2519 = vld [vmem:[%s681 + $0x124] sm:$0xf]
      %v2520 = vld [vmem:[%s681 + $0x128] sm:$0xf]
      %v2521 = vld [vmem:[%s681 + $0x12c] sm:$0xf]
      %v2522 = vld [vmem:[%s681 + $0x130] sm:$0xf]
      %v2523 = vld [vmem:[%s681 + $0x134] sm:$0xf]
      %v2524 = vld [vmem:[%s681 + $0x138] sm:$0xf]
      %v2525 = vld [vmem:[%s681 + $0x13c] sm:$0xf]
      %v2526 = vld [vmem:[%s681 + $0x140] sm:$0xf]
      %v2527 = vld [vmem:[%s681 + $0x144] sm:$0xf]
      %v2528 = vld [vmem:[%s681 + $0x148] sm:$0xf]
      %v2529 = vld [vmem:[%s681 + $0x14c] sm:$0xf]
      %v2530 = vld [vmem:[%s681 + $0x150] sm:$0xf]
      %v2531 = vld [vmem:[%s681 + $0x154] sm:$0xf]
      %v2532 = vld [vmem:[%s681 + $0x158] sm:$0xf]
      %v2533 = vld [vmem:[%s681 + $0x15c] sm:$0xf]
      %v2534 = vld [vmem:[%s681 + $0x160] sm:$0xf]
      %v2535 = vld [vmem:[%s681 + $0x164] sm:$0xf]
      %v2536 = vld [vmem:[%s681 + $0x168] sm:$0xf]
      %v2537 = vld [vmem:[%s681 + $0x16c] sm:$0xf]
      %v2538 = vld [vmem:[%s681 + $0x170] sm:$0xf]
      %v2539 = vld [vmem:[%s681 + $0x174] sm:$0xf]
      %v2540 = vld [vmem:[%s681 + $0x178] sm:$0xf]
      %v2541 = vld [vmem:[%s681 + $0x17c] sm:$0xf]
      %v2542 = vld [vmem:[%s681 + $0x180] sm:$0xf]
      %v2543 = vld [vmem:[%s681 + $0x184] sm:$0xf]
      %v2544 = vld [vmem:[%s681 + $0x188] sm:$0xf]
      %v2545 = vld [vmem:[%s681 + $0x18c] sm:$0xf]
      %v2546 = vld [vmem:[%s681 + $0x190] sm:$0xf]
      %v2547 = vld [vmem:[%s681 + $0x194] sm:$0xf]
      %v2548 = vld [vmem:[%s681 + $0x198] sm:$0xf]
      %v2549 = vld [vmem:[%s681 + $0x19c] sm:$0xf]
      %v2550 = vld [vmem:[%s681 + $0x1a0] sm:$0xf]
      %v2551 = vld [vmem:[%s681 + $0x1a4] sm:$0xf]
      %v2552 = vld [vmem:[%s681 + $0x1a8] sm:$0xf]
      %v2553 = vld [vmem:[%s681 + $0x1ac] sm:$0xf]
      %v2554 = vld [vmem:[%s681 + $0x1b0] sm:$0xf]
      %v2555 = vld [vmem:[%s681 + $0x1b4] sm:$0xf]
      %v2556 = vld [vmem:[%s681 + $0x1b8] sm:$0xf]
      %v2557 = vld [vmem:[%s681 + $0x1bc] sm:$0xf]
      %v2558 = vld [vmem:[%s681 + $0x1c0] sm:$0xf]
      %v2559 = vld [vmem:[%s681 + $0x1c4] sm:$0xf]
      %v2560 = vld [vmem:[%s681 + $0x1c8] sm:$0xf]
      %v2561 = vld [vmem:[%s681 + $0x1cc] sm:$0xf]
      %v2562 = vld [vmem:[%s681 + $0x1d0] sm:$0xf]
      %v2563 = vld [vmem:[%s681 + $0x1d4] sm:$0xf]
      %v2564 = vld [vmem:[%s681 + $0x1d8] sm:$0xf]
      %v2565 = vld [vmem:[%s681 + $0x1dc] sm:$0xf]
      %v2566 = vld [vmem:[%s681 + $0x1e0] sm:$0xf]
      %v2567 = vld [vmem:[%s681 + $0x1e4] sm:$0xf]
      %v2568 = vld [vmem:[%s681 + $0x1e8] sm:$0xf]
      %v2569 = vld [vmem:[%s681 + $0x1ec] sm:$0xf]
      %v2570 = vld [vmem:[%s681 + $0x1f0] sm:$0xf]
      %v2571 = vld [vmem:[%s681 + $0x1f4] sm:$0xf]
      %v2572 = vld [vmem:[%s681 + $0x1f8] sm:$0xf]
      %v2573 = vld [vmem:[%s681 + $0x1fc] sm:$0xf]
      %v2574 = vld [vmem:[%s681 + $0x200] sm:$0xf]
      %v2575 = vld [vmem:[%s681 + $0x204] sm:$0xf]
      %v2576 = vld [vmem:[%s681 + $0x208] sm:$0xf]
      %v2577 = vld [vmem:[%s681 + $0x20c] sm:$0xf]
      %v2578 = vld [vmem:[%s681 + $0x210] sm:$0xf]
      %v2579 = vld [vmem:[%s681 + $0x214] sm:$0xf]
      %v2580 = vld [vmem:[%s681 + $0x218] sm:$0xf]
      %v2581 = vld [vmem:[%s681 + $0x21c] sm:$0xf]
      %v2582 = vld [vmem:[%s681 + $0x220] sm:$0xf]
      %v2583 = vld [vmem:[%s681 + $0x224] sm:$0xf]
      %v2584 = vld [vmem:[%s681 + $0x228] sm:$0xf]
      %v2585 = vld [vmem:[%s681 + $0x22c] sm:$0xf]
      %v2586 = vld [vmem:[%s681 + $0x230] sm:$0xf]
      %v2587 = vld [vmem:[%s681 + $0x234] sm:$0xf]
      %v2588 = vld [vmem:[%s681 + $0x238] sm:$0xf]
      %v2589 = vld [vmem:[%s681 + $0x23c] sm:$0xf]
      %v2590 = vld [vmem:[%s681 + $0x240] sm:$0xf]
      %v2591 = vld [vmem:[%s681 + $0x244] sm:$0xf]
      %v2592 = vld [vmem:[%s681 + $0x248] sm:$0xf]
      %v2593 = vld [vmem:[%s681 + $0x24c] sm:$0xf]
      %v2594 = vld [vmem:[%s681 + $0x250] sm:$0xf]
      %v2595 = vld [vmem:[%s681 + $0x254] sm:$0xf]
      %v2596 = vld [vmem:[%s681 + $0x258] sm:$0xf]
      %v2597 = vld [vmem:[%s681 + $0x25c] sm:$0xf]
      %v2598 = vld [vmem:[%s681 + $0x260] sm:$0xf]
      %v2599 = vld [vmem:[%s681 + $0x264] sm:$0xf]
      %v2600 = vld [vmem:[%s681 + $0x268] sm:$0xf]
      %v2601 = vld [vmem:[%s681 + $0x26c] sm:$0xf]
      %v2602 = vld [vmem:[%s681 + $0x270] sm:$0xf]
      %v2603 = vld [vmem:[%s681 + $0x274] sm:$0xf]
      %v2604 = vld [vmem:[%s681 + $0x278] sm:$0xf]
      %v2605 = vld [vmem:[%s681 + $0x27c] sm:$0xf]
      %v2606 = vld [vmem:[%s681 + $0x280] sm:$0xf]
      %v2607 = vld [vmem:[%s681 + $0x284] sm:$0xf]
      %v2608 = vld [vmem:[%s681 + $0x288] sm:$0xf]
      %v2609 = vld [vmem:[%s681 + $0x28c] sm:$0xf]
      %v2610 = vld [vmem:[%s681 + $0x290] sm:$0xf]
      %v2611 = vld [vmem:[%s681 + $0x294] sm:$0xf]
      %v2612 = vld [vmem:[%s681 + $0x298] sm:$0xf]
      %v2613 = vld [vmem:[%s681 + $0x29c] sm:$0xf]
      %v2614 = vld [vmem:[%s681 + $0x2a0] sm:$0xf]
      %v2615 = vld [vmem:[%s681 + $0x2a4] sm:$0xf]
      %v2616 = vld [vmem:[%s681 + $0x2a8] sm:$0xf]
      %v2617 = vld [vmem:[%s681 + $0x2ac] sm:$0xf]
      %v2618 = vld [vmem:[%s681 + $0x2b0] sm:$0xf]
      %v2619 = vld [vmem:[%s681 + $0x2b4] sm:$0xf]
      %v2620 = vld [vmem:[%s681 + $0x2b8] sm:$0xf]
      %v2621 = vld [vmem:[%s681 + $0x2bc] sm:$0xf]
      %v2622 = vld [vmem:[%s681 + $0x2c0] sm:$0xf]
      %v2623 = vld [vmem:[%s681 + $0x2c4] sm:$0xf]
      %v2624 = vld [vmem:[%s681 + $0x2c8] sm:$0xf]
      %v2625 = vld [vmem:[%s681 + $0x2cc] sm:$0xf]
      %v2626 = vld [vmem:[%s681 + $0x2d0] sm:$0xf]
      %v2627 = vld [vmem:[%s681 + $0x2d4] sm:$0xf]
      %v2628 = vld [vmem:[%s681 + $0x2d8] sm:$0xf]
      %v2629 = vld [vmem:[%s681 + $0x2dc] sm:$0xf]
      %v2630 = vld [vmem:[%s681 + $0x2e0] sm:$0xf]
      %v2631 = vld [vmem:[%s681 + $0x2e4] sm:$0xf]
      %v2632 = vld [vmem:[%s681 + $0x2e8] sm:$0xf]
      %v2633 = vld [vmem:[%s681 + $0x2ec] sm:$0xf]
      %v2634 = vld [vmem:[%s681 + $0x2f0] sm:$0xf]
      %v2635 = vld [vmem:[%s681 + $0x2f4] sm:$0xf]
      %v2636 = vld [vmem:[%s681 + $0x2f8] sm:$0xf]
      %v2637 = vld [vmem:[%s681 + $0x2fc] sm:$0xf]
      %v2638 = vld [vmem:[%s681 + $0x300] sm:$0xf]
      %v2639 = vld [vmem:[%s681 + $0x304] sm:$0xf]
      %v2640 = vld [vmem:[%s681 + $0x308] sm:$0xf]
      %v2641 = vld [vmem:[%s681 + $0x30c] sm:$0xf]
      %v2642 = vld [vmem:[%s681 + $0x310] sm:$0xf]
      %v2643 = vld [vmem:[%s681 + $0x314] sm:$0xf]
      %v2644 = vld [vmem:[%s681 + $0x318] sm:$0xf]
      %v2645 = vld [vmem:[%s681 + $0x31c] sm:$0xf]
      %v2646 = vld [vmem:[%s681 + $0x320] sm:$0xf]
      %v2647 = vld [vmem:[%s681 + $0x324] sm:$0xf]
      %v2648 = vld [vmem:[%s681 + $0x328] sm:$0xf]
      %v2649 = vld [vmem:[%s681 + $0x32c] sm:$0xf]
      %v2650 = vld [vmem:[%s681 + $0x330] sm:$0xf]
      %v2651 = vld [vmem:[%s681 + $0x334] sm:$0xf]
      %v2652 = vld [vmem:[%s681 + $0x338] sm:$0xf]
      %v2653 = vld [vmem:[%s681 + $0x33c] sm:$0xf]
      %v2654 = vld [vmem:[%s681 + $0x340] sm:$0xf]
      %v2655 = vld [vmem:[%s681 + $0x344] sm:$0xf]
      %v2656 = vld [vmem:[%s681 + $0x348] sm:$0xf]
      %v2657 = vld [vmem:[%s681 + $0x34c] sm:$0xf]
      %v2658 = vld [vmem:[%s681 + $0x350] sm:$0xf]
      %v2659 = vld [vmem:[%s681 + $0x354] sm:$0xf]
      %v2660 = vld [vmem:[%s681 + $0x358] sm:$0xf]
      %v2661 = vld [vmem:[%s681 + $0x35c] sm:$0xf]
      %v2662 = vld [vmem:[%s681 + $0x360] sm:$0xf]
      %v2663 = vld [vmem:[%s681 + $0x364] sm:$0xf]
      %v2664 = vld [vmem:[%s681 + $0x368] sm:$0xf]
      %v2665 = vld [vmem:[%s681 + $0x36c] sm:$0xf]
      %v2666 = vld [vmem:[%s681 + $0x370] sm:$0xf]
      %v2667 = vld [vmem:[%s681 + $0x374] sm:$0xf]
      %v2668 = vld [vmem:[%s681 + $0x378] sm:$0xf]
      %v2669 = vld [vmem:[%s681 + $0x37c] sm:$0xf]
      %v2670 = vld [vmem:[%s681 + $0x380] sm:$0xf]
      %v2671 = vld [vmem:[%s681 + $0x384] sm:$0xf]
      %v2672 = vld [vmem:[%s681 + $0x388] sm:$0xf]
      %v2673 = vld [vmem:[%s681 + $0x38c] sm:$0xf]
      %v2674 = vld [vmem:[%s681 + $0x390] sm:$0xf]
      %v2675 = vld [vmem:[%s681 + $0x394] sm:$0xf]
      %v2676 = vld [vmem:[%s681 + $0x398] sm:$0xf]
      %v2677 = vld [vmem:[%s681 + $0x39c] sm:$0xf]
      %v2678 = vld [vmem:[%s681 + $0x3a0] sm:$0xf]
      %v2679 = vld [vmem:[%s681 + $0x3a4] sm:$0xf]
      %v2680 = vld [vmem:[%s681 + $0x3a8] sm:$0xf]
      %v2681 = vld [vmem:[%s681 + $0x3ac] sm:$0xf]
      %v2682 = vld [vmem:[%s681 + $0x3b0] sm:$0xf]
      %v2683 = vld [vmem:[%s681 + $0x3b4] sm:$0xf]
      %v2684 = vld [vmem:[%s681 + $0x3b8] sm:$0xf]
      %v2685 = vld [vmem:[%s681 + $0x3bc] sm:$0xf]
      %v2686 = vld [vmem:[%s681 + $0x3c0] sm:$0xf]
      %v2687 = vld [vmem:[%s681 + $0x3c4] sm:$0xf]
      %v2688 = vld [vmem:[%s681 + $0x3c8] sm:$0xf]
      %v2689 = vld [vmem:[%s681 + $0x3cc] sm:$0xf]
      %v2690 = vld [vmem:[%s681 + $0x3d0] sm:$0xf]
      %v2691 = vld [vmem:[%s681 + $0x3d4] sm:$0xf]
      %v2692 = vld [vmem:[%s681 + $0x3d8] sm:$0xf]
      %v2693 = vld [vmem:[%s681 + $0x3dc] sm:$0xf]
      %v2694 = vld [vmem:[%s681 + $0x3e0] sm:$0xf]
      %v2695 = vld [vmem:[%s681 + $0x3e4] sm:$0xf]
      %v2696 = vld [vmem:[%s681 + $0x3e8] sm:$0xf]
      %v2697 = vld [vmem:[%s681 + $0x3ec] sm:$0xf]
      %v2698 = vld [vmem:[%s681 + $0x3f0] sm:$0xf]
      %v2699 = vld [vmem:[%s681 + $0x3f4] sm:$0xf]
      %v2700 = vld [vmem:[%s681 + $0x3f8] sm:$0xf]
      %v2701 = vld [vmem:[%s681 + $0x3fc] sm:$0xf]
      %v2702 = vld [vmem:[%s684] sm:$0x1]
      %v2704 = vperm.slane %v2702, 0
      %v2962 = vunpack.c.l.b16 %v2446
      %v2963 = vunpack.c.l.b16 %v2447
      %v2964 = vunpack.c.l.b16 %v2448
      %v2965 = vunpack.c.l.b16 %v2449
      %v2966 = vunpack.c.l.b16 %v2450
      %v2967 = vunpack.c.l.b16 %v2451
      %v2968 = vunpack.c.l.b16 %v2452
      %v2969 = vunpack.c.l.b16 %v2453
      %v2970 = vunpack.c.l.b16 %v2454
      %v2971 = vunpack.c.l.b16 %v2455
      %v2972 = vunpack.c.l.b16 %v2456
      %v2973 = vunpack.c.l.b16 %v2457
      %v2974 = vunpack.c.l.b16 %v2458
      %v2975 = vunpack.c.l.b16 %v2459
      %v2976 = vunpack.c.l.b16 %v2460
      %v2977 = vunpack.c.l.b16 %v2461
      %v2978 = vunpack.c.l.b16 %v2462
      %v2979 = vunpack.c.l.b16 %v2463
      %v2980 = vunpack.c.l.b16 %v2464
      %v2981 = vunpack.c.l.b16 %v2465
      %v2982 = vunpack.c.l.b16 %v2466
      %v2983 = vunpack.c.l.b16 %v2467
      %v2984 = vunpack.c.l.b16 %v2468
      %v2985 = vunpack.c.l.b16 %v2469
      %v2986 = vunpack.c.l.b16 %v2470
      %v2987 = vunpack.c.l.b16 %v2471
      %v2988 = vunpack.c.l.b16 %v2472
      %v2989 = vunpack.c.l.b16 %v2473
      %v2990 = vunpack.c.l.b16 %v2474
      %v2991 = vunpack.c.l.b16 %v2475
      %v2992 = vunpack.c.l.b16 %v2476
      %v2993 = vunpack.c.l.b16 %v2477
      %v2994 = vunpack.c.l.b16 %v2478
      %v2995 = vunpack.c.l.b16 %v2479
      %v2996 = vunpack.c.l.b16 %v2480
      %v2997 = vunpack.c.l.b16 %v2481
      %v2998 = vunpack.c.l.b16 %v2482
      %v2999 = vunpack.c.l.b16 %v2483
      %v3000 = vunpack.c.l.b16 %v2484
      %v3001 = vunpack.c.l.b16 %v2485
      %v3002 = vunpack.c.l.b16 %v2486
      %v3003 = vunpack.c.l.b16 %v2487
      %v3004 = vunpack.c.l.b16 %v2488
      %v3005 = vunpack.c.l.b16 %v2489
      %v3006 = vunpack.c.l.b16 %v2490
      %v3007 = vunpack.c.l.b16 %v2491
      %v3008 = vunpack.c.l.b16 %v2492
      %v3009 = vunpack.c.l.b16 %v2493
      %v3010 = vunpack.c.l.b16 %v2494
      %v3011 = vunpack.c.l.b16 %v2495
      %v3012 = vunpack.c.l.b16 %v2496
      %v3013 = vunpack.c.l.b16 %v2497
      %v3014 = vunpack.c.l.b16 %v2498
      %v3015 = vunpack.c.l.b16 %v2499
      %v3016 = vunpack.c.l.b16 %v2500
      %v3017 = vunpack.c.l.b16 %v2501
      %v3018 = vunpack.c.l.b16 %v2502
      %v3019 = vunpack.c.l.b16 %v2503
      %v3020 = vunpack.c.l.b16 %v2504
      %v3021 = vunpack.c.l.b16 %v2505
      %v3022 = vunpack.c.l.b16 %v2506
      %v3023 = vunpack.c.l.b16 %v2507
      %v3024 = vunpack.c.l.b16 %v2508
      %v3025 = vunpack.c.l.b16 %v2509
      %v3026 = vunpack.c.l.b16 %v2510
      %v3027 = vunpack.c.l.b16 %v2511
      %v3028 = vunpack.c.l.b16 %v2512
      %v3029 = vunpack.c.l.b16 %v2513
      %v3030 = vunpack.c.l.b16 %v2514
      %v3031 = vunpack.c.l.b16 %v2515
      %v3032 = vunpack.c.l.b16 %v2516
      %v3033 = vunpack.c.l.b16 %v2517
      %v3034 = vunpack.c.l.b16 %v2518
      %v3035 = vunpack.c.l.b16 %v2519
      %v3036 = vunpack.c.l.b16 %v2520
      %v3037 = vunpack.c.l.b16 %v2521
      %v3038 = vunpack.c.l.b16 %v2522
      %v3039 = vunpack.c.l.b16 %v2523
      %v3040 = vunpack.c.l.b16 %v2524
      %v3041 = vunpack.c.l.b16 %v2525
      %v3042 = vunpack.c.l.b16 %v2526
      %v3043 = vunpack.c.l.b16 %v2527
      %v3044 = vunpack.c.l.b16 %v2528
      %v3045 = vunpack.c.l.b16 %v2529
      %v3046 = vunpack.c.l.b16 %v2530
      %v3047 = vunpack.c.l.b16 %v2531
      %v3048 = vunpack.c.l.b16 %v2532
      %v3049 = vunpack.c.l.b16 %v2533
      %v3050 = vunpack.c.l.b16 %v2534
      %v3051 = vunpack.c.l.b16 %v2535
      %v3052 = vunpack.c.l.b16 %v2536
      %v3053 = vunpack.c.l.b16 %v2537
      %v3054 = vunpack.c.l.b16 %v2538
      %v3055 = vunpack.c.l.b16 %v2539
      %v3056 = vunpack.c.l.b16 %v2540
      %v3057 = vunpack.c.l.b16 %v2541
      %v3058 = vunpack.c.l.b16 %v2542
      %v3059 = vunpack.c.l.b16 %v2543
      %v3060 = vunpack.c.l.b16 %v2544
      %v3061 = vunpack.c.l.b16 %v2545
      %v3062 = vunpack.c.l.b16 %v2546
      %v3063 = vunpack.c.l.b16 %v2547
      %v3064 = vunpack.c.l.b16 %v2548
      %v3065 = vunpack.c.l.b16 %v2549
      %v3066 = vunpack.c.l.b16 %v2550
      %v3067 = vunpack.c.l.b16 %v2551
      %v3068 = vunpack.c.l.b16 %v2552
      %v3069 = vunpack.c.l.b16 %v2553
      %v3070 = vunpack.c.l.b16 %v2554
      %v3071 = vunpack.c.l.b16 %v2555
      %v3072 = vunpack.c.l.b16 %v2556
      %v3073 = vunpack.c.l.b16 %v2557
      %v3074 = vunpack.c.l.b16 %v2558
      %v3075 = vunpack.c.l.b16 %v2559
      %v3076 = vunpack.c.l.b16 %v2560
      %v3077 = vunpack.c.l.b16 %v2561
      %v3078 = vunpack.c.l.b16 %v2562
      %v3079 = vunpack.c.l.b16 %v2563
      %v3080 = vunpack.c.l.b16 %v2564
      %v3081 = vunpack.c.l.b16 %v2565
      %v3082 = vunpack.c.l.b16 %v2566
      %v3083 = vunpack.c.l.b16 %v2567
      %v3084 = vunpack.c.l.b16 %v2568
      %v3085 = vunpack.c.l.b16 %v2569
      %v3086 = vunpack.c.l.b16 %v2570
      %v3087 = vunpack.c.l.b16 %v2571
      %v3088 = vunpack.c.l.b16 %v2572
      %v3089 = vunpack.c.l.b16 %v2573
      %v3090 = vunpack.c.l.b16 %v2574
      %v3091 = vunpack.c.l.b16 %v2575
      %v3092 = vunpack.c.l.b16 %v2576
      %v3093 = vunpack.c.l.b16 %v2577
      %v3094 = vunpack.c.l.b16 %v2578
      %v3095 = vunpack.c.l.b16 %v2579
      %v3096 = vunpack.c.l.b16 %v2580
      %v3097 = vunpack.c.l.b16 %v2581
      %v3098 = vunpack.c.l.b16 %v2582
      %v3099 = vunpack.c.l.b16 %v2583
      %v3100 = vunpack.c.l.b16 %v2584
      %v3101 = vunpack.c.l.b16 %v2585
      %v3102 = vunpack.c.l.b16 %v2586
      %v3103 = vunpack.c.l.b16 %v2587
      %v3104 = vunpack.c.l.b16 %v2588
      %v3105 = vunpack.c.l.b16 %v2589
      %v3106 = vunpack.c.l.b16 %v2590
      %v3107 = vunpack.c.l.b16 %v2591
      %v3108 = vunpack.c.l.b16 %v2592
      %v3109 = vunpack.c.l.b16 %v2593
      %v3110 = vunpack.c.l.b16 %v2594
      %v3111 = vunpack.c.l.b16 %v2595
      %v3112 = vunpack.c.l.b16 %v2596
      %v3113 = vunpack.c.l.b16 %v2597
      %v3114 = vunpack.c.l.b16 %v2598
      %v3115 = vunpack.c.l.b16 %v2599
      %v3116 = vunpack.c.l.b16 %v2600
      %v3117 = vunpack.c.l.b16 %v2601
      %v3118 = vunpack.c.l.b16 %v2602
      %v3119 = vunpack.c.l.b16 %v2603
      %v3120 = vunpack.c.l.b16 %v2604
      %v3121 = vunpack.c.l.b16 %v2605
      %v3122 = vunpack.c.l.b16 %v2606
      %v3123 = vunpack.c.l.b16 %v2607
      %v3124 = vunpack.c.l.b16 %v2608
      %v3125 = vunpack.c.l.b16 %v2609
      %v3126 = vunpack.c.l.b16 %v2610
      %v3127 = vunpack.c.l.b16 %v2611
      %v3128 = vunpack.c.l.b16 %v2612
      %v3129 = vunpack.c.l.b16 %v2613
      %v3130 = vunpack.c.l.b16 %v2614
      %v3131 = vunpack.c.l.b16 %v2615
      %v3132 = vunpack.c.l.b16 %v2616
      %v3133 = vunpack.c.l.b16 %v2617
      %v3134 = vunpack.c.l.b16 %v2618
      %v3135 = vunpack.c.l.b16 %v2619
      %v3136 = vunpack.c.l.b16 %v2620
      %v3137 = vunpack.c.l.b16 %v2621
      %v3138 = vunpack.c.l.b16 %v2622
      %v3139 = vunpack.c.l.b16 %v2623
      %v3140 = vunpack.c.l.b16 %v2624
      %v3141 = vunpack.c.l.b16 %v2625
      %v3142 = vunpack.c.l.b16 %v2626
      %v3143 = vunpack.c.l.b16 %v2627
      %v3144 = vunpack.c.l.b16 %v2628
      %v3145 = vunpack.c.l.b16 %v2629
      %v3146 = vunpack.c.l.b16 %v2630
      %v3147 = vunpack.c.l.b16 %v2631
      %v3148 = vunpack.c.l.b16 %v2632
      %v3149 = vunpack.c.l.b16 %v2633
      %v3150 = vunpack.c.l.b16 %v2634
      %v3151 = vunpack.c.l.b16 %v2635
      %v3152 = vunpack.c.l.b16 %v2636
      %v3153 = vunpack.c.l.b16 %v2637
      %v3154 = vunpack.c.l.b16 %v2638
      %v3155 = vunpack.c.l.b16 %v2639
      %v3156 = vunpack.c.l.b16 %v2640
      %v3157 = vunpack.c.l.b16 %v2641
      %v3158 = vunpack.c.l.b16 %v2642
      %v3159 = vunpack.c.l.b16 %v2643
      %v3160 = vunpack.c.l.b16 %v2644
      %v3161 = vunpack.c.l.b16 %v2645
      %v3162 = vunpack.c.l.b16 %v2646
      %v3163 = vunpack.c.l.b16 %v2647
      %v3164 = vunpack.c.l.b16 %v2648
      %v3165 = vunpack.c.l.b16 %v2649
      %v3166 = vunpack.c.l.b16 %v2650
      %v3167 = vunpack.c.l.b16 %v2651
      %v3168 = vunpack.c.l.b16 %v2652
      %v3169 = vunpack.c.l.b16 %v2653
      %v3170 = vunpack.c.l.b16 %v2654
      %v3171 = vunpack.c.l.b16 %v2655
      %v3172 = vunpack.c.l.b16 %v2656
      %v3173 = vunpack.c.l.b16 %v2657
      %v3174 = vunpack.c.l.b16 %v2658
      %v3175 = vunpack.c.l.b16 %v2659
      %v3176 = vunpack.c.l.b16 %v2660
      %v3177 = vunpack.c.l.b16 %v2661
      %v3178 = vunpack.c.l.b16 %v2662
      %v3179 = vunpack.c.l.b16 %v2663
      %v3180 = vunpack.c.l.b16 %v2664
      %v3181 = vunpack.c.l.b16 %v2665
      %v3182 = vunpack.c.l.b16 %v2666
      %v3183 = vunpack.c.l.b16 %v2667
      %v3184 = vunpack.c.l.b16 %v2668
      %v3185 = vunpack.c.l.b16 %v2669
      %v3186 = vunpack.c.l.b16 %v2670
      %v3187 = vunpack.c.l.b16 %v2671
      %v3188 = vunpack.c.l.b16 %v2672
      %v3189 = vunpack.c.l.b16 %v2673
      %v3190 = vunpack.c.l.b16 %v2674
      %v3191 = vunpack.c.l.b16 %v2675
      %v3192 = vunpack.c.l.b16 %v2676
      %v3193 = vunpack.c.l.b16 %v2677
      %v3194 = vunpack.c.l.b16 %v2678
      %v3195 = vunpack.c.l.b16 %v2679
      %v3196 = vunpack.c.l.b16 %v2680
      %v3197 = vunpack.c.l.b16 %v2681
      %v3198 = vunpack.c.l.b16 %v2682
      %v3199 = vunpack.c.l.b16 %v2683
      %v3200 = vunpack.c.l.b16 %v2684
      %v3201 = vunpack.c.l.b16 %v2685
      %v3202 = vunpack.c.l.b16 %v2686
      %v3203 = vunpack.c.l.b16 %v2687
      %v3204 = vunpack.c.l.b16 %v2688
      %v3205 = vunpack.c.l.b16 %v2689
      %v3206 = vunpack.c.l.b16 %v2690
      %v3207 = vunpack.c.l.b16 %v2691
      %v3208 = vunpack.c.l.b16 %v2692
      %v3209 = vunpack.c.l.b16 %v2693
      %v3210 = vunpack.c.l.b16 %v2694
      %v3211 = vunpack.c.l.b16 %v2695
      %v3212 = vunpack.c.l.b16 %v2696
      %v3213 = vunpack.c.l.b16 %v2697
      %v3214 = vunpack.c.l.b16 %v2698
      %v3215 = vunpack.c.l.b16 %v2699
      %v3216 = vunpack.c.l.b16 %v2700
      %v3217 = vunpack.c.l.b16 %v2701
      %v3218 = vpack.c.b16 %v2963, %v2962
      %v3219 = vpack.c.b16 %v2965, %v2964
      %v3220 = vpack.c.b16 %v2967, %v2966
      %v3221 = vpack.c.b16 %v2969, %v2968
      %v3222 = vpack.c.b16 %v2971, %v2970
      %v3223 = vpack.c.b16 %v2973, %v2972
      %v3224 = vpack.c.b16 %v2975, %v2974
      %v3225 = vpack.c.b16 %v2977, %v2976
      %v3226 = vpack.c.b16 %v2979, %v2978
      %v3227 = vpack.c.b16 %v2981, %v2980
      %v3228 = vpack.c.b16 %v2983, %v2982
      %v3229 = vpack.c.b16 %v2985, %v2984
      %v3230 = vpack.c.b16 %v2987, %v2986
      %v3231 = vpack.c.b16 %v2989, %v2988
      %v3232 = vpack.c.b16 %v2991, %v2990
      %v3233 = vpack.c.b16 %v2993, %v2992
      %v3234 = vpack.c.b16 %v2995, %v2994
      %v3235 = vpack.c.b16 %v2997, %v2996
      %v3236 = vpack.c.b16 %v2999, %v2998
      %v3237 = vpack.c.b16 %v3001, %v3000
      %v3238 = vpack.c.b16 %v3003, %v3002
      %v3239 = vpack.c.b16 %v3005, %v3004
      %v3240 = vpack.c.b16 %v3007, %v3006
      %v3241 = vpack.c.b16 %v3009, %v3008
      %v3242 = vpack.c.b16 %v3011, %v3010
      %v3243 = vpack.c.b16 %v3013, %v3012
      %v3244 = vpack.c.b16 %v3015, %v3014
      %v3245 = vpack.c.b16 %v3017, %v3016
      %v3246 = vpack.c.b16 %v3019, %v3018
      %v3247 = vpack.c.b16 %v3021, %v3020
      %v3248 = vpack.c.b16 %v3023, %v3022
      %v3249 = vpack.c.b16 %v3025, %v3024
      %v3250 = vpack.c.b16 %v3027, %v3026
      %v3251 = vpack.c.b16 %v3029, %v3028
      %v3252 = vpack.c.b16 %v3031, %v3030
      %v3253 = vpack.c.b16 %v3033, %v3032
      %v3254 = vpack.c.b16 %v3035, %v3034
      %v3255 = vpack.c.b16 %v3037, %v3036
      %v3256 = vpack.c.b16 %v3039, %v3038
      %v3257 = vpack.c.b16 %v3041, %v3040
      %v3258 = vpack.c.b16 %v3043, %v3042
      %v3259 = vpack.c.b16 %v3045, %v3044
      %v3260 = vpack.c.b16 %v3047, %v3046
      %v3261 = vpack.c.b16 %v3049, %v3048
      %v3262 = vpack.c.b16 %v3051, %v3050
      %v3263 = vpack.c.b16 %v3053, %v3052
      %v3264 = vpack.c.b16 %v3055, %v3054
      %v3265 = vpack.c.b16 %v3057, %v3056
      %v3266 = vpack.c.b16 %v3059, %v3058
      %v3267 = vpack.c.b16 %v3061, %v3060
      %v3268 = vpack.c.b16 %v3063, %v3062
      %v3269 = vpack.c.b16 %v3065, %v3064
      %v3270 = vpack.c.b16 %v3067, %v3066
      %v3271 = vpack.c.b16 %v3069, %v3068
      %v3272 = vpack.c.b16 %v3071, %v3070
      %v3273 = vpack.c.b16 %v3073, %v3072
      %v3274 = vpack.c.b16 %v3075, %v3074
      %v3275 = vpack.c.b16 %v3077, %v3076
      %v3276 = vpack.c.b16 %v3079, %v3078
      %v3277 = vpack.c.b16 %v3081, %v3080
      %v3278 = vpack.c.b16 %v3083, %v3082
      %v3279 = vpack.c.b16 %v3085, %v3084
      %v3280 = vpack.c.b16 %v3087, %v3086
      %v3281 = vpack.c.b16 %v3089, %v3088
      %v3282 = vpack.c.b16 %v3091, %v3090
      %v3283 = vpack.c.b16 %v3093, %v3092
      %v3284 = vpack.c.b16 %v3095, %v3094
      %v3285 = vpack.c.b16 %v3097, %v3096
      %v3286 = vpack.c.b16 %v3099, %v3098
      %v3287 = vpack.c.b16 %v3101, %v3100
      %v3288 = vpack.c.b16 %v3103, %v3102
      %v3289 = vpack.c.b16 %v3105, %v3104
      %v3290 = vpack.c.b16 %v3107, %v3106
      %v3291 = vpack.c.b16 %v3109, %v3108
      %v3292 = vpack.c.b16 %v3111, %v3110
      %v3293 = vpack.c.b16 %v3113, %v3112
      %v3294 = vpack.c.b16 %v3115, %v3114
      %v3295 = vpack.c.b16 %v3117, %v3116
      %v3296 = vpack.c.b16 %v3119, %v3118
      %v3297 = vpack.c.b16 %v3121, %v3120
      %v3298 = vpack.c.b16 %v3123, %v3122
      %v3299 = vpack.c.b16 %v3125, %v3124
      %v3300 = vpack.c.b16 %v3127, %v3126
      %v3301 = vpack.c.b16 %v3129, %v3128
      %v3302 = vpack.c.b16 %v3131, %v3130
      %v3303 = vpack.c.b16 %v3133, %v3132
      %v3304 = vpack.c.b16 %v3135, %v3134
      %v3305 = vpack.c.b16 %v3137, %v3136
      %v3306 = vpack.c.b16 %v3139, %v3138
      %v3307 = vpack.c.b16 %v3141, %v3140
      %v3308 = vpack.c.b16 %v3143, %v3142
      %v3309 = vpack.c.b16 %v3145, %v3144
      %v3310 = vpack.c.b16 %v3147, %v3146
      %v3311 = vpack.c.b16 %v3149, %v3148
      %v3312 = vpack.c.b16 %v3151, %v3150
      %v3313 = vpack.c.b16 %v3153, %v3152
      %v3314 = vpack.c.b16 %v3155, %v3154
      %v3315 = vpack.c.b16 %v3157, %v3156
      %v3316 = vpack.c.b16 %v3159, %v3158
      %v3317 = vpack.c.b16 %v3161, %v3160
      %v3318 = vpack.c.b16 %v3163, %v3162
      %v3319 = vpack.c.b16 %v3165, %v3164
      %v3320 = vpack.c.b16 %v3167, %v3166
      %v3321 = vpack.c.b16 %v3169, %v3168
      %v3322 = vpack.c.b16 %v3171, %v3170
      %v3323 = vpack.c.b16 %v3173, %v3172
      %v3324 = vpack.c.b16 %v3175, %v3174
      %v3325 = vpack.c.b16 %v3177, %v3176
      %v3326 = vpack.c.b16 %v3179, %v3178
      %v3327 = vpack.c.b16 %v3181, %v3180
      %v3328 = vpack.c.b16 %v3183, %v3182
      %v3329 = vpack.c.b16 %v3185, %v3184
      %v3330 = vpack.c.b16 %v3187, %v3186
      %v3331 = vpack.c.b16 %v3189, %v3188
      %v3332 = vpack.c.b16 %v3191, %v3190
      %v3333 = vpack.c.b16 %v3193, %v3192
      %v3334 = vpack.c.b16 %v3195, %v3194
      %v3335 = vpack.c.b16 %v3197, %v3196
      %v3336 = vpack.c.b16 %v3199, %v3198
      %v3337 = vpack.c.b16 %v3201, %v3200
      %v3338 = vpack.c.b16 %v3203, %v3202
      %v3339 = vpack.c.b16 %v3205, %v3204
      %v3340 = vpack.c.b16 %v3207, %v3206
      %v3341 = vpack.c.b16 %v3209, %v3208
      %v3342 = vpack.c.b16 %v3211, %v3210
      %v3343 = vpack.c.b16 %v3213, %v3212
      %v3344 = vpack.c.b16 %v3215, %v3214
      %v3345 = vpack.c.b16 %v3217, %v3216
      %3474 = vmatpush.bf16.msra.mxu0 %v3225
      %3475 = vmatpush.bf16.msra.mxu0 %v3224
      %3476 = vmatpush.bf16.msra.mxu0 %v3223
      %3477 = vmatpush.bf16.msra.mxu0 %v3222
      %3478 = vmatpush.bf16.msra.mxu0 %v3221
      %3479 = vmatpush.bf16.msra.mxu0 %v3220
      %3480 = vmatpush.bf16.msra.mxu0 %v3219
      %3481 = vmatpush.bf16.msra.mxu0 %v3218
      %3482 = vmatmul.bf16.gmra.mxu0 %v2430
      %v3483 = vpop.f32.mrf.mxu0
      %v3484 = vadd.f32 %v2704, %v3483
      %v3485 = vpop.f32.mrf.mxu0
      %v3486 = vadd.f32 %v2704, %v3485
      %3487 = vdwg.mxu0
      %3488 = vmatpush.bf16.msra.mxu0 %v3233
      %3489 = vmatpush.bf16.msra.mxu0 %v3232
      %3490 = vmatpush.bf16.msra.mxu0 %v3231
      %3491 = vmatpush.bf16.msra.mxu0 %v3230
      %3492 = vmatpush.bf16.msra.mxu0 %v3229
      %3493 = vmatpush.bf16.msra.mxu0 %v3228
      %3494 = vmatpush.bf16.msra.mxu0 %v3227
      %3495 = vmatpush.bf16.msra.mxu0 %v3226
      %3496 = vmatmul.bf16.gmra.mxu0 %v2431
      %v3497 = vpop.f32.mrf.mxu0
      %v3498 = vadd.f32 %v3484, %v3497
      %v3499 = vpop.f32.mrf.mxu0
      %v3500 = vadd.f32 %v3486, %v3499
      %3501 = vdwg.mxu0
      %3502 = vmatpush.bf16.msra.mxu0 %v3241
      %3503 = vmatpush.bf16.msra.mxu0 %v3240
      %3504 = vmatpush.bf16.msra.mxu0 %v3239
      %3505 = vmatpush.bf16.msra.mxu0 %v3238
      %3506 = vmatpush.bf16.msra.mxu0 %v3237
      %3507 = vmatpush.bf16.msra.mxu0 %v3236
      %3508 = vmatpush.bf16.msra.mxu0 %v3235
      %3509 = vmatpush.bf16.msra.mxu0 %v3234
      %3510 = vmatmul.bf16.gmra.mxu0 %v2432
      %v3511 = vpop.f32.mrf.mxu0
      %v3512 = vadd.f32 %v3498, %v3511
      %v3513 = vpop.f32.mrf.mxu0
      %v3514 = vadd.f32 %v3500, %v3513
      %3515 = vdwg.mxu0
      %3516 = vmatpush.bf16.msra.mxu0 %v3249
      %3517 = vmatpush.bf16.msra.mxu0 %v3248
      %3518 = vmatpush.bf16.msra.mxu0 %v3247
      %3519 = vmatpush.bf16.msra.mxu0 %v3246
      %3520 = vmatpush.bf16.msra.mxu0 %v3245
      %3521 = vmatpush.bf16.msra.mxu0 %v3244
      %3522 = vmatpush.bf16.msra.mxu0 %v3243
      %3523 = vmatpush.bf16.msra.mxu0 %v3242
      %3524 = vmatmul.bf16.gmra.mxu0 %v2433
      %v3525 = vpop.f32.mrf.mxu0
      %v3526 = vadd.f32 %v3512, %v3525
      %v3527 = vpop.f32.mrf.mxu0
      %v3528 = vadd.f32 %v3514, %v3527
      %3529 = vdwg.mxu0
      %3530 = vmatpush.bf16.msra.mxu0 %v3257
      %3531 = vmatpush.bf16.msra.mxu0 %v3256
      %3532 = vmatpush.bf16.msra.mxu0 %v3255
      %3533 = vmatpush.bf16.msra.mxu0 %v3254
      %3534 = vmatpush.bf16.msra.mxu0 %v3253
      %3535 = vmatpush.bf16.msra.mxu0 %v3252
      %3536 = vmatpush.bf16.msra.mxu0 %v3251
      %3537 = vmatpush.bf16.msra.mxu0 %v3250
      %3538 = vmatmul.bf16.gmra.mxu0 %v2434
      %v3539 = vpop.f32.mrf.mxu0
      %v3540 = vadd.f32 %v3526, %v3539
      %v3541 = vpop.f32.mrf.mxu0
      %v3542 = vadd.f32 %v3528, %v3541
      %3543 = vdwg.mxu0
      %3544 = vmatpush.bf16.msra.mxu0 %v3265
      %3545 = vmatpush.bf16.msra.mxu0 %v3264
      %3546 = vmatpush.bf16.msra.mxu0 %v3263
      %3547 = vmatpush.bf16.msra.mxu0 %v3262
      %3548 = vmatpush.bf16.msra.mxu0 %v3261
      %3549 = vmatpush.bf16.msra.mxu0 %v3260
      %3550 = vmatpush.bf16.msra.mxu0 %v3259
      %3551 = vmatpush.bf16.msra.mxu0 %v3258
      %3552 = vmatmul.bf16.gmra.mxu0 %v2435
      %v3553 = vpop.f32.mrf.mxu0
      %v3554 = vadd.f32 %v3540, %v3553
      %v3555 = vpop.f32.mrf.mxu0
      %v3556 = vadd.f32 %v3542, %v3555
      %3557 = vdwg.mxu0
      %3558 = vmatpush.bf16.msra.mxu0 %v3273
      %3559 = vmatpush.bf16.msra.mxu0 %v3272
      %3560 = vmatpush.bf16.msra.mxu0 %v3271
      %3561 = vmatpush.bf16.msra.mxu0 %v3270
      %3562 = vmatpush.bf16.msra.mxu0 %v3269
      %3563 = vmatpush.bf16.msra.mxu0 %v3268
      %3564 = vmatpush.bf16.msra.mxu0 %v3267
      %3565 = vmatpush.bf16.msra.mxu0 %v3266
      %3566 = vmatmul.bf16.gmra.mxu0 %v2436
      %v3567 = vpop.f32.mrf.mxu0
      %v3568 = vadd.f32 %v3554, %v3567
      %v3569 = vpop.f32.mrf.mxu0
      %v3570 = vadd.f32 %v3556, %v3569
      %3571 = vdwg.mxu0
      %3572 = vmatpush.bf16.msra.mxu0 %v3281
      %3573 = vmatpush.bf16.msra.mxu0 %v3280
      %3574 = vmatpush.bf16.msra.mxu0 %v3279
      %3575 = vmatpush.bf16.msra.mxu0 %v3278
      %3576 = vmatpush.bf16.msra.mxu0 %v3277
      %3577 = vmatpush.bf16.msra.mxu0 %v3276
      %3578 = vmatpush.bf16.msra.mxu0 %v3275
      %3579 = vmatpush.bf16.msra.mxu0 %v3274
      %3580 = vmatmul.bf16.gmra.mxu0 %v2437
      %v3581 = vpop.f32.mrf.mxu0
      %v3582 = vadd.f32 %v3568, %v3581
      %v3583 = vpop.f32.mrf.mxu0
      %v3584 = vadd.f32 %v3570, %v3583
      %3585 = vdwg.mxu0
      %3586 = vmatpush.bf16.msra.mxu0 %v3289
      %3587 = vmatpush.bf16.msra.mxu0 %v3288
      %3588 = vmatpush.bf16.msra.mxu0 %v3287
      %3589 = vmatpush.bf16.msra.mxu0 %v3286
      %3590 = vmatpush.bf16.msra.mxu0 %v3285
      %3591 = vmatpush.bf16.msra.mxu0 %v3284
      %3592 = vmatpush.bf16.msra.mxu0 %v3283
      %3593 = vmatpush.bf16.msra.mxu0 %v3282
      %3594 = vmatmul.bf16.gmra.mxu0 %v2438
      %v3595 = vpop.f32.mrf.mxu0
      %v3596 = vadd.f32 %v3582, %v3595
      %v3597 = vpop.f32.mrf.mxu0
      %v3598 = vadd.f32 %v3584, %v3597
      %3599 = vdwg.mxu0
      %3600 = vmatpush.bf16.msra.mxu0 %v3297
      %3601 = vmatpush.bf16.msra.mxu0 %v3296
      %3602 = vmatpush.bf16.msra.mxu0 %v3295
      %3603 = vmatpush.bf16.msra.mxu0 %v3294
      %3604 = vmatpush.bf16.msra.mxu0 %v3293
      %3605 = vmatpush.bf16.msra.mxu0 %v3292
      %3606 = vmatpush.bf16.msra.mxu0 %v3291
      %3607 = vmatpush.bf16.msra.mxu0 %v3290
      %3608 = vmatmul.bf16.gmra.mxu0 %v2439
      %v3609 = vpop.f32.mrf.mxu0
      %v3610 = vadd.f32 %v3596, %v3609
      %v3611 = vpop.f32.mrf.mxu0
      %v3612 = vadd.f32 %v3598, %v3611
      %3613 = vdwg.mxu0
      %3614 = vmatpush.bf16.msra.mxu0 %v3305
      %3615 = vmatpush.bf16.msra.mxu0 %v3304
      %3616 = vmatpush.bf16.msra.mxu0 %v3303
      %3617 = vmatpush.bf16.msra.mxu0 %v3302
      %3618 = vmatpush.bf16.msra.mxu0 %v3301
      %3619 = vmatpush.bf16.msra.mxu0 %v3300
      %3620 = vmatpush.bf16.msra.mxu0 %v3299
      %3621 = vmatpush.bf16.msra.mxu0 %v3298
      %3622 = vmatmul.bf16.gmra.mxu0 %v2440
      %v3623 = vpop.f32.mrf.mxu0
      %v3624 = vadd.f32 %v3610, %v3623
      %v3625 = vpop.f32.mrf.mxu0
      %v3626 = vadd.f32 %v3612, %v3625
      %3627 = vdwg.mxu0
      %3628 = vmatpush.bf16.msra.mxu0 %v3313
      %3629 = vmatpush.bf16.msra.mxu0 %v3312
      %3630 = vmatpush.bf16.msra.mxu0 %v3311
      %3631 = vmatpush.bf16.msra.mxu0 %v3310
      %3632 = vmatpush.bf16.msra.mxu0 %v3309
      %3633 = vmatpush.bf16.msra.mxu0 %v3308
      %3634 = vmatpush.bf16.msra.mxu0 %v3307
      %3635 = vmatpush.bf16.msra.mxu0 %v3306
      %3636 = vmatmul.bf16.gmra.mxu0 %v2441
      %v3637 = vpop.f32.mrf.mxu0
      %v3638 = vadd.f32 %v3624, %v3637
      %v3639 = vpop.f32.mrf.mxu0
      %v3640 = vadd.f32 %v3626, %v3639
      %3641 = vdwg.mxu0
      %3642 = vmatpush.bf16.msra.mxu0 %v3321
      %3643 = vmatpush.bf16.msra.mxu0 %v3320
      %3644 = vmatpush.bf16.msra.mxu0 %v3319
      %3645 = vmatpush.bf16.msra.mxu0 %v3318
      %3646 = vmatpush.bf16.msra.mxu0 %v3317
      %3647 = vmatpush.bf16.msra.mxu0 %v3316
      %3648 = vmatpush.bf16.msra.mxu0 %v3315
      %3649 = vmatpush.bf16.msra.mxu0 %v3314
      %3650 = vmatmul.bf16.gmra.mxu0 %v2442
      %v3651 = vpop.f32.mrf.mxu0
      %v3652 = vadd.f32 %v3638, %v3651
      %v3653 = vpop.f32.mrf.mxu0
      %v3654 = vadd.f32 %v3640, %v3653
      %3655 = vdwg.mxu0
      %3656 = vmatpush.bf16.msra.mxu0 %v3329
      %3657 = vmatpush.bf16.msra.mxu0 %v3328
      %3658 = vmatpush.bf16.msra.mxu0 %v3327
      %3659 = vmatpush.bf16.msra.mxu0 %v3326
      %3660 = vmatpush.bf16.msra.mxu0 %v3325
      %3661 = vmatpush.bf16.msra.mxu0 %v3324
      %3662 = vmatpush.bf16.msra.mxu0 %v3323
      %3663 = vmatpush.bf16.msra.mxu0 %v3322
      %3664 = vmatmul.bf16.gmra.mxu0 %v2443
      %v3665 = vpop.f32.mrf.mxu0
      %v3666 = vadd.f32 %v3652, %v3665
      %v3667 = vpop.f32.mrf.mxu0
      %v3668 = vadd.f32 %v3654, %v3667
      %3669 = vdwg.mxu0
      %3670 = vmatpush.bf16.msra.mxu0 %v3337
      %3671 = vmatpush.bf16.msra.mxu0 %v3336
      %3672 = vmatpush.bf16.msra.mxu0 %v3335
      %3673 = vmatpush.bf16.msra.mxu0 %v3334
      %3674 = vmatpush.bf16.msra.mxu0 %v3333
      %3675 = vmatpush.bf16.msra.mxu0 %v3332
      %3676 = vmatpush.bf16.msra.mxu0 %v3331
      %3677 = vmatpush.bf16.msra.mxu0 %v3330
      %3678 = vmatmul.bf16.gmra.mxu0 %v2444
      %v3679 = vpop.f32.mrf.mxu0
      %v3680 = vadd.f32 %v3666, %v3679
      %v3681 = vpop.f32.mrf.mxu0
      %v3682 = vadd.f32 %v3668, %v3681
      %3683 = vdwg.mxu0
      %3684 = vmatpush.bf16.msra.mxu0 %v3345
      %3685 = vmatpush.bf16.msra.mxu0 %v3344
      %3686 = vmatpush.bf16.msra.mxu0 %v3343
      %3687 = vmatpush.bf16.msra.mxu0 %v3342
      %3688 = vmatpush.bf16.msra.mxu0 %v3341
      %3689 = vmatpush.bf16.msra.mxu0 %v3340
      %3690 = vmatpush.bf16.msra.mxu0 %v3339
      %3691 = vmatpush.bf16.msra.mxu0 %v3338
      %3692 = vmatmul.bf16.gmra.mxu0 %v2445
      %v3693 = vpop.f32.mrf.mxu0
      %v3694 = vadd.f32 %v3680, %v3693
      %v3695 = vpop.f32.mrf.mxu0
      %v3696 = vadd.f32 %v3682, %v3695
      %3697 = vdwg.mxu0
      %v3698 = vadd.f32 %v1748, %v3694
      %v3699 = vadd.f32 %v1749, %v3696
      %v3700 = vsel %vm752, %v3698, 0.0
      %3701 = vadd.xlane.f32.xlu0 %v3700
      %v3702 = vpop.xlane.xlu0 %3701
      %v3703 = vsel %vm752, %v3699, 0.0
      %3704 = vadd.xlane.f32.xlu0 %v3703
      %v3705 = vpop.xlane.xlu0 %3704
      %v3706 = vmul.f32 %v3702, %v1699
      %v3707 = vmul.f32 %v3705, %v1699
      %v3708 = vsub.f32 %v3698, %v3706
      %v3709 = vsub.f32 %v3699, %v3707
      %v3710 = vmul.f32 %v3708, %v3708
      %v3711 = vmul.f32 %v3709, %v3709
      %v3712 = vsel %vm752, %v3710, 0.0
      %3713 = vadd.xlane.f32.xlu0 %v3712
      %v3714 = vpop.xlane.xlu0 %3713
      %v3715 = vsel %vm752, %v3711, 0.0
      %3716 = vadd.xlane.f32.xlu0 %v3715
      %v3717 = vpop.xlane.xlu0 %3716
      %v3718 = vmul.f32 %v3714, %v1699
      %v3719 = vmul.f32 %v3717, %v1699
      %v3720 = vadd.f32 %v3718, 1e-05
      %v3721 = vadd.f32 %v3719, 1e-05
      %v3722 = vrsqrt.pop %v3720
      %v3723 = vmul.f32 %v3722, %v3720
      %v3724 = vmul.f32 %v3723, %v3722
      %v3725 = vmul.f32 0.5, %v3724
      %v3726 = vsub.f32 1.5, %v3725
      %v3727 = vmul.f32 %v3722, %v3726
      %vm3728 = vweird.f32 %v3720
      %vm3729 = vweird.f32 %v3722
      %vm3730 = vmor %vm3728, %vm3729
      %v3731 = vsel %vm3730, %v3722, %v3727
      %v3732 = vrsqrt.pop %v3721
      %v3733 = vmul.f32 %v3732, %v3721
      %v3734 = vmul.f32 %v3733, %v3732
      %v3735 = vmul.f32 0.5, %v3734
      %v3736 = vsub.f32 1.5, %v3735
      %v3737 = vmul.f32 %v3732, %v3736
      %vm3738 = vweird.f32 %v3721
      %vm3739 = vweird.f32 %v3732
      %vm3740 = vmor %vm3738, %vm3739
      %v3741 = vsel %vm3740, %v3732, %v3737
      %v3742 = vmul.f32 %v3708, %v3731
      %v3743 = vmul.f32 %v3709, %v3741
      %v3744 = vld [vmem:[%s664] sm:$0x1]
      %v3746 = vperm.slane %v3744, 0
      %v3748 = vmul.f32 %v3742, %v3746
      %v3749 = vmul.f32 %v3743, %v3746
      %v3750 = vld [vmem:[%s667] sm:$0x1]
      %v3752 = vperm.slane %v3750, 0
      %v3754 = vadd.f32 %v3748, %v3752
      %v3755 = vadd.f32 %v3749, %v3752
      %3756 = vst.msk [vmem:[#allocation2] sm:$0xff] %vm752, %v3754
      %3757 = vst.msk [vmem:[#allocation2 + $0x8] sm:$0xff] %vm752, %v3755
      %p3758 = scmp.eq.s32.totalorder %s27, 6
      // Predicated region
      $region89: #{forward.1} parent=83 // pred_check
        %p3759 = pneg %p3758
      $region90: #{forward.1} parent=83 // pred_check_branch
        %3761 = sbr.rel (%p3759) target = $region92
      $region91: #{forward.1} parent=83 // pred_region
        %v3762 = vpack.c.bf16 %v3755, %v3754
        %v3763 = vld [vmem:[%s14] sm:$0xff]
        %v3764 = vld [vmem:[%s14 + $0x8] sm:$0xff]
        %v3765 = vld [vmem:[%s14 + $0x10] sm:$0xff]
        %v3766 = vld [vmem:[%s14 + $0x18] sm:$0xff]
        %v3767 = vld [vmem:[%s14 + $0x20] sm:$0xff]
        %v3768 = vld [vmem:[%s14 + $0x28] sm:$0xff]
        %v3769 = vld [vmem:[%s14 + $0x30] sm:$0xff]
        %v3770 = vld [vmem:[%s14 + $0x38] sm:$0xff]
        %v3771 = vld [vmem:[%s14 + $0x40] sm:$0xff]
        %v3772 = vld [vmem:[%s14 + $0x48] sm:$0xff]
        %v3773 = vld [vmem:[%s14 + $0x50] sm:$0xff]
        %v3774 = vld [vmem:[%s14 + $0x58] sm:$0xff]
        %v3775 = vld [vmem:[%s14 + $0x60] sm:$0xff]
        %v3776 = vld [vmem:[%s14 + $0x68] sm:$0xff]
        %v3777 = vld [vmem:[%s14 + $0x70] sm:$0xff]
        %v3778 = vld [vmem:[%s14 + $0x78] sm:$0xff]
        %v3779 = vld [vmem:[%s14 + $0x80] sm:$0xff]
        %v3780 = vld [vmem:[%s14 + $0x88] sm:$0xff]
        %v3781 = vld [vmem:[%s14 + $0x90] sm:$0xff]
        %v3782 = vld [vmem:[%s14 + $0x98] sm:$0xff]
        %v3783 = vld [vmem:[%s14 + $0xa0] sm:$0xff]
        %v3784 = vld [vmem:[%s14 + $0xa8] sm:$0xff]
        %v3785 = vld [vmem:[%s14 + $0xb0] sm:$0xff]
        %v3786 = vld [vmem:[%s14 + $0xb8] sm:$0xff]
        %v3787 = vld [vmem:[%s14 + $0xc0] sm:$0xff]
        %v3788 = vld [vmem:[%s14 + $0xc8] sm:$0xff]
        %v3789 = vld [vmem:[%s14 + $0xd0] sm:$0xff]
        %v3790 = vld [vmem:[%s14 + $0xd8] sm:$0xff]
        %v3791 = vld [vmem:[%s14 + $0xe0] sm:$0xff]
        %v3792 = vld [vmem:[%s14 + $0xe8] sm:$0xff]
        %v3793 = vld [vmem:[%s14 + $0xf0] sm:$0xff]
        %v3794 = vld [vmem:[%s14 + $0xf8] sm:$0xff]
        %v3795 = vld [vmem:[%s15] sm:$0xff]
        %v3797 = vperm.slane %v3795, 0
        %v3798 = vperm.slane %v3795, 1
        %v3799 = vperm.slane %v3795, 2
        %v3800 = vperm.slane %v3795, 3
        %v3801 = vperm.slane %v3795, 4
        %v3802 = vperm.slane %v3795, 5
        %v3803 = vperm.slane %v3795, 6
        %v3804 = vperm.slane %v3795, 7
        %v3845 = vunpack.c.l.b16 %v3763
        %v3846 = vunpack.c.h.b16 %v3763
        %v3847 = vunpack.c.l.b16 %v3764
        %v3848 = vunpack.c.h.b16 %v3764
        %v3849 = vunpack.c.l.b16 %v3765
        %v3850 = vunpack.c.h.b16 %v3765
        %v3851 = vunpack.c.l.b16 %v3766
        %v3852 = vunpack.c.h.b16 %v3766
        %v3853 = vunpack.c.l.b16 %v3767
        %v3854 = vunpack.c.h.b16 %v3767
        %v3855 = vunpack.c.l.b16 %v3768
        %v3856 = vunpack.c.h.b16 %v3768
        %v3857 = vunpack.c.l.b16 %v3769
        %v3858 = vunpack.c.h.b16 %v3769
        %v3859 = vunpack.c.l.b16 %v3770
        %v3860 = vunpack.c.h.b16 %v3770
        %v3861 = vunpack.c.l.b16 %v3771
        %v3862 = vunpack.c.h.b16 %v3771
        %v3863 = vunpack.c.l.b16 %v3772
        %v3864 = vunpack.c.h.b16 %v3772
        %v3865 = vunpack.c.l.b16 %v3773
        %v3866 = vunpack.c.h.b16 %v3773
        %v3867 = vunpack.c.l.b16 %v3774
        %v3868 = vunpack.c.h.b16 %v3774
        %v3869 = vunpack.c.l.b16 %v3775
        %v3870 = vunpack.c.h.b16 %v3775
        %v3871 = vunpack.c.l.b16 %v3776
        %v3872 = vunpack.c.h.b16 %v3776
        %v3873 = vunpack.c.l.b16 %v3777
        %v3874 = vunpack.c.h.b16 %v3777
        %v3875 = vunpack.c.l.b16 %v3778
        %v3876 = vunpack.c.h.b16 %v3778
        %v3877 = vunpack.c.l.b16 %v3779
        %v3878 = vunpack.c.h.b16 %v3779
        %v3879 = vunpack.c.l.b16 %v3780
        %v3880 = vunpack.c.h.b16 %v3780
        %v3881 = vunpack.c.l.b16 %v3781
        %v3882 = vunpack.c.h.b16 %v3781
        %v3883 = vunpack.c.l.b16 %v3782
        %v3884 = vunpack.c.h.b16 %v3782
        %v3885 = vunpack.c.l.b16 %v3783
        %v3886 = vunpack.c.h.b16 %v3783
        %v3887 = vunpack.c.l.b16 %v3784
        %v3888 = vunpack.c.h.b16 %v3784
        %v3889 = vunpack.c.l.b16 %v3785
        %v3890 = vunpack.c.h.b16 %v3785
        %v3891 = vunpack.c.l.b16 %v3786
        %v3892 = vunpack.c.h.b16 %v3786
        %v3893 = vunpack.c.l.b16 %v3787
        %v3894 = vunpack.c.h.b16 %v3787
        %v3895 = vunpack.c.l.b16 %v3788
        %v3896 = vunpack.c.h.b16 %v3788
        %v3897 = vunpack.c.l.b16 %v3789
        %v3898 = vunpack.c.h.b16 %v3789
        %v3899 = vunpack.c.l.b16 %v3790
        %v3900 = vunpack.c.h.b16 %v3790
        %v3901 = vunpack.c.l.b16 %v3791
        %v3902 = vunpack.c.h.b16 %v3791
        %v3903 = vunpack.c.l.b16 %v3792
        %v3904 = vunpack.c.h.b16 %v3792
        %v3905 = vunpack.c.l.b16 %v3793
        %v3906 = vunpack.c.h.b16 %v3793
        %v3907 = vunpack.c.l.b16 %v3794
        %v3908 = vunpack.c.h.b16 %v3794
        %v3909 = vpack.c.b16 %v3853, %v3845
        %v3910 = vpack.c.b16 %v3854, %v3846
        %v3911 = vpack.c.b16 %v3855, %v3847
        %v3912 = vpack.c.b16 %v3856, %v3848
        %v3913 = vpack.c.b16 %v3857, %v3849
        %v3914 = vpack.c.b16 %v3858, %v3850
        %v3915 = vpack.c.b16 %v3859, %v3851
        %v3916 = vpack.c.b16 %v3860, %v3852
        %v3917 = vpack.c.b16 %v3869, %v3861
        %v3918 = vpack.c.b16 %v3870, %v3862
        %v3919 = vpack.c.b16 %v3871, %v3863
        %v3920 = vpack.c.b16 %v3872, %v3864
        %v3921 = vpack.c.b16 %v3873, %v3865
        %v3922 = vpack.c.b16 %v3874, %v3866
        %v3923 = vpack.c.b16 %v3875, %v3867
        %v3924 = vpack.c.b16 %v3876, %v3868
        %v3925 = vpack.c.b16 %v3885, %v3877
        %v3926 = vpack.c.b16 %v3886, %v3878
        %v3927 = vpack.c.b16 %v3887, %v3879
        %v3928 = vpack.c.b16 %v3888, %v3880
        %v3929 = vpack.c.b16 %v3889, %v3881
        %v3930 = vpack.c.b16 %v3890, %v3882
        %v3931 = vpack.c.b16 %v3891, %v3883
        %v3932 = vpack.c.b16 %v3892, %v3884
        %v3933 = vpack.c.b16 %v3901, %v3893
        %v3934 = vpack.c.b16 %v3902, %v3894
        %v3935 = vpack.c.b16 %v3903, %v3895
        %v3936 = vpack.c.b16 %v3904, %v3896
        %v3937 = vpack.c.b16 %v3905, %v3897
        %v3938 = vpack.c.b16 %v3906, %v3898
        %v3939 = vpack.c.b16 %v3907, %v3899
        %v3940 = vpack.c.b16 %v3908, %v3900
        %v3974 = vsel %vm752, %v3762, 0
        %3976 = vmatpush.bf16.msra.mxu0 0
        %3977 = vmatpush.bf16.msra.mxu0 0
        %3978 = vmatpush.bf16.msra.mxu0 0
        %3979 = vmatpush.bf16.msra.mxu0 0
        %3980 = vmatpush.bf16.msra.mxu0 %v3933
        %3981 = vmatpush.bf16.msra.mxu0 %v3925
        %3982 = vmatpush.bf16.msra.mxu0 %v3917
        %3983 = vmatpush.bf16.msra.mxu0 %v3909
        %3984 = vmatmul.bf16.gmra.mxu0 %v3974
        %v3985 = vpop.f32.mrf.mxu0
        %v3986 = vadd.f32 %v3797, %v3985
        %v3987 = vpop.f32.mrf.mxu0
        %v3988 = vadd.f32 %v3797, %v3987
        %3989 = vdwg.mxu0
        %3990 = vmatpush.bf16.msra.mxu0 0
        %3991 = vmatpush.bf16.msra.mxu0 0
        %3992 = vmatpush.bf16.msra.mxu0 0
        %3993 = vmatpush.bf16.msra.mxu0 0
        %3994 = vmatpush.bf16.msra.mxu0 %v3934
        %3995 = vmatpush.bf16.msra.mxu0 %v3926
        %3996 = vmatpush.bf16.msra.mxu0 %v3918
        %3997 = vmatpush.bf16.msra.mxu0 %v3910
        %3998 = vmatmul.bf16.gmra.mxu0 %v3974
        %v3999 = vpop.f32.mrf.mxu0
        %v4000 = vadd.f32 %v3798, %v3999
        %v4001 = vpop.f32.mrf.mxu0
        %v4002 = vadd.f32 %v3798, %v4001
        %4003 = vdwg.mxu0
        %4004 = vmatpush.bf16.msra.mxu0 0
        %4005 = vmatpush.bf16.msra.mxu0 0
        %4006 = vmatpush.bf16.msra.mxu0 0
        %4007 = vmatpush.bf16.msra.mxu0 0
        %4008 = vmatpush.bf16.msra.mxu0 %v3935
        %4009 = vmatpush.bf16.msra.mxu0 %v3927
        %4010 = vmatpush.bf16.msra.mxu0 %v3919
        %4011 = vmatpush.bf16.msra.mxu0 %v3911
        %4012 = vmatmul.bf16.gmra.mxu0 %v3974
        %v4013 = vpop.f32.mrf.mxu0
        %v4014 = vadd.f32 %v3799, %v4013
        %v4015 = vpop.f32.mrf.mxu0
        %v4016 = vadd.f32 %v3799, %v4015
        %4017 = vdwg.mxu0
        %4018 = vmatpush.bf16.msra.mxu0 0
        %4019 = vmatpush.bf16.msra.mxu0 0
        %4020 = vmatpush.bf16.msra.mxu0 0
        %4021 = vmatpush.bf16.msra.mxu0 0
        %4022 = vmatpush.bf16.msra.mxu0 %v3936
        %4023 = vmatpush.bf16.msra.mxu0 %v3928
        %4024 = vmatpush.bf16.msra.mxu0 %v3920
        %4025 = vmatpush.bf16.msra.mxu0 %v3912
        %4026 = vmatmul.bf16.gmra.mxu0 %v3974
        %v4027 = vpop.f32.mrf.mxu0
        %v4028 = vadd.f32 %v3800, %v4027
        %v4029 = vpop.f32.mrf.mxu0
        %v4030 = vadd.f32 %v3800, %v4029
        %4031 = vdwg.mxu0
        %4032 = vmatpush.bf16.msra.mxu0 0
        %4033 = vmatpush.bf16.msra.mxu0 0
        %4034 = vmatpush.bf16.msra.mxu0 0
        %4035 = vmatpush.bf16.msra.mxu0 0
        %4036 = vmatpush.bf16.msra.mxu0 %v3937
        %4037 = vmatpush.bf16.msra.mxu0 %v3929
        %4038 = vmatpush.bf16.msra.mxu0 %v3921
        %4039 = vmatpush.bf16.msra.mxu0 %v3913
        %4040 = vmatmul.bf16.gmra.mxu0 %v3974
        %v4041 = vpop.f32.mrf.mxu0
        %v4042 = vadd.f32 %v3801, %v4041
        %v4043 = vpop.f32.mrf.mxu0
        %v4044 = vadd.f32 %v3801, %v4043
        %4045 = vdwg.mxu0
        %4046 = vmatpush.bf16.msra.mxu0 0
        %4047 = vmatpush.bf16.msra.mxu0 0
        %4048 = vmatpush.bf16.msra.mxu0 0
        %4049 = vmatpush.bf16.msra.mxu0 0
        %4050 = vmatpush.bf16.msra.mxu0 %v3938
        %4051 = vmatpush.bf16.msra.mxu0 %v3930
        %4052 = vmatpush.bf16.msra.mxu0 %v3922
        %4053 = vmatpush.bf16.msra.mxu0 %v3914
        %4054 = vmatmul.bf16.gmra.mxu0 %v3974
        %v4055 = vpop.f32.mrf.mxu0
        %v4056 = vadd.f32 %v3802, %v4055
        %v4057 = vpop.f32.mrf.mxu0
        %v4058 = vadd.f32 %v3802, %v4057
        %4059 = vdwg.mxu0
        %4060 = vmatpush.bf16.msra.mxu0 0
        %4061 = vmatpush.bf16.msra.mxu0 0
        %4062 = vmatpush.bf16.msra.mxu0 0
        %4063 = vmatpush.bf16.msra.mxu0 0
        %4064 = vmatpush.bf16.msra.mxu0 %v3939
        %4065 = vmatpush.bf16.msra.mxu0 %v3931
        %4066 = vmatpush.bf16.msra.mxu0 %v3923
        %4067 = vmatpush.bf16.msra.mxu0 %v3915
        %4068 = vmatmul.bf16.gmra.mxu0 %v3974
        %v4069 = vpop.f32.mrf.mxu0
        %v4070 = vadd.f32 %v3803, %v4069
        %v4071 = vpop.f32.mrf.mxu0
        %v4072 = vadd.f32 %v3803, %v4071
        %4073 = vdwg.mxu0
        %4074 = vmatpush.bf16.msra.mxu0 0
        %4075 = vmatpush.bf16.msra.mxu0 0
        %4076 = vmatpush.bf16.msra.mxu0 0
        %4077 = vmatpush.bf16.msra.mxu0 0
        %4078 = vmatpush.bf16.msra.mxu0 %v3940
        %4079 = vmatpush.bf16.msra.mxu0 %v3932
        %4080 = vmatpush.bf16.msra.mxu0 %v3924
        %4081 = vmatpush.bf16.msra.mxu0 %v3916
        %4082 = vmatmul.bf16.gmra.mxu0 %v3974
        %v4083 = vpop.f32.mrf.mxu0
        %v4084 = vadd.f32 %v3804, %v4083
        %v4085 = vpop.f32.mrf.mxu0
        %v4086 = vadd.f32 %v3804, %v4085
        %4087 = vdwg.mxu0
        %v4088 = vmax.f32 %v3986, %v4014
        %v4089 = vmax.f32 %v4000, %v4028
        %v4090 = vmax.f32 %v4088, %v4042
        %v4091 = vmax.f32 %v4089, %v4056
        %v4092 = vmax.f32 %v4090, %v4070
        %v4093 = vmax.f32 %v4091, %v4084
        %v4094 = vmax.f32 %v4092, %v4093
        %4095 = vmax.xlane.f32.xlu0 %v4094
        %v4096 = vpop.xlane.xlu0 %4095
        %v4097 = vmax.f32 %v3988, %v4016
        %v4098 = vmax.f32 %v4002, %v4030
        %v4099 = vmax.f32 %v4097, %v4044
        %v4100 = vmax.f32 %v4098, %v4058
        %v4101 = vmax.f32 %v4099, %v4072
        %v4102 = vmax.f32 %v4100, %v4086
        %v4103 = vmax.f32 %v4101, %v4102
        %4104 = vmax.xlane.f32.xlu0 %v4103
        %v4105 = vpop.xlane.xlu0 %4104
        %v4106 = vsub.f32 %v3986, %v4096
        %v4107 = vsub.f32 %v4000, %v4096
        %v4108 = vsub.f32 %v4014, %v4096
        %v4109 = vsub.f32 %v4028, %v4096
        %v4110 = vsub.f32 %v4042, %v4096
        %v4111 = vsub.f32 %v4056, %v4096
        %v4112 = vsub.f32 %v4070, %v4096
        %v4113 = vsub.f32 %v4084, %v4096
        %v4114 = vsub.f32 %v3988, %v4105
        %v4115 = vsub.f32 %v4002, %v4105
        %v4116 = vsub.f32 %v4016, %v4105
        %v4117 = vsub.f32 %v4030, %v4105
        %v4118 = vsub.f32 %v4044, %v4105
        %v4119 = vsub.f32 %v4058, %v4105
        %v4120 = vsub.f32 %v4072, %v4105
        %v4121 = vsub.f32 %v4086, %v4105
        %v4122 = vmul.f32 %v4106, 1.442695
        %v4123 = vpow.pop %v4122
        %v4124 = vmul.f32 %v4107, 1.442695
        %v4125 = vpow.pop %v4124
        %v4126 = vmul.f32 %v4108, 1.442695
        %v4127 = vpow.pop %v4126
        %v4128 = vmul.f32 %v4109, 1.442695
        %v4129 = vpow.pop %v4128
        %v4130 = vmul.f32 %v4110, 1.442695
        %v4131 = vpow.pop %v4130
        %v4132 = vmul.f32 %v4111, 1.442695
        %v4133 = vpow.pop %v4132
        %v4134 = vmul.f32 %v4112, 1.442695
        %v4135 = vpow.pop %v4134
        %v4136 = vmul.f32 %v4113, 1.442695
        %v4137 = vpow.pop %v4136
        %v4138 = vmul.f32 %v4114, 1.442695
        %v4139 = vpow.pop %v4138
        %v4140 = vmul.f32 %v4115, 1.442695
        %v4141 = vpow.pop %v4140
        %v4142 = vmul.f32 %v4116, 1.442695
        %v4143 = vpow.pop %v4142
        %v4144 = vmul.f32 %v4117, 1.442695
        %v4145 = vpow.pop %v4144
        %v4146 = vmul.f32 %v4118, 1.442695
        %v4147 = vpow.pop %v4146
        %v4148 = vmul.f32 %v4119, 1.442695
        %v4149 = vpow.pop %v4148
        %v4150 = vmul.f32 %v4120, 1.442695
        %v4151 = vpow.pop %v4150
        %v4152 = vmul.f32 %v4121, 1.442695
        %v4153 = vpow.pop %v4152
        %v4154 = vadd.f32 %v4123, %v4125
        %v4155 = vadd.f32 %v4154, %v4127
        %v4156 = vadd.f32 %v4155, %v4129
        %v4157 = vadd.f32 %v4156, %v4131
        %v4158 = vadd.f32 %v4157, %v4133
        %v4159 = vadd.f32 %v4158, %v4135
        %v4160 = vadd.f32 %v4159, %v4137
        %4161 = vadd.xlane.f32.xlu0 %v4160
        %v4162 = vpop.xlane.xlu0 %4161
        %v4163 = vadd.f32 %v4139, %v4141
        %v4164 = vadd.f32 %v4163, %v4143
        %v4165 = vadd.f32 %v4164, %v4145
        %v4166 = vadd.f32 %v4165, %v4147
        %v4167 = vadd.f32 %v4166, %v4149
        %v4168 = vadd.f32 %v4167, %v4151
        %v4169 = vadd.f32 %v4168, %v4153
        %4170 = vadd.xlane.f32.xlu0 %v4169
        %v4171 = vpop.xlane.xlu0 %4170
        %v4172 = vlog2.pop %v4162
        %v4173 = vmul.f32 %v4172, 0.6931472
        %v4174 = vlog2.pop %v4171
        %v4175 = vmul.f32 %v4174, 0.6931472
        %v4176 = vadd.f32 %v4173, %v4096
        %v4177 = vadd.f32 %v4175, %v4105
        %v4178 = vsub.f32 %v3986, %v4176
        %v4179 = vsub.f32 %v4000, %v4176
        %v4180 = vsub.f32 %v4014, %v4176
        %v4181 = vsub.f32 %v4028, %v4176
        %v4182 = vsub.f32 %v4042, %v4176
        %v4183 = vsub.f32 %v4056, %v4176
        %v4184 = vsub.f32 %v4070, %v4176
        %v4185 = vsub.f32 %v4084, %v4176
        %v4186 = vsub.f32 %v3988, %v4177
        %v4187 = vsub.f32 %v4002, %v4177
        %v4188 = vsub.f32 %v4016, %v4177
        %v4189 = vsub.f32 %v4030, %v4177
        %v4190 = vsub.f32 %v4044, %v4177
        %v4191 = vsub.f32 %v4058, %v4177
        %v4192 = vsub.f32 %v4072, %v4177
        %v4193 = vsub.f32 %v4086, %v4177
        %4194 = vst [vmem:[%s16] sm:$0xff] %v4178
        %4195 = vst [vmem:[%s16 + $0x8] sm:$0xff] %v4179
        %4196 = vst [vmem:[%s16 + $0x10] sm:$0xff] %v4180
        %4197 = vst [vmem:[%s16 + $0x18] sm:$0xff] %v4181
        %4198 = vst [vmem:[%s16 + $0x20] sm:$0xff] %v4182
        %4199 = vst [vmem:[%s16 + $0x28] sm:$0xff] %v4183
        %4200 = vst [vmem:[%s16 + $0x30] sm:$0xff] %v4184
        %4201 = vst [vmem:[%s16 + $0x38] sm:$0xff] %v4185
        %4202 = vst [vmem:[%s16 + $0x40] sm:$0xff] %v4186
        %4203 = vst [vmem:[%s16 + $0x48] sm:$0xff] %v4187
        %4204 = vst [vmem:[%s16 + $0x50] sm:$0xff] %v4188
        %4205 = vst [vmem:[%s16 + $0x58] sm:$0xff] %v4189
        %4206 = vst [vmem:[%s16 + $0x60] sm:$0xff] %v4190
        %4207 = vst [vmem:[%s16 + $0x68] sm:$0xff] %v4191
        %4208 = vst [vmem:[%s16 + $0x70] sm:$0xff] %v4192
        %4209 = vst [vmem:[%s16 + $0x78] sm:$0xff] %v4193
      $region92: #{forward.1} parent=83 // pred_fallthru
        _
      // Predicated region
      $region93: #{forward.1} parent=83 // pred_check
        %p4210 = pneg %p436
      $region94: #{forward.1} parent=83 // pred_check_branch
        %4212 = sbr.rel (%p4210) target = $region96
      $region95: #{forward.1} parent=83 // pred_region
        _
      $region96: #{forward.1} parent=83 // pred_fallthru
        _
      // Predicated region
      $region97: #{forward.1} parent=83 // pred_check
        %p4213 = pneg %p436
      $region98: #{forward.1} parent=83 // pred_check_branch
        %4215 = sbr.rel (%p4213) target = $region100
      $region99: #{forward.1} parent=83 // pred_region
        _
      $region100: #{forward.1} parent=83 // pred_fallthru
        _
    $region84: #{forward.1} parent=5 // pred_fallthru
      _
    %p4216 = scmp.le.s32.totalorder 2, %s22
    // Predicated region
    $region101: #{forward.1} parent=5 // pred_check
      %p4217 = pneg %p4216
    $region102: #{forward.1} parent=5 // pred_check_branch
      %4219 = sbr.rel (%p4217) target = $region104
    $region103: #{forward.1} parent=5 // pred_region
      %s4220 = ssub.s32 %s22, 2
    $region104: #{forward.1} parent=5 // pred_fallthru
      _
  $region6: #{forward.1} parent=0 // loop_footer
    %s26 = sadd.s32 1, %s22
  $region7: #{forward.1} parent=0 // loop_footer_branch
    %21 = sbr.rel target = $region3
  $region8: #{forward.1} parent=0 // loop_exit
    _

</llo_original>
